<compile_context>
chip_gen: v7x
topology: tpu7x:2x2x1
jax: 0.10.0
libtpu: 0.0.40
codegen_flags: <defaults>
</compile_context>

<pallas_src>
import functools
import math

import jax
import jax.numpy as jnp
import numpy as np
from jax.experimental import pallas as pl
from jax.experimental.pallas import tpu as pltpu

_SENT = 3.0e38                    # "+inf" sentinel key (valid keys are tiny)
_EXP_BIAS = 1 << 23               # exponent bump -> packed keys never denormal
_VMEM_LIMIT = 32 * 1024 * 1024    # explicit scoped-VMEM budget (safe on v5e/v6e/v7x)

# Tile defaults: the radius search is VPU/XLU-bound in the top-k loop, so the
# support tile is sized for per-tile-cost amortization (not MXU shape).
_TILE_Q = 256
_TILE_S = 1024
_TILE_N = 256
_MAX_TILE_V = 2048


def _round_up(x, m):
    return ((x + m - 1) // m) * m


# -----------------------------------------------------------------------------
# Pallas kernel 1: streaming radius neighbor search (k nearest within radius)
# -----------------------------------------------------------------------------
def _radius_search_kernel(count_ref, q_ref, s_ref, out_ref, best_ref, *,
                          radius_sq, num_neighbors, tile_s, idx_bits):
    """q_ref  : (TQ, 8)  columns = [x, y, z, qbatch, 0, 0, 0, 0]
       s_ref  : (8, TS)  rows    = [x, y, z, sbatch, 0, 0, 0, 0]
       out_ref: (TQ, 128) int32 slab; lane k < K holds the k-th neighbor index.
       best_ref: (TQ, 128) f32 running best packed keys (_SENT = empty)."""
    si = pl.program_id(1)

    @pl.when(si == 0)
    def _init():
        best_ref[...] = jnp.full_like(best_ref, _SENT)

    q = q_ref[...]
    s = s_ref[...]

    # Exact per-coordinate squared distance on the VPU (no cancellation, no
    # dependence on matmul precision); result is >= +0.0 by construction.
    dx = q[:, 0:1] - s[0:1, :]
    dy = q[:, 1:2] - s[1:2, :]
    dz = q[:, 2:3] - s[2:3, :]
    d2 = dx * dx + dy * dy + dz * dz                                    # (TQ, TS)
    ok = (q[:, 3:4] == s[3:4, :]) & (d2 <= radius_sq)

    # Packed sortable key: bit pattern of non-negative d2 (monotone in value)
    # with the low `idx_bits` mantissa bits replaced by the global column id,
    # plus a +2^23 exponent bump so the f32 view is always a normal float
    # (int order == f32 order, and no denormal/FTZ hazard in min/compare).
    lo_mask = (1 << idx_bits) - 1
    col = jax.lax.broadcasted_iota(jnp.int32, d2.shape, 1) + si * tile_s
    bits = pltpu.bitcast(d2, jnp.int32)
    key_i = ((bits & jnp.int32(~lo_mask)) | col) + jnp.int32(_EXP_BIAS)
    key = jnp.where(ok, pltpu.bitcast(key_i, jnp.float32), _SENT)       # (TQ, TS)

    # Read-only monotone threshold scan: keys are unique per row, so the j-th
    # smallest is min over {x : x > m_{j-1}}.  Neither `key` nor the carried
    # `best` is ever rewritten inside the loop.
    best = best_ref[...]                                                # (TQ, 128)
    lane = jax.lax.broadcasted_iota(jnp.int32, best.shape, 1)
    new_best = jnp.full_like(best, _SENT)
    m = jnp.full((q.shape[0], 1), -1.0, jnp.float32)
    for j in range(num_neighbors):
        ck = jnp.min(jnp.where(key > m, key, _SENT), axis=1, keepdims=True)
        cb = jnp.min(jnp.where(best > m, best, _SENT), axis=1, keepdims=True)
        m = jnp.minimum(ck, cb)
        new_best = jnp.where(lane == j, m, new_best)
    best_ref[...] = new_best

    @pl.when(si == pl.num_programs(1) - 1)
    def _finalize():
        fill = count_ref[0]                      # valid support count (shadow)
        idx = pltpu.bitcast(new_best, jnp.int32) & jnp.int32(lo_mask)
        out_ref[...] = jnp.where(new_best < _SENT, idx, fill)


def radius_search(q_feat, s_feat, s_count, radius, num_neighbors,
                  tile_q=_TILE_Q, tile_s=_TILE_S):
    """q_feat (NQ, 8), s_feat (8, NS) -> (NQ, num_neighbors) int32 indices."""
    nq = q_feat.shape[0]
    ns = s_feat.shape[1]
    k = int(num_neighbors)
    assert k <= 128

    # v7x megacore: keep >= 2 query tiles on the leading "parallel" axis.
    tile_q = min(int(tile_q), max(8, _round_up((nq + 1) // 2, 8)))
    tile_s = min(int(tile_s), _round_up(ns, 128))
    nq_pad = _round_up(nq, tile_q)
    ns_pad = _round_up(ns, tile_s)

    if nq_pad > nq:           # padded queries: batch -1 -> match nothing
        pad = jnp.zeros((nq_pad - nq, 8), jnp.float32).at[:, 3].set(-1.0)
        q_feat = jnp.concatenate([q_feat, pad], axis=0)
    if ns_pad > ns:           # padded supports: batch -2 -> never selected
        pad = jnp.zeros((8, ns_pad - ns), jnp.float32).at[3, :].set(-2.0)
        s_feat = jnp.concatenate([s_feat, pad], axis=1)

    idx_bits = max(1, (ns - 1).bit_length())
    assert idx_bits <= 23     # index packs into f32 mantissa bits

    kernel = functools.partial(
        _radius_search_kernel, radius_sq=float(radius) ** 2,
        num_neighbors=k, tile_s=tile_s, idx_bits=idx_bits)
    out = pl.pallas_call(
        kernel,
        out_shape=jax.ShapeDtypeStruct((nq_pad, 128), jnp.int32),
        grid_spec=pltpu.PrefetchScalarGridSpec(
            num_scalar_prefetch=1,
            grid=(nq_pad // tile_q, ns_pad // tile_s),
            in_specs=[
                pl.BlockSpec((tile_q, 8), lambda i, s, c: (i, 0)),
                pl.BlockSpec((8, tile_s), lambda i, s, c: (0, s)),
            ],
            out_specs=pl.BlockSpec((tile_q, 128), lambda i, s, c: (i, 0)),
            scratch_shapes=[pltpu.VMEM((tile_q, 128), jnp.float32)],
        ),
        compiler_params=pltpu.CompilerParams(
            dimension_semantics=("parallel", "arbitrary"),
            vmem_limit_bytes=_VMEM_LIMIT),
    )(jnp.reshape(s_count, (1,)).astype(jnp.int32), q_feat, s_feat)
    return out[:nq, :k]


# -----------------------------------------------------------------------------
# Pallas kernel 2: voxel-grid accumulation (one-hot NT matmul, point-axis tiled)
# -----------------------------------------------------------------------------
def _voxel_accum_kernel(vox_ref, feat_ref, out_ref, acc_ref):
    vi = pl.program_id(0)
    ti = pl.program_id(1)

    @pl.when(ti == 0)
    def _init():
        acc_ref[...] = jnp.zeros_like(acc_ref)

    vox = vox_ref[...]                                    # (1, TN) int32, lane-dense
    tv = acc_ref.shape[1]
    tn = vox.shape[1]
    row = jax.lax.broadcasted_iota(jnp.int32, (tv, tn), 0) + vi * tv
    onehot = (vox == row).astype(jnp.float32)             # (TV, TN) sublane bcast
    # TODO(synk): for very large N replace the dense one-hot with a
    # sort-by-voxel-id + segment-sum path (the one-hot build is O(V*N) VALU).
    acc_ref[...] += jax.lax.dot_general(
        feat_ref[...], onehot, (((1,), (1,)), ((), ())),
        preferred_element_type=jnp.float32)               # (8, TV)

    @pl.when(ti == pl.num_programs(1) - 1)
    def _fin():
        out_ref[...] = acc_ref[...]


def voxel_accumulate(vox_ids, feats, v_pad, tile_v, tile_n):
    """vox_ids (1, N) int32, feats (8, N) f32 -> per-voxel sums (8, v_pad)."""
    n = feats.shape[1]
    assert n % tile_n == 0 and v_pad % tile_v == 0
    return pl.pallas_call(
        _voxel_accum_kernel,
        out_shape=jax.ShapeDtypeStruct((8, v_pad), jnp.float32),
        grid_spec=pltpu.PrefetchScalarGridSpec(
            num_scalar_prefetch=0,
            grid=(v_pad // tile_v, n // tile_n),
            in_specs=[
                pl.BlockSpec((1, tile_n), lambda v, t: (0, t)),
                pl.BlockSpec((8, tile_n), lambda v, t: (0, t)),
            ],
            out_specs=pl.BlockSpec((8, tile_v), lambda v, t: (0, v)),
            scratch_shapes=[pltpu.VMEM((8, tile_v), jnp.float32)],
        ),
        compiler_params=pltpu.CompilerParams(
            dimension_semantics=("parallel", "arbitrary"),
            vmem_limit_bytes=_VMEM_LIMIT),
    )(vox_ids, feats)


# -----------------------------------------------------------------------------
# Glue (plain JAX): stacked-layout bookkeeping, query/support views, compaction
# -----------------------------------------------------------------------------
def _batch_ids_and_valid(lengths, n_pad):
    csum = jnp.cumsum(lengths)
    idx = jnp.arange(n_pad, dtype=jnp.int32)
    batch_ids = jnp.searchsorted(csum, idx, side="right").astype(jnp.int32)
    valid = idx < csum[-1]
    return batch_ids, valid, csum[-1]


def _build_query_feats(points, batch_ids, valid):
    # (N, 8): [x, y, z, batch_id, 0, 0, 0, 0]; padded rows get batch -1.
    n = points.shape[0]
    pts = jnp.where(valid[:, None], points, 0.0)
    qb = jnp.where(valid, batch_ids.astype(jnp.float32), -1.0)
    feat = jnp.zeros((n, 8), jnp.float32)
    feat = feat.at[:, 0:3].set(pts)
    feat = feat.at[:, 3].set(qb)
    return feat


def _build_support_feats(points, batch_ids, valid):
    # (8, N): [x; y; z; batch_id; 0; 0; 0; 0]; padded cols get batch -2.
    n = points.shape[0]
    pts = jnp.where(valid[:, None], points, 0.0)
    sb = jnp.where(valid, batch_ids.astype(jnp.float32), -2.0)
    feat = jnp.zeros((8, n), jnp.float32)
    feat = feat.at[0:3, :].set(pts.T)
    feat = feat.at[3, :].set(sb)
    return feat


def grid_subsample(points, lengths, voxel_size, bounds=(0.0, 1.0),
                   tile_n=_TILE_N):
    """Voxel-grid subsampling: average all points falling in the same voxel."""
    # TODO(synk): the C++ op derives the grid origin from per-batch minima; here
    # a fixed static bounding box is assumed (points normalized to `bounds`).
    n_pad = points.shape[0]
    num_batches = lengths.shape[0]
    batch_ids, valid, _ = _batch_ids_and_valid(lengths, n_pad)

    vd = int(math.ceil((bounds[1] - bounds[0]) / voxel_size)) + 1   # static
    vd3 = vd ** 3
    v_total = num_batches * vd3
    # Large voxel tile (fewer re-streams of point blocks) but keep >= 2 tiles
    # so the "parallel" voxel axis feeds both v7x TensorCores.
    tile_v = min(_MAX_TILE_V, max(128, _round_up((v_total + 1) // 2, 128)))
    v_pad = _round_up(v_total, tile_v)

    local = jnp.floor((points - bounds[0]) / voxel_size).astype(jnp.int32)
    local = jnp.clip(local, 0, vd - 1)
    flat = (local[:, 0] * vd + local[:, 1]) * vd + local[:, 2]
    vox = jnp.where(valid, batch_ids * vd3 + flat, -1).astype(jnp.int32)

    pts = jnp.where(valid[:, None], points, 0.0)
    feats = jnp.zeros((8, n_pad), jnp.float32)
    feats = feats.at[0:3, :].set(pts.T)
    feats = feats.at[3, :].set(valid.astype(jnp.float32))   # row 3 = point count

    tile_n = min(tile_n, _round_up(n_pad, 128))
    n_al = _round_up(n_pad, tile_n)
    if n_al > n_pad:
        feats = jnp.pad(feats, ((0, 0), (0, n_al - n_pad)))
        vox = jnp.pad(vox, (0, n_al - n_pad), constant_values=-1)

    sums = voxel_accumulate(vox.reshape(1, -1), feats, v_pad, tile_v, tile_n)
    counts = sums[3, :v_total]
    centroids = (sums[0:3, :v_total] / jnp.maximum(counts, 1.0)[None, :]).T
    occupied = counts > 0.5

    # O(V) prefix-sum compaction; output is ordered by voxel id and grouped
    # per batch via the per-batch voxel-id offset.
    # TODO(synk): the C++ grid_subsample orders output points by hash-map
    # insertion (first occurrence); here they are ordered by voxel id.
    pos = jnp.cumsum(occupied.astype(jnp.int32)) - 1
    tgt = jnp.where(occupied, pos, n_pad)                 # OOB rows are dropped
    new_points = jnp.zeros((n_pad, 3), jnp.float32).at[tgt].set(
        centroids, mode="drop")
    new_lengths = jnp.sum(occupied.reshape(num_batches, vd3),
                          axis=1).astype(jnp.int32)
    return new_points, new_lengths


def create_grid_pyramid(points, lengths, num_level, voxel_size, search_radius,
                        max_neighbors, bounds=(0.0, 1.0)):
    if num_level != len(max_neighbors):
        raise ValueError(
            'The value of "num_level" and the size of "max_neighbors" do not match.')

    # Level 0 = input; level i subsampled with voxel_size * 2**(i-1).
    points_list = [points]
    lengths_list = [lengths]
    vs = float(voxel_size)
    for _ in range(1, num_level):
        pts, lens = grid_subsample(points_list[-1], lengths_list[-1], vs, bounds)
        points_list.append(pts)
        lengths_list.append(lens)
        vs *= 2.0

    q_feats, s_feats, counts = [], [], []
    for i in range(num_level):
        bids, val, tot = _batch_ids_and_valid(lengths_list[i],
                                              points_list[i].shape[0])
        q_feats.append(_build_query_feats(points_list[i], bids, val))
        s_feats.append(_build_support_feats(points_list[i], bids, val))
        counts.append(tot)

    neighbors_list, subsampling_list, upsampling_list = [], [], []
    radius = float(search_radius)
    for i in range(num_level):
        k_i = int(max_neighbors[i])
        if i < num_level - 1:
            # Fused: neighbors (level i -> i) and subsampling (level i+1 -> i)
            # share support s_i, radius and k; one pallas_call, split after.
            n_i = points_list[i].shape[0]
            q_cat = jnp.concatenate([q_feats[i], q_feats[i + 1]], axis=0)
            both = radius_search(q_cat, s_feats[i], counts[i], radius, k_i)
            neighbors_list.append(both[:n_i])
            subsampling_list.append(both[n_i:])
            upsampling_list.append(
                radius_search(q_feats[i], s_feats[i + 1], counts[i + 1],
                              radius * 2.0, int(max_neighbors[i + 1])))
        else:
            neighbors_list.append(
                radius_search(q_feats[i], s_feats[i], counts[i], radius, k_i))
        radius *= 2.0

    # TODO(synk): the original op returns exactly-sized (dynamic) tensors; here
    # every level is padded to the level-0 point capacity and sized by lengths.
    return {
        "points": points_list,
        "lengths": lengths_list,
        "neighbors": neighbors_list,
        "subsampling": subsampling_list,
        "upsampling": upsampling_list,
    }


class GridPyramid:
    """JAX/Pallas port of easy_kpconv GridPyramid (no learnable parameters)."""

    def __init__(self, num_level, voxel_size, search_radius, max_neighbors):
        if num_level != len(max_neighbors):
            raise ValueError(
                'The value of "num_level" and the size of "max_neighbors" do not match.')
        self.num_level = num_level
        self.voxel_size = voxel_size
        self.search_radius = search_radius
        self.max_neighbors = max_neighbors

    def __call__(self, points, lengths):
        return create_grid_pyramid(points, lengths, self.num_level,
                                   self.voxel_size, self.search_radius,
                                   self.max_neighbors)


if __name__ == "__main__":
    key = jax.random.PRNGKey(0)
    lengths = jnp.array([100, 120], dtype=jnp.int32)       # batch of 2 clouds
    n_pad = 256                                             # padded stacked size
    points = jax.random.uniform(key, (n_pad, 3), dtype=jnp.float32)
    total = int(jnp.sum(lengths))
    valid = jnp.arange(n_pad) < total
    points = jnp.where(valid[:, None], points, 0.0)

    module = GridPyramid(num_level=3, voxel_size=0.08, search_radius=0.1,
                         max_neighbors=[16, 16, 16])
    pyramid = jax.block_until_ready(module(points, lengths))

    # --- structural checks ---------------------------------------------------
    assert len(pyramid["points"]) == 3
    assert len(pyramid["lengths"]) == 3
    assert len(pyramid["neighbors"]) == 3
    assert len(pyramid["subsampling"]) == 2
    assert len(pyramid["upsampling"]) == 2
    assert pyramid["neighbors"][0].shape == (n_pad, 16)
    assert pyramid["neighbors"][0].dtype == jnp.int32
    assert pyramid["subsampling"][0].shape == (n_pad, 16)
    assert pyramid["upsampling"][0].shape == (n_pad, 16)
    l1 = np.asarray(pyramid["lengths"][1])
    assert np.all(l1 > 0) and np.all(l1 <= np.asarray(lengths))

    # --- semantic checks on level-0 neighbors --------------------------------
    bids, val, tot = _batch_ids_and_valid(lengths, n_pad)
    nbr = np.asarray(pyramid["neighbors"][0])
    fill = int(tot)
    pts_np = np.asarray(points)
    bids_np = np.asarray(bids)
    val_np = np.asarray(val)
    r2 = module.search_radius ** 2
    for i in range(n_pad):
        if not val_np[i]:
            continue
        row = nbr[i]
        assert np.all((row >= 0) & (row <= fill))
        assert row[0] == i                              # self (d2 = 0) is nearest
        real = row[row < fill]
        assert np.all(bids_np[real] == bids_np[i])      # no cross-batch leak
        d2 = np.sum((pts_np[real] - pts_np[i]) ** 2, axis=1)
        assert np.all(d2 <= r2 + 1e-5)                  # all within radius

    # --- tiling invariance: streamed support tiles == single-tile result -----
    q0 = _build_query_feats(points, bids, val)
    s0 = _build_support_feats(points, bids, val)
    a = radius_search(q0, s0, tot, module.search_radius, 16,
                      tile_q=256, tile_s=512)
    b = radius_search(q0, s0, tot, module.search_radius, 16,
                      tile_q=64, tile_s=128)
    assert np.array_equal(np.asarray(a), np.asarray(b))

    print("KERNEL_OK")
</pallas_src>

<mosaic_0001>
module attributes {stable_mosaic.version = 11 : i64} {
  func.func @_voxel_accum_kernel(%arg0: i32, %arg1: i32, %arg2: memref<1x256xi32, #tpu.memory_space<vmem>>, %arg3: memref<8x256xf32, #tpu.memory_space<vmem>>, %arg4: memref<8x2048xf32, #tpu.memory_space<vmem>>, %arg5: memref<8x2048xf32, #tpu.memory_space<vmem>>) attributes {dimension_semantics = [#tpu.dimension_semantics<parallel>, #tpu.dimension_semantics<arbitrary>], iteration_bounds = array<i64: 3, 1>, scalar_prefetch = 0 : i64, scratch_operands = 1 : i64, tpu.core_type = #tpu.core_type<tc>, window_params = [{transform_indices = @transform_0, window_bounds = array<i64: 1, 256>}, {transform_indices = @transform_1, window_bounds = array<i64: 8, 256>}, {transform_indices = @transform_2, window_bounds = array<i64: 8, 2048>}]} {
    %c0_i32 = arith.constant 0 : i32
    %0 = arith.cmpi eq, %arg1, %c0_i32 : i32
    %1 = arith.extui %0 : i1 to i32
    %c0_i32_0 = arith.constant 0 : i32
    %2 = arith.cmpi ne, %1, %c0_i32_0 : i32
    scf.if %2 {
      %cst_10 = arith.constant 0.000000e+00 : f32
      %20 = vector.broadcast %cst_10 : f32 to vector<8x2048xf32>
      %c0_11 = arith.constant 0 : index
      %c0_12 = arith.constant 0 : index
      %21 = vector.load %arg5[%c0_11, %c0_12] : memref<8x2048xf32, #tpu.memory_space<vmem>>, vector<8x2048xf32>
      tpu.vector_store %arg5[%c0_11, %c0_12], %20 {strides = array<i32>} : memref<8x2048xf32, #tpu.memory_space<vmem>>, vector<8x2048xf32>,
    } else {
    }
    %c0 = arith.constant 0 : index
    %c0_1 = arith.constant 0 : index
    %3 = vector.load %arg2[%c0, %c0_1] : memref<1x256xi32, #tpu.memory_space<vmem>>, vector<1x256xi32>
    %4 = tpu.iota {dimensions = array<i32: 0>} : vector<2048x256xi32>
    %c2048_i32 = arith.constant 2048 : i32
    %5 = arith.muli %arg0, %c2048_i32 : i32
    %6 = vector.broadcast %5 : i32 to vector<2048x256xi32>
    %7 = arith.addi %4, %6 : vector<2048x256xi32>
    %8 = vector.broadcast %3 : vector<1x256xi32> to vector<2048x256xi32>
    %9 = arith.cmpi eq, %8, %7 : vector<2048x256xi32>
    %10 = arith.extui %9 : vector<2048x256xi1> to vector<2048x256xi32>
    %11 = arith.sitofp %10 : vector<2048x256xi32> to vector<2048x256xf32>
    %c0_2 = arith.constant 0 : index
    %c0_3 = arith.constant 0 : index
    %12 = vector.load %arg5[%c0_2, %c0_3] : memref<8x2048xf32, #tpu.memory_space<vmem>>, vector<8x2048xf32>
    %c0_4 = arith.constant 0 : index
    %c0_5 = arith.constant 0 : index
    %13 = vector.load %arg3[%c0_4, %c0_5] : memref<8x256xf32, #tpu.memory_space<vmem>>, vector<8x256xf32>
    %cst = arith.constant dense<0.000000e+00> : vector<8x2048xf32>
    %14 = tpu.matmul %13, %11, %cst {dimension_numbers = #tpu.dot_dimension_numbers<[1], [1], [0], [0], [0, 0, 1, 0], [], []>} : vector<8x256xf32>, vector<2048x256xf32>, vector<8x2048xf32> -> vector<8x2048xf32>
    %15 = arith.addf %12, %14 : vector<8x2048xf32>
    %c0_6 = arith.constant 0 : index
    %c0_7 = arith.constant 0 : index
    %16 = vector.load %arg5[%c0_6, %c0_7] : memref<8x2048xf32, #tpu.memory_space<vmem>>, vector<8x2048xf32>
    tpu.vector_store %arg5[%c0_6, %c0_7], %15 {strides = array<i32>} : memref<8x2048xf32, #tpu.memory_space<vmem>>, vector<8x2048xf32>,
    %c0_i32_8 = arith.constant 0 : i32
    %17 = arith.cmpi eq, %arg1, %c0_i32_8 : i32
    %18 = arith.extui %17 : i1 to i32
    %c0_i32_9 = arith.constant 0 : i32
    %19 = arith.cmpi ne, %18, %c0_i32_9 : i32
    scf.if %19 {
      %c0_10 = arith.constant 0 : index
      %c0_11 = arith.constant 0 : index
      %20 = vector.load %arg5[%c0_10, %c0_11] : memref<8x2048xf32, #tpu.memory_space<vmem>>, vector<8x2048xf32>
      %c0_12 = arith.constant 0 : index
      %c0_13 = arith.constant 0 : index
      %21 = vector.load %arg4[%c0_12, %c0_13] : memref<8x2048xf32, #tpu.memory_space<vmem>>, vector<8x2048xf32>
      tpu.vector_store %arg4[%c0_12, %c0_13], %20 {strides = array<i32>} : memref<8x2048xf32, #tpu.memory_space<vmem>>, vector<8x2048xf32>,
    } else {
    }
    return
  }
  func.func @transform_0(%arg0: i32, %arg1: i32) -> (i32, i32) {
    %c0_i32 = arith.constant 0 : i32
    %c0_i32_0 = arith.constant 0 : i32
    return %c0_i32, %arg1 : i32, i32
  }
  func.func @transform_1(%arg0: i32, %arg1: i32) -> (i32, i32) {
    %c0_i32 = arith.constant 0 : i32
    %c0_i32_0 = arith.constant 0 : i32
    return %c0_i32, %arg1 : i32, i32
  }
  func.func @transform_2(%arg0: i32, %arg1: i32) -> (i32, i32) {
    %c0_i32 = arith.constant 0 : i32
    %c0_i32_0 = arith.constant 0 : i32
    return %c0_i32, %arg0 : i32, i32
  }
}

</mosaic_0001>

<llo_original>
// kernel: tpu_custom_call.1
$region0: #{tpu_custom_call.1}
  #allocation0 [shape = 'u32[]', space=smem, size = 0x4, offset = 0x4, fixed_abs, tag = 'smem constant byte address 0x4 - core index']
  #allocation1 [shape = 'u32[144,128]{1,0:T(1,128)}', space=vmem, size = 0x12000, scoped, tag = 'internal scratch']
  #allocation2 [shape = 'f32[8,2048]{1,0:T(8,128)}', space=vmem, size = 0x10000, scoped, tag = 'scratch operand']
  %s0 = inlined_call_operand.hbm [shape: s32[1,256], index: 0, kind: input, shape index: {}]
  %s1 = inlined_call_operand.hbm [shape: f32[8,256], index: 1, kind: input, shape index: {}]
  %s2 = inlined_call_operand.hbm [shape: f32[8,6144], index: 2, kind: output, shape index: {}]
  %s3 = sld [smem:[#allocation0]]
  $region57: #{tpu_custom_call.1} parent=0
    _
  %s5 = ssub.s32 1, %s3
  %s6 = scalar_select 0, %s5, %s3
  $region1: #{tpu_custom_call.1} parent=0
    #allocation3 [shape = 'u8[1024]{0}', space=vmem, size = 0x400, scoped, tag = 'input window, operand 0, single buffered']
    #allocation4 [shape = 's32[2]{0}', space=sflag, size = 0x8, scoped, tag = 'scoped memory for tpu_custom_call.1']
    #allocation5 [shape = 's32[2]{0}', space=sflag, size = 0x8, scoped, tag = 'scoped memory for tpu_custom_call.1']
    #allocation6 [shape = 'u8[8192]{0}', space=vmem, size = 0x2000, scoped, tag = 'input window, operand 1, single buffered']
    #allocation7 [shape = 's32[1]{0}', space=sflag, size = 0x4, scoped, tag = 'scoped memory for tpu_custom_call.1']
    #allocation8 [shape = 'u8[131072]{0}', space=vmem, size = 0x20000, scoped, tag = 'output window, operand 0']
    %7 = vsyncpa [#allocation4], 0
    %8 = vsyncpa [#allocation7], 0
    %9 = vsyncpa [#allocation5], 0
    %s10 = scalar_lea.sflag [#allocation5], 1
    %11 = vsyncpa %s10, 0
    loop: start=0, step=1, limit=5
    $region2: #{tpu_custom_call.1} parent=1 // loop_pre_header
      _
    $region3: #{tpu_custom_call.1} parent=1 // loop_header
      %s13 = sphi 0, %s17
      %p14 = scmp.ge.s32.totalorder %s13, 5
      %s20 = sphi 0, %s32
      %s21 = sphi 0, %s28
      %s22 = sphi 0, %s20
      %s23 = sphi 0, %s21
      %s24 = sphi 0, %s22
      %s25 = sphi 0, %s23
      %s35 = sphi 0, %s37
      %s38 = sphi 0, %s35
      %s39 = sphi 0, %s38
      %s55 = sphi 0, %s39
      %s61 = sphi 0, %s63
      %s64 = sphi 0, %s61
      %s65 = sphi 0, %s64
      %s81 = sphi 0, %s65
      %s87 = sphi 0, %s89
      %s90 = sphi 0, %s87
      %s91 = sphi 0, %s90
      %s107 = sphi 0, %s91
    $region4: #{tpu_custom_call.1} parent=1 // loop_header_branch
      %16 = sbr.rel (%p14) target = $region8
    $region5: #{tpu_custom_call.1} parent=1 // loop_body
      %s18 = ssub.s32 %s13, 1
      %s19 = ssub.s32 %s13, 2
      %s26 = sadd.s32 1, %s21
      %p27 = scmp.ge.s32.totalorder %s26, 1
      %s28 = scalar_select %p27, 0, %s26
      %s29 = sadd.s32 1, %s20
      %s30 = scalar_select %p27, %s29, %s20
      %p31 = scmp.ge.s32.totalorder %s30, 3
      %s32 = scalar_select %p31, 0, %s30
      %s33 = ssub.s32 %s21, %s28
      %p34 = scmp.eq.s32.totalorder %s33, 0
      %s36 = sadd.s32 %s35, 1
      %s37 = scalar_select %p34, %s35, %s36
      %p40 = pneg %p34
      %p41 = scmp.eq.s32.totalorder %s13, 2
      %p42 = por %p40, %p41
      %p43 = scmp.ne.s32.totalorder %s35, %s38
      %p44 = scmp.eq.s32.totalorder %s13, 0
      %p45 = por %p43, %p44
      %p46 = scmp.ne.s32.totalorder %s35, %s38
      %p47 = scmp.eq.s32.totalorder %s18, 2
      %p48 = por %p46, %p47
      %p49 = scmp.ne.s32.totalorder %s38, %s39
      %p50 = scmp.eq.s32.totalorder %s18, 0
      %p51 = por %p49, %p50
      %p52 = scmp.ne.s32.totalorder %s38, %s39
      %p53 = scmp.eq.s32.totalorder %s19, 2
      %p54 = por %p52, %p53
      %p56 = scmp.ne.s32.totalorder %s39, %s55
      %p57 = scmp.eq.s32.totalorder %s19, 0
      %p58 = por %p56, %p57
      %s59 = ssub.s32 %s21, %s28
      %p60 = scmp.eq.s32.totalorder %s59, 0
      %s62 = sadd.s32 %s61, 1
      %s63 = scalar_select %p60, %s61, %s62
      %p66 = pneg %p60
      %p67 = scmp.eq.s32.totalorder %s13, 2
      %p68 = por %p66, %p67
      %p69 = scmp.ne.s32.totalorder %s61, %s64
      %p70 = scmp.eq.s32.totalorder %s13, 0
      %p71 = por %p69, %p70
      %p72 = scmp.ne.s32.totalorder %s61, %s64
      %p73 = scmp.eq.s32.totalorder %s18, 2
      %p74 = por %p72, %p73
      %p75 = scmp.ne.s32.totalorder %s64, %s65
      %p76 = scmp.eq.s32.totalorder %s18, 0
      %p77 = por %p75, %p76
      %p78 = scmp.ne.s32.totalorder %s64, %s65
      %p79 = scmp.eq.s32.totalorder %s19, 2
      %p80 = por %p78, %p79
      %p82 = scmp.ne.s32.totalorder %s65, %s81
      %p83 = scmp.eq.s32.totalorder %s19, 0
      %p84 = por %p82, %p83
      %s85 = ssub.s32 %s20, %s32
      %p86 = scmp.eq.s32.totalorder %s85, 0
      %s88 = sadd.s32 %s87, 1
      %s89 = scalar_select %p86, %s87, %s88
      %p92 = pneg %p86
      %p93 = scmp.eq.s32.totalorder %s13, 2
      %p94 = por %p92, %p93
      %p95 = scmp.ne.s32.totalorder %s87, %s90
      %p96 = scmp.eq.s32.totalorder %s13, 0
      %p97 = por %p95, %p96
      %p98 = scmp.ne.s32.totalorder %s87, %s90
      %p99 = scmp.eq.s32.totalorder %s18, 2
      %p100 = por %p98, %p99
      %p101 = scmp.ne.s32.totalorder %s90, %s91
      %p102 = scmp.eq.s32.totalorder %s18, 0
      %p103 = por %p101, %p102
      %p104 = scmp.ne.s32.totalorder %s90, %s91
      %p105 = scmp.eq.s32.totalorder %s19, 2
      %p106 = por %p104, %p105
      %p108 = scmp.ne.s32.totalorder %s91, %s107
      %p109 = scmp.eq.s32.totalorder %s19, 0
      %p110 = por %p108, %p109
      %p111 = scmp.le.s32.totalorder 1, %s13
      %p112 = scmp.lt.s32.totalorder %s13, 4
      %p113 = pnand %p111, %p112
      %p114 = pneg %p113
      // Predicated region
      $region9: #{tpu_custom_call.1} parent=5 // pred_check
        _
      $region10: #{tpu_custom_call.1} parent=5 // pred_check_branch
        %116 = sbr.rel (%p113) target = $region12
      $region11: #{tpu_custom_call.1} parent=5 // pred_region
        %s117 = ssub.s32 %s13, 1
        // Predicated region
        $region13: #{tpu_custom_call.1} parent=11 // pred_check
          %p118 = pneg %p51
        $region14: #{tpu_custom_call.1} parent=11 // pred_check_branch
          %120 = sbr.rel (%p118) target = $region16
        $region15: #{tpu_custom_call.1} parent=11 // pred_region
          %s121 = smul.u32 2, %s23
          %s123 = ssub.s32 32, 32
          %124 = vsyncadd [#allocation4], %s123
          %s125 = smul.addr %s121, 16
          %s126 = scalar_lea.hbm %s0, %s125
          %s128 = sshll.u32 [#allocation3], 4
          %s129 = int_to_ptr.vmem [resolvable:$true] %s128
          %131 = dma.hbm_to_vmem [thread:$0]  %s126, 32, %s129, [#allocation4]
        $region16: #{tpu_custom_call.1} parent=11 // pred_fallthru
          _
        // Predicated region
        $region17: #{tpu_custom_call.1} parent=11 // pred_check
          %p132 = pneg %p77
        $region18: #{tpu_custom_call.1} parent=11 // pred_check_branch
          %134 = sbr.rel (%p132) target = $region20
        $region19: #{tpu_custom_call.1} parent=11 // pred_region
          %s135 = smul.u32 2, %s23
          %s137 = ssub.s32 256, 256
          %138 = vsyncadd [#allocation7], %s137
          %s139 = smul.addr %s135, 128
          %s140 = scalar_lea.hbm %s1, %s139
          %s142 = sshll.u32 [#allocation6], 4
          %s143 = int_to_ptr.vmem [resolvable:$true] %s142
          %145 = dma.hbm_to_vmem [thread:$0]  %s140, 256, %s143, [#allocation7]
        $region20: #{tpu_custom_call.1} parent=11 // pred_fallthru
          _
      $region12: #{tpu_custom_call.1} parent=5 // pred_fallthru
        _
      %p146 = scmp.lt.s32.totalorder %s13, 3
      // Predicated region
      $region21: #{tpu_custom_call.1} parent=5 // pred_check
        %p147 = pneg %p146
      $region22: #{tpu_custom_call.1} parent=5 // pred_check_branch
        %149 = sbr.rel (%p147) target = $region24
      $region23: #{tpu_custom_call.1} parent=5 // pred_region
        _
      $region24: #{tpu_custom_call.1} parent=5 // pred_fallthru
        _
      %p150 = scmp.le.s32.totalorder 1, %s13
      %p151 = scmp.lt.s32.totalorder %s13, 4
      %p152 = pnand %p150, %p151
      %p153 = pneg %p152
      // Predicated region
      $region25: #{tpu_custom_call.1} parent=5 // pred_check
        _
      $region26: #{tpu_custom_call.1} parent=5 // pred_check_branch
        %155 = sbr.rel (%p152) target = $region28
      $region27: #{tpu_custom_call.1} parent=5 // pred_region
        %s156 = ssub.s32 %s13, 1
        // Predicated region
        $region29: #{tpu_custom_call.1} parent=27 // pred_check
          %p157 = pneg %p51
        $region30: #{tpu_custom_call.1} parent=27 // pred_check_branch
          %159 = sbr.rel (%p157) target = $region32
        $region31: #{tpu_custom_call.1} parent=27 // pred_region
          %160 = dma.done [#allocation4], 32
        $region32: #{tpu_custom_call.1} parent=27 // pred_fallthru
          _
        // Predicated region
        $region33: #{tpu_custom_call.1} parent=27 // pred_check
          %p161 = pneg %p77
        $region34: #{tpu_custom_call.1} parent=27 // pred_check_branch
          %163 = sbr.rel (%p161) target = $region36
        $region35: #{tpu_custom_call.1} parent=27 // pred_region
          %164 = dma.done [#allocation7], 256
        $region36: #{tpu_custom_call.1} parent=27 // pred_fallthru
          _
        %p165 = pneg %p51
        %p166 = pneg %p48
        %p167 = pneg %p77
        %p168 = pneg %p74
        %p169 = pneg %p103
        %p170 = pneg %p100
        %s171 = sand.u32 %s90, 1
        %s172 = scalar_lea.sflag [#allocation5], %s171
        %s173 = sand.u32 %s90, 1
        %s174 = smul.addr %s173, 128
        %s175 = scalar_lea.vmem [#allocation8], %s174
        %s176 = smul.u32 2, %s23
        %s177 = smul.u32 2, %s23
        %s178 = smul.u32 16, %s22
        %p179 = scmp.eq.s32.totalorder %s23, 0
        // Predicated region
        $region37: #{tpu_custom_call.1} parent=27 // pred_check
          %p180 = pneg %p179
        $region38: #{tpu_custom_call.1} parent=27 // pred_check_branch
          %182 = sbr.rel (%p180) target = $region40
        $region39: #{tpu_custom_call.1} parent=27 // pred_region
          %183 = vst [vmem:[#allocation2] sm:$0xff] 0.0
          %184 = vst [vmem:[#allocation2 + $0x8] sm:$0xff] 0.0
          %185 = vst [vmem:[#allocation2 + $0x10] sm:$0xff] 0.0
          %186 = vst [vmem:[#allocation2 + $0x18] sm:$0xff] 0.0
          %187 = vst [vmem:[#allocation2 + $0x20] sm:$0xff] 0.0
          %188 = vst [vmem:[#allocation2 + $0x28] sm:$0xff] 0.0
          %189 = vst [vmem:[#allocation2 + $0x30] sm:$0xff] 0.0
          %190 = vst [vmem:[#allocation2 + $0x38] sm:$0xff] 0.0
          %191 = vst [vmem:[#allocation2 + $0x40] sm:$0xff] 0.0
          %192 = vst [vmem:[#allocation2 + $0x48] sm:$0xff] 0.0
          %193 = vst [vmem:[#allocation2 + $0x50] sm:$0xff] 0.0
          %194 = vst [vmem:[#allocation2 + $0x58] sm:$0xff] 0.0
          %195 = vst [vmem:[#allocation2 + $0x60] sm:$0xff] 0.0
          %196 = vst [vmem:[#allocation2 + $0x68] sm:$0xff] 0.0
          %197 = vst [vmem:[#allocation2 + $0x70] sm:$0xff] 0.0
          %198 = vst [vmem:[#allocation2 + $0x78] sm:$0xff] 0.0
        $region40: #{tpu_custom_call.1} parent=27 // pred_fallthru
          _
        %v199 = vld [vmem:[#allocation3] sm:$0x3]
        %v200 = vlaneseq
        %v201 = vshrl.u32 %v200, 7
        %v202 = vadd.s32 %v201, 8
        %v203 = vadd.s32 %v201, 16
        %v204 = vadd.s32 %v201, 24
        %v205 = vadd.s32 %v201, 32
        %v206 = vadd.s32 %v201, 40
        %v207 = vadd.s32 %v201, 48
        %v208 = vadd.s32 %v201, 56
        %v209 = vadd.s32 %v201, 64
        %v210 = vadd.s32 %v201, 72
        %v211 = vadd.s32 %v201, 80
        %v212 = vadd.s32 %v201, 88
        %v213 = vadd.s32 %v201, 96
        %v214 = vadd.s32 %v201, 104
        %v215 = vadd.s32 %v201, 112
        %v216 = vadd.s32 %v201, 120
        %v217 = vadd.s32 %v201, 128
        %v218 = vadd.s32 %v201, 136
        %v219 = vadd.s32 %v201, 144
        %v220 = vadd.s32 %v201, 152
        %v221 = vadd.s32 %v201, 160
        %v222 = vadd.s32 %v201, 168
        %v223 = vadd.s32 %v201, 176
        %v224 = vadd.s32 %v201, 184
        %v225 = vadd.s32 %v201, 192
        %v226 = vadd.s32 %v201, 200
        %v227 = vadd.s32 %v201, 208
        %v228 = vadd.s32 %v201, 216
        %v229 = vadd.s32 %v201, 224
        %v230 = vadd.s32 %v201, 232
        %v231 = vadd.s32 %v201, 240
        %v232 = vadd.s32 %v201, 248
        %v233 = vadd.s32 %v201, 256
        %v234 = vadd.s32 %v201, 264
        %v235 = vadd.s32 %v201, 272
        %v236 = vadd.s32 %v201, 280
        %v237 = vadd.s32 %v201, 288
        %v238 = vadd.s32 %v201, 296
        %v239 = vadd.s32 %v201, 304
        %v240 = vadd.s32 %v201, 312
        %v241 = vadd.s32 %v201, 320
        %v242 = vadd.s32 %v201, 328
        %v243 = vadd.s32 %v201, 336
        %v244 = vadd.s32 %v201, 344
        %v245 = vadd.s32 %v201, 352
        %v246 = vadd.s32 %v201, 360
        %v247 = vadd.s32 %v201, 368
        %v248 = vadd.s32 %v201, 376
        %v249 = vadd.s32 %v201, 384
        %v250 = vadd.s32 %v201, 392
        %v251 = vadd.s32 %v201, 400
        %v252 = vadd.s32 %v201, 408
        %v253 = vadd.s32 %v201, 416
        %v254 = vadd.s32 %v201, 424
        %v255 = vadd.s32 %v201, 432
        %v256 = vadd.s32 %v201, 440
        %v257 = vadd.s32 %v201, 448
        %v258 = vadd.s32 %v201, 456
        %v259 = vadd.s32 %v201, 464
        %v260 = vadd.s32 %v201, 472
        %v261 = vadd.s32 %v201, 480
        %v262 = vadd.s32 %v201, 488
        %v263 = vadd.s32 %v201, 496
        %v264 = vadd.s32 %v201, 504
        %v265 = vadd.s32 %v201, 512
        %v266 = vadd.s32 %v201, 520
        %v267 = vadd.s32 %v201, 528
        %v268 = vadd.s32 %v201, 536
        %v269 = vadd.s32 %v201, 544
        %v270 = vadd.s32 %v201, 552
        %v271 = vadd.s32 %v201, 560
        %v272 = vadd.s32 %v201, 568
        %v273 = vadd.s32 %v201, 576
        %v274 = vadd.s32 %v201, 584
        %v275 = vadd.s32 %v201, 592
        %v276 = vadd.s32 %v201, 600
        %v277 = vadd.s32 %v201, 608
        %v278 = vadd.s32 %v201, 616
        %v279 = vadd.s32 %v201, 624
        %v280 = vadd.s32 %v201, 632
        %v281 = vadd.s32 %v201, 640
        %v282 = vadd.s32 %v201, 648
        %v283 = vadd.s32 %v201, 656
        %v284 = vadd.s32 %v201, 664
        %v285 = vadd.s32 %v201, 672
        %v286 = vadd.s32 %v201, 680
        %v287 = vadd.s32 %v201, 688
        %v288 = vadd.s32 %v201, 696
        %v289 = vadd.s32 %v201, 704
        %v290 = vadd.s32 %v201, 712
        %v291 = vadd.s32 %v201, 720
        %v292 = vadd.s32 %v201, 728
        %v293 = vadd.s32 %v201, 736
        %v294 = vadd.s32 %v201, 744
        %v295 = vadd.s32 %v201, 752
        %v296 = vadd.s32 %v201, 760
        %v297 = vadd.s32 %v201, 768
        %v298 = vadd.s32 %v201, 776
        %v299 = vadd.s32 %v201, 784
        %v300 = vadd.s32 %v201, 792
        %v301 = vadd.s32 %v201, 800
        %v302 = vadd.s32 %v201, 808
        %v303 = vadd.s32 %v201, 816
        %v304 = vadd.s32 %v201, 824
        %v305 = vadd.s32 %v201, 832
        %v306 = vadd.s32 %v201, 840
        %v307 = vadd.s32 %v201, 848
        %v308 = vadd.s32 %v201, 856
        %v309 = vadd.s32 %v201, 864
        %v310 = vadd.s32 %v201, 872
        %v311 = vadd.s32 %v201, 880
        %v312 = vadd.s32 %v201, 888
        %v313 = vadd.s32 %v201, 896
        %v314 = vadd.s32 %v201, 904
        %v315 = vadd.s32 %v201, 912
        %v316 = vadd.s32 %v201, 920
        %v317 = vadd.s32 %v201, 928
        %v318 = vadd.s32 %v201, 936
        %v319 = vadd.s32 %v201, 944
        %v320 = vadd.s32 %v201, 952
        %v321 = vadd.s32 %v201, 960
        %v322 = vadd.s32 %v201, 968
        %v323 = vadd.s32 %v201, 976
        %v324 = vadd.s32 %v201, 984
        %v325 = vadd.s32 %v201, 992
        %v326 = vadd.s32 %v201, 1000
        %v327 = vadd.s32 %v201, 1008
        %v328 = vadd.s32 %v201, 1016
        %v329 = vadd.s32 %v201, 1024
        %v330 = vadd.s32 %v201, 1032
        %v331 = vadd.s32 %v201, 1040
        %v332 = vadd.s32 %v201, 1048
        %v333 = vadd.s32 %v201, 1056
        %v334 = vadd.s32 %v201, 1064
        %v335 = vadd.s32 %v201, 1072
        %v336 = vadd.s32 %v201, 1080
        %v337 = vadd.s32 %v201, 1088
        %v338 = vadd.s32 %v201, 1096
        %v339 = vadd.s32 %v201, 1104
        %v340 = vadd.s32 %v201, 1112
        %v341 = vadd.s32 %v201, 1120
        %v342 = vadd.s32 %v201, 1128
        %v343 = vadd.s32 %v201, 1136
        %v344 = vadd.s32 %v201, 1144
        %v345 = vadd.s32 %v201, 1152
        %v346 = vadd.s32 %v201, 1160
        %v347 = vadd.s32 %v201, 1168
        %v348 = vadd.s32 %v201, 1176
        %v349 = vadd.s32 %v201, 1184
        %v350 = vadd.s32 %v201, 1192
        %v351 = vadd.s32 %v201, 1200
        %v352 = vadd.s32 %v201, 1208
        %v353 = vadd.s32 %v201, 1216
        %v354 = vadd.s32 %v201, 1224
        %v355 = vadd.s32 %v201, 1232
        %v356 = vadd.s32 %v201, 1240
        %v357 = vadd.s32 %v201, 1248
        %v358 = vadd.s32 %v201, 1256
        %v359 = vadd.s32 %v201, 1264
        %v360 = vadd.s32 %v201, 1272
        %v361 = vadd.s32 %v201, 1280
        %v362 = vadd.s32 %v201, 1288
        %v363 = vadd.s32 %v201, 1296
        %v364 = vadd.s32 %v201, 1304
        %v365 = vadd.s32 %v201, 1312
        %v366 = vadd.s32 %v201, 1320
        %v367 = vadd.s32 %v201, 1328
        %v368 = vadd.s32 %v201, 1336
        %v369 = vadd.s32 %v201, 1344
        %v370 = vadd.s32 %v201, 1352
        %v371 = vadd.s32 %v201, 1360
        %v372 = vadd.s32 %v201, 1368
        %v373 = vadd.s32 %v201, 1376
        %v374 = vadd.s32 %v201, 1384
        %v375 = vadd.s32 %v201, 1392
        %v376 = vadd.s32 %v201, 1400
        %v377 = vadd.s32 %v201, 1408
        %v378 = vadd.s32 %v201, 1416
        %v379 = vadd.s32 %v201, 1424
        %v380 = vadd.s32 %v201, 1432
        %v381 = vadd.s32 %v201, 1440
        %v382 = vadd.s32 %v201, 1448
        %v383 = vadd.s32 %v201, 1456
        %v384 = vadd.s32 %v201, 1464
        %v385 = vadd.s32 %v201, 1472
        %v386 = vadd.s32 %v201, 1480
        %v387 = vadd.s32 %v201, 1488
        %v388 = vadd.s32 %v201, 1496
        %v389 = vadd.s32 %v201, 1504
        %v390 = vadd.s32 %v201, 1512
        %v391 = vadd.s32 %v201, 1520
        %v392 = vadd.s32 %v201, 1528
        %v393 = vadd.s32 %v201, 1536
        %v394 = vadd.s32 %v201, 1544
        %v395 = vadd.s32 %v201, 1552
        %v396 = vadd.s32 %v201, 1560
        %v397 = vadd.s32 %v201, 1568
        %v398 = vadd.s32 %v201, 1576
        %v399 = vadd.s32 %v201, 1584
        %v400 = vadd.s32 %v201, 1592
        %v401 = vadd.s32 %v201, 1600
        %v402 = vadd.s32 %v201, 1608
        %v403 = vadd.s32 %v201, 1616
        %v404 = vadd.s32 %v201, 1624
        %v405 = vadd.s32 %v201, 1632
        %v406 = vadd.s32 %v201, 1640
        %v407 = vadd.s32 %v201, 1648
        %v408 = vadd.s32 %v201, 1656
        %v409 = vadd.s32 %v201, 1664
        %v410 = vadd.s32 %v201, 1672
        %v411 = vadd.s32 %v201, 1680
        %v412 = vadd.s32 %v201, 1688
        %v413 = vadd.s32 %v201, 1696
        %v414 = vadd.s32 %v201, 1704
        %v415 = vadd.s32 %v201, 1712
        %v416 = vadd.s32 %v201, 1720
        %v417 = vadd.s32 %v201, 1728
        %v418 = vadd.s32 %v201, 1736
        %v419 = vadd.s32 %v201, 1744
        %v420 = vadd.s32 %v201, 1752
        %v421 = vadd.s32 %v201, 1760
        %v422 = vadd.s32 %v201, 1768
        %v423 = vadd.s32 %v201, 1776
        %v424 = vadd.s32 %v201, 1784
        %v425 = vadd.s32 %v201, 1792
        %v426 = vadd.s32 %v201, 1800
        %v427 = vadd.s32 %v201, 1808
        %v428 = vadd.s32 %v201, 1816
        %v429 = vadd.s32 %v201, 1824
        %v430 = vadd.s32 %v201, 1832
        %v431 = vadd.s32 %v201, 1840
        %v432 = vadd.s32 %v201, 1848
        %v433 = vadd.s32 %v201, 1856
        %v434 = vadd.s32 %v201, 1864
        %v435 = vadd.s32 %v201, 1872
        %v436 = vadd.s32 %v201, 1880
        %v437 = vadd.s32 %v201, 1888
        %v438 = vadd.s32 %v201, 1896
        %v439 = vadd.s32 %v201, 1904
        %v440 = vadd.s32 %v201, 1912
        %v441 = vadd.s32 %v201, 1920
        %v442 = vadd.s32 %v201, 1928
        %v443 = vadd.s32 %v201, 1936
        %v444 = vadd.s32 %v201, 1944
        %v445 = vadd.s32 %v201, 1952
        %v446 = vadd.s32 %v201, 1960
        %v447 = vadd.s32 %v201, 1968
        %v448 = vadd.s32 %v201, 1976
        %v449 = vadd.s32 %v201, 1984
        %v450 = vadd.s32 %v201, 1992
        %v451 = vadd.s32 %v201, 2000
        %v452 = vadd.s32 %v201, 2008
        %v453 = vadd.s32 %v201, 2016
        %v454 = vadd.s32 %v201, 2024
        %v455 = vadd.s32 %v201, 2032
        %v456 = vadd.s32 %v201, 2040
        %s457 = smul.u32 %s22, 2048
        %v458 = vstv %s457
        %v459 = vadd.s32 %v201, %v458
        %v460 = vadd.s32 %v202, %v458
        %v461 = vadd.s32 %v203, %v458
        %v462 = vadd.s32 %v204, %v458
        %v463 = vadd.s32 %v205, %v458
        %v464 = vadd.s32 %v206, %v458
        %v465 = vadd.s32 %v207, %v458
        %v466 = vadd.s32 %v208, %v458
        %v467 = vadd.s32 %v209, %v458
        %v468 = vadd.s32 %v210, %v458
        %v469 = vadd.s32 %v211, %v458
        %v470 = vadd.s32 %v212, %v458
        %v471 = vadd.s32 %v213, %v458
        %v472 = vadd.s32 %v214, %v458
        %v473 = vadd.s32 %v215, %v458
        %v474 = vadd.s32 %v216, %v458
        %v475 = vadd.s32 %v217, %v458
        %v476 = vadd.s32 %v218, %v458
        %v477 = vadd.s32 %v219, %v458
        %v478 = vadd.s32 %v220, %v458
        %v479 = vadd.s32 %v221, %v458
        %v480 = vadd.s32 %v222, %v458
        %v481 = vadd.s32 %v223, %v458
        %v482 = vadd.s32 %v224, %v458
        %v483 = vadd.s32 %v225, %v458
        %v484 = vadd.s32 %v226, %v458
        %v485 = vadd.s32 %v227, %v458
        %v486 = vadd.s32 %v228, %v458
        %v487 = vadd.s32 %v229, %v458
        %v488 = vadd.s32 %v230, %v458
        %v489 = vadd.s32 %v231, %v458
        %v490 = vadd.s32 %v232, %v458
        %v491 = vadd.s32 %v233, %v458
        %v492 = vadd.s32 %v234, %v458
        %v493 = vadd.s32 %v235, %v458
        %v494 = vadd.s32 %v236, %v458
        %v495 = vadd.s32 %v237, %v458
        %v496 = vadd.s32 %v238, %v458
        %v497 = vadd.s32 %v239, %v458
        %v498 = vadd.s32 %v240, %v458
        %v499 = vadd.s32 %v241, %v458
        %v500 = vadd.s32 %v242, %v458
        %v501 = vadd.s32 %v243, %v458
        %v502 = vadd.s32 %v244, %v458
        %v503 = vadd.s32 %v245, %v458
        %v504 = vadd.s32 %v246, %v458
        %v505 = vadd.s32 %v247, %v458
        %v506 = vadd.s32 %v248, %v458
        %v507 = vadd.s32 %v249, %v458
        %v508 = vadd.s32 %v250, %v458
        %v509 = vadd.s32 %v251, %v458
        %v510 = vadd.s32 %v252, %v458
        %v511 = vadd.s32 %v253, %v458
        %v512 = vadd.s32 %v254, %v458
        %v513 = vadd.s32 %v255, %v458
        %v514 = vadd.s32 %v256, %v458
        %v515 = vadd.s32 %v257, %v458
        %v516 = vadd.s32 %v258, %v458
        %v517 = vadd.s32 %v259, %v458
        %v518 = vadd.s32 %v260, %v458
        %v519 = vadd.s32 %v261, %v458
        %v520 = vadd.s32 %v262, %v458
        %v521 = vadd.s32 %v263, %v458
        %v522 = vadd.s32 %v264, %v458
        %v523 = vadd.s32 %v265, %v458
        %v524 = vadd.s32 %v266, %v458
        %v525 = vadd.s32 %v267, %v458
        %v526 = vadd.s32 %v268, %v458
        %v527 = vadd.s32 %v269, %v458
        %v528 = vadd.s32 %v270, %v458
        %v529 = vadd.s32 %v271, %v458
        %v530 = vadd.s32 %v272, %v458
        %v531 = vadd.s32 %v273, %v458
        %v532 = vadd.s32 %v274, %v458
        %v533 = vadd.s32 %v275, %v458
        %v534 = vadd.s32 %v276, %v458
        %v535 = vadd.s32 %v277, %v458
        %v536 = vadd.s32 %v278, %v458
        %v537 = vadd.s32 %v279, %v458
        %v538 = vadd.s32 %v280, %v458
        %v539 = vadd.s32 %v281, %v458
        %v540 = vadd.s32 %v282, %v458
        %v541 = vadd.s32 %v283, %v458
        %v542 = vadd.s32 %v284, %v458
        %v543 = vadd.s32 %v285, %v458
        %v544 = vadd.s32 %v286, %v458
        %v545 = vadd.s32 %v287, %v458
        %v546 = vadd.s32 %v288, %v458
        %v547 = vadd.s32 %v289, %v458
        %v548 = vadd.s32 %v290, %v458
        %v549 = vadd.s32 %v291, %v458
        %v550 = vadd.s32 %v292, %v458
        %v551 = vadd.s32 %v293, %v458
        %v552 = vadd.s32 %v294, %v458
        %v553 = vadd.s32 %v295, %v458
        %v554 = vadd.s32 %v296, %v458
        %v555 = vadd.s32 %v297, %v458
        %v556 = vadd.s32 %v298, %v458
        %v557 = vadd.s32 %v299, %v458
        %v558 = vadd.s32 %v300, %v458
        %v559 = vadd.s32 %v301, %v458
        %v560 = vadd.s32 %v302, %v458
        %v561 = vadd.s32 %v303, %v458
        %v562 = vadd.s32 %v304, %v458
        %v563 = vadd.s32 %v305, %v458
        %v564 = vadd.s32 %v306, %v458
        %v565 = vadd.s32 %v307, %v458
        %v566 = vadd.s32 %v308, %v458
        %v567 = vadd.s32 %v309, %v458
        %v568 = vadd.s32 %v310, %v458
        %v569 = vadd.s32 %v311, %v458
        %v570 = vadd.s32 %v312, %v458
        %v571 = vadd.s32 %v313, %v458
        %v572 = vadd.s32 %v314, %v458
        %v573 = vadd.s32 %v315, %v458
        %v574 = vadd.s32 %v316, %v458
        %v575 = vadd.s32 %v317, %v458
        %v576 = vadd.s32 %v318, %v458
        %v577 = vadd.s32 %v319, %v458
        %v578 = vadd.s32 %v320, %v458
        %v579 = vadd.s32 %v321, %v458
        %v580 = vadd.s32 %v322, %v458
        %v581 = vadd.s32 %v323, %v458
        %v582 = vadd.s32 %v324, %v458
        %v583 = vadd.s32 %v325, %v458
        %v584 = vadd.s32 %v326, %v458
        %v585 = vadd.s32 %v327, %v458
        %v586 = vadd.s32 %v328, %v458
        %v587 = vadd.s32 %v329, %v458
        %v588 = vadd.s32 %v330, %v458
        %v589 = vadd.s32 %v331, %v458
        %v590 = vadd.s32 %v332, %v458
        %v591 = vadd.s32 %v333, %v458
        %v592 = vadd.s32 %v334, %v458
        %v593 = vadd.s32 %v335, %v458
        %v594 = vadd.s32 %v336, %v458
        %v595 = vadd.s32 %v337, %v458
        %v596 = vadd.s32 %v338, %v458
        %v597 = vadd.s32 %v339, %v458
        %v598 = vadd.s32 %v340, %v458
        %v599 = vadd.s32 %v341, %v458
        %v600 = vadd.s32 %v342, %v458
        %v601 = vadd.s32 %v343, %v458
        %v602 = vadd.s32 %v344, %v458
        %v603 = vadd.s32 %v345, %v458
        %v604 = vadd.s32 %v346, %v458
        %v605 = vadd.s32 %v347, %v458
        %v606 = vadd.s32 %v348, %v458
        %v607 = vadd.s32 %v349, %v458
        %v608 = vadd.s32 %v350, %v458
        %v609 = vadd.s32 %v351, %v458
        %v610 = vadd.s32 %v352, %v458
        %v611 = vadd.s32 %v353, %v458
        %v612 = vadd.s32 %v354, %v458
        %v613 = vadd.s32 %v355, %v458
        %v614 = vadd.s32 %v356, %v458
        %v615 = vadd.s32 %v357, %v458
        %v616 = vadd.s32 %v358, %v458
        %v617 = vadd.s32 %v359, %v458
        %v618 = vadd.s32 %v360, %v458
        %v619 = vadd.s32 %v361, %v458
        %v620 = vadd.s32 %v362, %v458
        %v621 = vadd.s32 %v363, %v458
        %v622 = vadd.s32 %v364, %v458
        %v623 = vadd.s32 %v365, %v458
        %v624 = vadd.s32 %v366, %v458
        %v625 = vadd.s32 %v367, %v458
        %v626 = vadd.s32 %v368, %v458
        %v627 = vadd.s32 %v369, %v458
        %v628 = vadd.s32 %v370, %v458
        %v629 = vadd.s32 %v371, %v458
        %v630 = vadd.s32 %v372, %v458
        %v631 = vadd.s32 %v373, %v458
        %v632 = vadd.s32 %v374, %v458
        %v633 = vadd.s32 %v375, %v458
        %v634 = vadd.s32 %v376, %v458
        %v635 = vadd.s32 %v377, %v458
        %v636 = vadd.s32 %v378, %v458
        %v637 = vadd.s32 %v379, %v458
        %v638 = vadd.s32 %v380, %v458
        %v639 = vadd.s32 %v381, %v458
        %v640 = vadd.s32 %v382, %v458
        %v641 = vadd.s32 %v383, %v458
        %v642 = vadd.s32 %v384, %v458
        %v643 = vadd.s32 %v385, %v458
        %v644 = vadd.s32 %v386, %v458
        %v645 = vadd.s32 %v387, %v458
        %v646 = vadd.s32 %v388, %v458
        %v647 = vadd.s32 %v389, %v458
        %v648 = vadd.s32 %v390, %v458
        %v649 = vadd.s32 %v391, %v458
        %v650 = vadd.s32 %v392, %v458
        %v651 = vadd.s32 %v393, %v458
        %v652 = vadd.s32 %v394, %v458
        %v653 = vadd.s32 %v395, %v458
        %v654 = vadd.s32 %v396, %v458
        %v655 = vadd.s32 %v397, %v458
        %v656 = vadd.s32 %v398, %v458
        %v657 = vadd.s32 %v399, %v458
        %v658 = vadd.s32 %v400, %v458
        %v659 = vadd.s32 %v401, %v458
        %v660 = vadd.s32 %v402, %v458
        %v661 = vadd.s32 %v403, %v458
        %v662 = vadd.s32 %v404, %v458
        %v663 = vadd.s32 %v405, %v458
        %v664 = vadd.s32 %v406, %v458
        %v665 = vadd.s32 %v407, %v458
        %v666 = vadd.s32 %v408, %v458
        %v667 = vadd.s32 %v409, %v458
        %v668 = vadd.s32 %v410, %v458
        %v669 = vadd.s32 %v411, %v458
        %v670 = vadd.s32 %v412, %v458
        %v671 = vadd.s32 %v413, %v458
        %v672 = vadd.s32 %v414, %v458
        %v673 = vadd.s32 %v415, %v458
        %v674 = vadd.s32 %v416, %v458
        %v675 = vadd.s32 %v417, %v458
        %v676 = vadd.s32 %v418, %v458
        %v677 = vadd.s32 %v419, %v458
        %v678 = vadd.s32 %v420, %v458
        %v679 = vadd.s32 %v421, %v458
        %v680 = vadd.s32 %v422, %v458
        %v681 = vadd.s32 %v423, %v458
        %v682 = vadd.s32 %v424, %v458
        %v683 = vadd.s32 %v425, %v458
        %v684 = vadd.s32 %v426, %v458
        %v685 = vadd.s32 %v427, %v458
        %v686 = vadd.s32 %v428, %v458
        %v687 = vadd.s32 %v429, %v458
        %v688 = vadd.s32 %v430, %v458
        %v689 = vadd.s32 %v431, %v458
        %v690 = vadd.s32 %v432, %v458
        %v691 = vadd.s32 %v433, %v458
        %v692 = vadd.s32 %v434, %v458
        %v693 = vadd.s32 %v435, %v458
        %v694 = vadd.s32 %v436, %v458
        %v695 = vadd.s32 %v437, %v458
        %v696 = vadd.s32 %v438, %v458
        %v697 = vadd.s32 %v439, %v458
        %v698 = vadd.s32 %v440, %v458
        %v699 = vadd.s32 %v441, %v458
        %v700 = vadd.s32 %v442, %v458
        %v701 = vadd.s32 %v443, %v458
        %v702 = vadd.s32 %v444, %v458
        %v703 = vadd.s32 %v445, %v458
        %v704 = vadd.s32 %v446, %v458
        %v705 = vadd.s32 %v447, %v458
        %v706 = vadd.s32 %v448, %v458
        %v707 = vadd.s32 %v449, %v458
        %v708 = vadd.s32 %v450, %v458
        %v709 = vadd.s32 %v451, %v458
        %v710 = vadd.s32 %v452, %v458
        %v711 = vadd.s32 %v453, %v458
        %v712 = vadd.s32 %v454, %v458
        %v713 = vadd.s32 %v455, %v458
        %v714 = vadd.s32 %v456, %v458
        %v715 = vlaneseq
        %v716 = vshrl.u32 %v715, 7
        %v717 = vsub.s32 0, %v716
        %v718 = vrot.slane %v199, %v717
        %v719 = vlaneseq
        %v720 = vshrl.u32 %v719, 7
        %v721 = vsub.s32 1, %v720
        %v722 = vrot.slane %v199, %v721
        %vm723 = vcmp.eq.s32.totalorder %v718, %v459
        %vm724 = vcmp.eq.s32.totalorder %v722, %v459
        %vm725 = vcmp.eq.s32.totalorder %v718, %v460
        %vm726 = vcmp.eq.s32.totalorder %v722, %v460
        %vm727 = vcmp.eq.s32.totalorder %v718, %v461
        %vm728 = vcmp.eq.s32.totalorder %v722, %v461
        %vm729 = vcmp.eq.s32.totalorder %v718, %v462
        %vm730 = vcmp.eq.s32.totalorder %v722, %v462
        %vm731 = vcmp.eq.s32.totalorder %v718, %v463
        %vm732 = vcmp.eq.s32.totalorder %v722, %v463
        %vm733 = vcmp.eq.s32.totalorder %v718, %v464
        %vm734 = vcmp.eq.s32.totalorder %v722, %v464
        %vm735 = vcmp.eq.s32.totalorder %v718, %v465
        %vm736 = vcmp.eq.s32.totalorder %v722, %v465
        %vm737 = vcmp.eq.s32.totalorder %v718, %v466
        %vm738 = vcmp.eq.s32.totalorder %v722, %v466
        %vm739 = vcmp.eq.s32.totalorder %v718, %v467
        %vm740 = vcmp.eq.s32.totalorder %v722, %v467
        %vm741 = vcmp.eq.s32.totalorder %v718, %v468
        %vm742 = vcmp.eq.s32.totalorder %v722, %v468
        %vm743 = vcmp.eq.s32.totalorder %v718, %v469
        %vm744 = vcmp.eq.s32.totalorder %v722, %v469
        %vm745 = vcmp.eq.s32.totalorder %v718, %v470
        %vm746 = vcmp.eq.s32.totalorder %v722, %v470
        %vm747 = vcmp.eq.s32.totalorder %v718, %v471
        %vm748 = vcmp.eq.s32.totalorder %v722, %v471
        %vm749 = vcmp.eq.s32.totalorder %v718, %v472
        %vm750 = vcmp.eq.s32.totalorder %v722, %v472
        %vm751 = vcmp.eq.s32.totalorder %v718, %v473
        %vm752 = vcmp.eq.s32.totalorder %v722, %v473
        %vm753 = vcmp.eq.s32.totalorder %v718, %v474
        %vm754 = vcmp.eq.s32.totalorder %v722, %v474
        %vm755 = vcmp.eq.s32.totalorder %v718, %v475
        %vm756 = vcmp.eq.s32.totalorder %v722, %v475
        %vm757 = vcmp.eq.s32.totalorder %v718, %v476
        %vm758 = vcmp.eq.s32.totalorder %v722, %v476
        %vm759 = vcmp.eq.s32.totalorder %v718, %v477
        %vm760 = vcmp.eq.s32.totalorder %v722, %v477
        %vm761 = vcmp.eq.s32.totalorder %v718, %v478
        %vm762 = vcmp.eq.s32.totalorder %v722, %v478
        %vm763 = vcmp.eq.s32.totalorder %v718, %v479
        %vm764 = vcmp.eq.s32.totalorder %v722, %v479
        %vm765 = vcmp.eq.s32.totalorder %v718, %v480
        %vm766 = vcmp.eq.s32.totalorder %v722, %v480
        %vm767 = vcmp.eq.s32.totalorder %v718, %v481
        %vm768 = vcmp.eq.s32.totalorder %v722, %v481
        %vm769 = vcmp.eq.s32.totalorder %v718, %v482
        %vm770 = vcmp.eq.s32.totalorder %v722, %v482
        %vm771 = vcmp.eq.s32.totalorder %v718, %v483
        %vm772 = vcmp.eq.s32.totalorder %v722, %v483
        %vm773 = vcmp.eq.s32.totalorder %v718, %v484
        %vm774 = vcmp.eq.s32.totalorder %v722, %v484
        %vm775 = vcmp.eq.s32.totalorder %v718, %v485
        %vm776 = vcmp.eq.s32.totalorder %v722, %v485
        %vm777 = vcmp.eq.s32.totalorder %v718, %v486
        %vm778 = vcmp.eq.s32.totalorder %v722, %v486
        %vm779 = vcmp.eq.s32.totalorder %v718, %v487
        %vm780 = vcmp.eq.s32.totalorder %v722, %v487
        %vm781 = vcmp.eq.s32.totalorder %v718, %v488
        %vm782 = vcmp.eq.s32.totalorder %v722, %v488
        %vm783 = vcmp.eq.s32.totalorder %v718, %v489
        %vm784 = vcmp.eq.s32.totalorder %v722, %v489
        %vm785 = vcmp.eq.s32.totalorder %v718, %v490
        %vm786 = vcmp.eq.s32.totalorder %v722, %v490
        %vm787 = vcmp.eq.s32.totalorder %v718, %v491
        %vm788 = vcmp.eq.s32.totalorder %v722, %v491
        %vm789 = vcmp.eq.s32.totalorder %v718, %v492
        %vm790 = vcmp.eq.s32.totalorder %v722, %v492
        %vm791 = vcmp.eq.s32.totalorder %v718, %v493
        %vm792 = vcmp.eq.s32.totalorder %v722, %v493
        %vm793 = vcmp.eq.s32.totalorder %v718, %v494
        %vm794 = vcmp.eq.s32.totalorder %v722, %v494
        %vm795 = vcmp.eq.s32.totalorder %v718, %v495
        %vm796 = vcmp.eq.s32.totalorder %v722, %v495
        %vm797 = vcmp.eq.s32.totalorder %v718, %v496
        %vm798 = vcmp.eq.s32.totalorder %v722, %v496
        %vm799 = vcmp.eq.s32.totalorder %v718, %v497
        %vm800 = vcmp.eq.s32.totalorder %v722, %v497
        %vm801 = vcmp.eq.s32.totalorder %v718, %v498
        %vm802 = vcmp.eq.s32.totalorder %v722, %v498
        %vm803 = vcmp.eq.s32.totalorder %v718, %v499
        %vm804 = vcmp.eq.s32.totalorder %v722, %v499
        %vm805 = vcmp.eq.s32.totalorder %v718, %v500
        %vm806 = vcmp.eq.s32.totalorder %v722, %v500
        %vm807 = vcmp.eq.s32.totalorder %v718, %v501
        %vm808 = vcmp.eq.s32.totalorder %v722, %v501
        %vm809 = vcmp.eq.s32.totalorder %v718, %v502
        %vm810 = vcmp.eq.s32.totalorder %v722, %v502
        %vm811 = vcmp.eq.s32.totalorder %v718, %v503
        %vm812 = vcmp.eq.s32.totalorder %v722, %v503
        %vm813 = vcmp.eq.s32.totalorder %v718, %v504
        %vm814 = vcmp.eq.s32.totalorder %v722, %v504
        %vm815 = vcmp.eq.s32.totalorder %v718, %v505
        %vm816 = vcmp.eq.s32.totalorder %v722, %v505
        %vm817 = vcmp.eq.s32.totalorder %v718, %v506
        %vm818 = vcmp.eq.s32.totalorder %v722, %v506
        %vm819 = vcmp.eq.s32.totalorder %v718, %v507
        %vm820 = vcmp.eq.s32.totalorder %v722, %v507
        %vm821 = vcmp.eq.s32.totalorder %v718, %v508
        %vm822 = vcmp.eq.s32.totalorder %v722, %v508
        %vm823 = vcmp.eq.s32.totalorder %v718, %v509
        %vm824 = vcmp.eq.s32.totalorder %v722, %v509
        %vm825 = vcmp.eq.s32.totalorder %v718, %v510
        %vm826 = vcmp.eq.s32.totalorder %v722, %v510
        %vm827 = vcmp.eq.s32.totalorder %v718, %v511
        %vm828 = vcmp.eq.s32.totalorder %v722, %v511
        %vm829 = vcmp.eq.s32.totalorder %v718, %v512
        %vm830 = vcmp.eq.s32.totalorder %v722, %v512
        %vm831 = vcmp.eq.s32.totalorder %v718, %v513
        %vm832 = vcmp.eq.s32.totalorder %v722, %v513
        %vm833 = vcmp.eq.s32.totalorder %v718, %v514
        %vm834 = vcmp.eq.s32.totalorder %v722, %v514
        %vm835 = vcmp.eq.s32.totalorder %v718, %v515
        %vm836 = vcmp.eq.s32.totalorder %v722, %v515
        %vm837 = vcmp.eq.s32.totalorder %v718, %v516
        %vm838 = vcmp.eq.s32.totalorder %v722, %v516
        %vm839 = vcmp.eq.s32.totalorder %v718, %v517
        %vm840 = vcmp.eq.s32.totalorder %v722, %v517
        %vm841 = vcmp.eq.s32.totalorder %v718, %v518
        %vm842 = vcmp.eq.s32.totalorder %v722, %v518
        %vm843 = vcmp.eq.s32.totalorder %v718, %v519
        %vm844 = vcmp.eq.s32.totalorder %v722, %v519
        %vm845 = vcmp.eq.s32.totalorder %v718, %v520
        %vm846 = vcmp.eq.s32.totalorder %v722, %v520
        %vm847 = vcmp.eq.s32.totalorder %v718, %v521
        %vm848 = vcmp.eq.s32.totalorder %v722, %v521
        %vm849 = vcmp.eq.s32.totalorder %v718, %v522
        %vm850 = vcmp.eq.s32.totalorder %v722, %v522
        %vm851 = vcmp.eq.s32.totalorder %v718, %v523
        %vm852 = vcmp.eq.s32.totalorder %v722, %v523
        %vm853 = vcmp.eq.s32.totalorder %v718, %v524
        %vm854 = vcmp.eq.s32.totalorder %v722, %v524
        %vm855 = vcmp.eq.s32.totalorder %v718, %v525
        %vm856 = vcmp.eq.s32.totalorder %v722, %v525
        %vm857 = vcmp.eq.s32.totalorder %v718, %v526
        %vm858 = vcmp.eq.s32.totalorder %v722, %v526
        %vm859 = vcmp.eq.s32.totalorder %v718, %v527
        %vm860 = vcmp.eq.s32.totalorder %v722, %v527
        %vm861 = vcmp.eq.s32.totalorder %v718, %v528
        %vm862 = vcmp.eq.s32.totalorder %v722, %v528
        %vm863 = vcmp.eq.s32.totalorder %v718, %v529
        %vm864 = vcmp.eq.s32.totalorder %v722, %v529
        %vm865 = vcmp.eq.s32.totalorder %v718, %v530
        %vm866 = vcmp.eq.s32.totalorder %v722, %v530
        %vm867 = vcmp.eq.s32.totalorder %v718, %v531
        %vm868 = vcmp.eq.s32.totalorder %v722, %v531
        %vm869 = vcmp.eq.s32.totalorder %v718, %v532
        %vm870 = vcmp.eq.s32.totalorder %v722, %v532
        %vm871 = vcmp.eq.s32.totalorder %v718, %v533
        %vm872 = vcmp.eq.s32.totalorder %v722, %v533
        %vm873 = vcmp.eq.s32.totalorder %v718, %v534
        %vm874 = vcmp.eq.s32.totalorder %v722, %v534
        %vm875 = vcmp.eq.s32.totalorder %v718, %v535
        %vm876 = vcmp.eq.s32.totalorder %v722, %v535
        %vm877 = vcmp.eq.s32.totalorder %v718, %v536
        %vm878 = vcmp.eq.s32.totalorder %v722, %v536
        %vm879 = vcmp.eq.s32.totalorder %v718, %v537
        %vm880 = vcmp.eq.s32.totalorder %v722, %v537
        %vm881 = vcmp.eq.s32.totalorder %v718, %v538
        %vm882 = vcmp.eq.s32.totalorder %v722, %v538
        %vm883 = vcmp.eq.s32.totalorder %v718, %v539
        %vm884 = vcmp.eq.s32.totalorder %v722, %v539
        %vm885 = vcmp.eq.s32.totalorder %v718, %v540
        %vm886 = vcmp.eq.s32.totalorder %v722, %v540
        %vm887 = vcmp.eq.s32.totalorder %v718, %v541
        %vm888 = vcmp.eq.s32.totalorder %v722, %v541
        %vm889 = vcmp.eq.s32.totalorder %v718, %v542
        %vm890 = vcmp.eq.s32.totalorder %v722, %v542
        %vm891 = vcmp.eq.s32.totalorder %v718, %v543
        %vm892 = vcmp.eq.s32.totalorder %v722, %v543
        %vm893 = vcmp.eq.s32.totalorder %v718, %v544
        %vm894 = vcmp.eq.s32.totalorder %v722, %v544
        %vm895 = vcmp.eq.s32.totalorder %v718, %v545
        %vm896 = vcmp.eq.s32.totalorder %v722, %v545
        %vm897 = vcmp.eq.s32.totalorder %v718, %v546
        %vm898 = vcmp.eq.s32.totalorder %v722, %v546
        %vm899 = vcmp.eq.s32.totalorder %v718, %v547
        %vm900 = vcmp.eq.s32.totalorder %v722, %v547
        %vm901 = vcmp.eq.s32.totalorder %v718, %v548
        %vm902 = vcmp.eq.s32.totalorder %v722, %v548
        %vm903 = vcmp.eq.s32.totalorder %v718, %v549
        %vm904 = vcmp.eq.s32.totalorder %v722, %v549
        %vm905 = vcmp.eq.s32.totalorder %v718, %v550
        %vm906 = vcmp.eq.s32.totalorder %v722, %v550
        %vm907 = vcmp.eq.s32.totalorder %v718, %v551
        %vm908 = vcmp.eq.s32.totalorder %v722, %v551
        %vm909 = vcmp.eq.s32.totalorder %v718, %v552
        %vm910 = vcmp.eq.s32.totalorder %v722, %v552
        %vm911 = vcmp.eq.s32.totalorder %v718, %v553
        %vm912 = vcmp.eq.s32.totalorder %v722, %v553
        %vm913 = vcmp.eq.s32.totalorder %v718, %v554
        %vm914 = vcmp.eq.s32.totalorder %v722, %v554
        %vm915 = vcmp.eq.s32.totalorder %v718, %v555
        %vm916 = vcmp.eq.s32.totalorder %v722, %v555
        %vm917 = vcmp.eq.s32.totalorder %v718, %v556
        %vm918 = vcmp.eq.s32.totalorder %v722, %v556
        %vm919 = vcmp.eq.s32.totalorder %v718, %v557
        %vm920 = vcmp.eq.s32.totalorder %v722, %v557
        %vm921 = vcmp.eq.s32.totalorder %v718, %v558
        %vm922 = vcmp.eq.s32.totalorder %v722, %v558
        %vm923 = vcmp.eq.s32.totalorder %v718, %v559
        %vm924 = vcmp.eq.s32.totalorder %v722, %v559
        %vm925 = vcmp.eq.s32.totalorder %v718, %v560
        %vm926 = vcmp.eq.s32.totalorder %v722, %v560
        %vm927 = vcmp.eq.s32.totalorder %v718, %v561
        %vm928 = vcmp.eq.s32.totalorder %v722, %v561
        %vm929 = vcmp.eq.s32.totalorder %v718, %v562
        %vm930 = vcmp.eq.s32.totalorder %v722, %v562
        %vm931 = vcmp.eq.s32.totalorder %v718, %v563
        %vm932 = vcmp.eq.s32.totalorder %v722, %v563
        %vm933 = vcmp.eq.s32.totalorder %v718, %v564
        %vm934 = vcmp.eq.s32.totalorder %v722, %v564
        %vm935 = vcmp.eq.s32.totalorder %v718, %v565
        %vm936 = vcmp.eq.s32.totalorder %v722, %v565
        %vm937 = vcmp.eq.s32.totalorder %v718, %v566
        %vm938 = vcmp.eq.s32.totalorder %v722, %v566
        %vm939 = vcmp.eq.s32.totalorder %v718, %v567
        %vm940 = vcmp.eq.s32.totalorder %v722, %v567
        %vm941 = vcmp.eq.s32.totalorder %v718, %v568
        %vm942 = vcmp.eq.s32.totalorder %v722, %v568
        %vm943 = vcmp.eq.s32.totalorder %v718, %v569
        %vm944 = vcmp.eq.s32.totalorder %v722, %v569
        %vm945 = vcmp.eq.s32.totalorder %v718, %v570
        %vm946 = vcmp.eq.s32.totalorder %v722, %v570
        %vm947 = vcmp.eq.s32.totalorder %v718, %v571
        %vm948 = vcmp.eq.s32.totalorder %v722, %v571
        %vm949 = vcmp.eq.s32.totalorder %v718, %v572
        %vm950 = vcmp.eq.s32.totalorder %v722, %v572
        %vm951 = vcmp.eq.s32.totalorder %v718, %v573
        %vm952 = vcmp.eq.s32.totalorder %v722, %v573
        %vm953 = vcmp.eq.s32.totalorder %v718, %v574
        %vm954 = vcmp.eq.s32.totalorder %v722, %v574
        %vm955 = vcmp.eq.s32.totalorder %v718, %v575
        %vm956 = vcmp.eq.s32.totalorder %v722, %v575
        %vm957 = vcmp.eq.s32.totalorder %v718, %v576
        %vm958 = vcmp.eq.s32.totalorder %v722, %v576
        %vm959 = vcmp.eq.s32.totalorder %v718, %v577
        %vm960 = vcmp.eq.s32.totalorder %v722, %v577
        %vm961 = vcmp.eq.s32.totalorder %v718, %v578
        %vm962 = vcmp.eq.s32.totalorder %v722, %v578
        %vm963 = vcmp.eq.s32.totalorder %v718, %v579
        %vm964 = vcmp.eq.s32.totalorder %v722, %v579
        %vm965 = vcmp.eq.s32.totalorder %v718, %v580
        %vm966 = vcmp.eq.s32.totalorder %v722, %v580
        %vm967 = vcmp.eq.s32.totalorder %v718, %v581
        %vm968 = vcmp.eq.s32.totalorder %v722, %v581
        %vm969 = vcmp.eq.s32.totalorder %v718, %v582
        %vm970 = vcmp.eq.s32.totalorder %v722, %v582
        %vm971 = vcmp.eq.s32.totalorder %v718, %v583
        %vm972 = vcmp.eq.s32.totalorder %v722, %v583
        %vm973 = vcmp.eq.s32.totalorder %v718, %v584
        %vm974 = vcmp.eq.s32.totalorder %v722, %v584
        %vm975 = vcmp.eq.s32.totalorder %v718, %v585
        %vm976 = vcmp.eq.s32.totalorder %v722, %v585
        %vm977 = vcmp.eq.s32.totalorder %v718, %v586
        %vm978 = vcmp.eq.s32.totalorder %v722, %v586
        %vm979 = vcmp.eq.s32.totalorder %v718, %v587
        %vm980 = vcmp.eq.s32.totalorder %v722, %v587
        %vm981 = vcmp.eq.s32.totalorder %v718, %v588
        %vm982 = vcmp.eq.s32.totalorder %v722, %v588
        %vm983 = vcmp.eq.s32.totalorder %v718, %v589
        %vm984 = vcmp.eq.s32.totalorder %v722, %v589
        %vm985 = vcmp.eq.s32.totalorder %v718, %v590
        %vm986 = vcmp.eq.s32.totalorder %v722, %v590
        %vm987 = vcmp.eq.s32.totalorder %v718, %v591
        %vm988 = vcmp.eq.s32.totalorder %v722, %v591
        %vm989 = vcmp.eq.s32.totalorder %v718, %v592
        %vm990 = vcmp.eq.s32.totalorder %v722, %v592
        %vm991 = vcmp.eq.s32.totalorder %v718, %v593
        %vm992 = vcmp.eq.s32.totalorder %v722, %v593
        %vm993 = vcmp.eq.s32.totalorder %v718, %v594
        %vm994 = vcmp.eq.s32.totalorder %v722, %v594
        %vm995 = vcmp.eq.s32.totalorder %v718, %v595
        %vm996 = vcmp.eq.s32.totalorder %v722, %v595
        %vm997 = vcmp.eq.s32.totalorder %v718, %v596
        %vm998 = vcmp.eq.s32.totalorder %v722, %v596
        %vm999 = vcmp.eq.s32.totalorder %v718, %v597
        %vm1000 = vcmp.eq.s32.totalorder %v722, %v597
        %vm1001 = vcmp.eq.s32.totalorder %v718, %v598
        %vm1002 = vcmp.eq.s32.totalorder %v722, %v598
        %vm1003 = vcmp.eq.s32.totalorder %v718, %v599
        %vm1004 = vcmp.eq.s32.totalorder %v722, %v599
        %vm1005 = vcmp.eq.s32.totalorder %v718, %v600
        %vm1006 = vcmp.eq.s32.totalorder %v722, %v600
        %vm1007 = vcmp.eq.s32.totalorder %v718, %v601
        %vm1008 = vcmp.eq.s32.totalorder %v722, %v601
        %vm1009 = vcmp.eq.s32.totalorder %v718, %v602
        %vm1010 = vcmp.eq.s32.totalorder %v722, %v602
        %vm1011 = vcmp.eq.s32.totalorder %v718, %v603
        %vm1012 = vcmp.eq.s32.totalorder %v722, %v603
        %vm1013 = vcmp.eq.s32.totalorder %v718, %v604
        %vm1014 = vcmp.eq.s32.totalorder %v722, %v604
        %vm1015 = vcmp.eq.s32.totalorder %v718, %v605
        %vm1016 = vcmp.eq.s32.totalorder %v722, %v605
        %vm1017 = vcmp.eq.s32.totalorder %v718, %v606
        %vm1018 = vcmp.eq.s32.totalorder %v722, %v606
        %vm1019 = vcmp.eq.s32.totalorder %v718, %v607
        %vm1020 = vcmp.eq.s32.totalorder %v722, %v607
        %vm1021 = vcmp.eq.s32.totalorder %v718, %v608
        %vm1022 = vcmp.eq.s32.totalorder %v722, %v608
        %vm1023 = vcmp.eq.s32.totalorder %v718, %v609
        %vm1024 = vcmp.eq.s32.totalorder %v722, %v609
        %vm1025 = vcmp.eq.s32.totalorder %v718, %v610
        %vm1026 = vcmp.eq.s32.totalorder %v722, %v610
        %vm1027 = vcmp.eq.s32.totalorder %v718, %v611
        %vm1028 = vcmp.eq.s32.totalorder %v722, %v611
        %vm1029 = vcmp.eq.s32.totalorder %v718, %v612
        %vm1030 = vcmp.eq.s32.totalorder %v722, %v612
        %vm1031 = vcmp.eq.s32.totalorder %v718, %v613
        %vm1032 = vcmp.eq.s32.totalorder %v722, %v613
        %vm1033 = vcmp.eq.s32.totalorder %v718, %v614
        %vm1034 = vcmp.eq.s32.totalorder %v722, %v614
        %vm1035 = vcmp.eq.s32.totalorder %v718, %v615
        %vm1036 = vcmp.eq.s32.totalorder %v722, %v615
        %vm1037 = vcmp.eq.s32.totalorder %v718, %v616
        %vm1038 = vcmp.eq.s32.totalorder %v722, %v616
        %vm1039 = vcmp.eq.s32.totalorder %v718, %v617
        %vm1040 = vcmp.eq.s32.totalorder %v722, %v617
        %vm1041 = vcmp.eq.s32.totalorder %v718, %v618
        %vm1042 = vcmp.eq.s32.totalorder %v722, %v618
        %vm1043 = vcmp.eq.s32.totalorder %v718, %v619
        %vm1044 = vcmp.eq.s32.totalorder %v722, %v619
        %vm1045 = vcmp.eq.s32.totalorder %v718, %v620
        %vm1046 = vcmp.eq.s32.totalorder %v722, %v620
        %vm1047 = vcmp.eq.s32.totalorder %v718, %v621
        %vm1048 = vcmp.eq.s32.totalorder %v722, %v621
        %vm1049 = vcmp.eq.s32.totalorder %v718, %v622
        %vm1050 = vcmp.eq.s32.totalorder %v722, %v622
        %vm1051 = vcmp.eq.s32.totalorder %v718, %v623
        %vm1052 = vcmp.eq.s32.totalorder %v722, %v623
        %vm1053 = vcmp.eq.s32.totalorder %v718, %v624
        %vm1054 = vcmp.eq.s32.totalorder %v722, %v624
        %vm1055 = vcmp.eq.s32.totalorder %v718, %v625
        %vm1056 = vcmp.eq.s32.totalorder %v722, %v625
        %vm1057 = vcmp.eq.s32.totalorder %v718, %v626
        %vm1058 = vcmp.eq.s32.totalorder %v722, %v626
        %vm1059 = vcmp.eq.s32.totalorder %v718, %v627
        %vm1060 = vcmp.eq.s32.totalorder %v722, %v627
        %vm1061 = vcmp.eq.s32.totalorder %v718, %v628
        %vm1062 = vcmp.eq.s32.totalorder %v722, %v628
        %vm1063 = vcmp.eq.s32.totalorder %v718, %v629
        %vm1064 = vcmp.eq.s32.totalorder %v722, %v629
        %vm1065 = vcmp.eq.s32.totalorder %v718, %v630
        %vm1066 = vcmp.eq.s32.totalorder %v722, %v630
        %vm1067 = vcmp.eq.s32.totalorder %v718, %v631
        %vm1068 = vcmp.eq.s32.totalorder %v722, %v631
        %vm1069 = vcmp.eq.s32.totalorder %v718, %v632
        %vm1070 = vcmp.eq.s32.totalorder %v722, %v632
        %vm1071 = vcmp.eq.s32.totalorder %v718, %v633
        %vm1072 = vcmp.eq.s32.totalorder %v722, %v633
        %vm1073 = vcmp.eq.s32.totalorder %v718, %v634
        %vm1074 = vcmp.eq.s32.totalorder %v722, %v634
        %vm1075 = vcmp.eq.s32.totalorder %v718, %v635
        %vm1076 = vcmp.eq.s32.totalorder %v722, %v635
        %vm1077 = vcmp.eq.s32.totalorder %v718, %v636
        %vm1078 = vcmp.eq.s32.totalorder %v722, %v636
        %vm1079 = vcmp.eq.s32.totalorder %v718, %v637
        %vm1080 = vcmp.eq.s32.totalorder %v722, %v637
        %vm1081 = vcmp.eq.s32.totalorder %v718, %v638
        %vm1082 = vcmp.eq.s32.totalorder %v722, %v638
        %vm1083 = vcmp.eq.s32.totalorder %v718, %v639
        %vm1084 = vcmp.eq.s32.totalorder %v722, %v639
        %vm1085 = vcmp.eq.s32.totalorder %v718, %v640
        %vm1086 = vcmp.eq.s32.totalorder %v722, %v640
        %vm1087 = vcmp.eq.s32.totalorder %v718, %v641
        %vm1088 = vcmp.eq.s32.totalorder %v722, %v641
        %vm1089 = vcmp.eq.s32.totalorder %v718, %v642
        %vm1090 = vcmp.eq.s32.totalorder %v722, %v642
        %vm1091 = vcmp.eq.s32.totalorder %v718, %v643
        %vm1092 = vcmp.eq.s32.totalorder %v722, %v643
        %vm1093 = vcmp.eq.s32.totalorder %v718, %v644
        %vm1094 = vcmp.eq.s32.totalorder %v722, %v644
        %vm1095 = vcmp.eq.s32.totalorder %v718, %v645
        %vm1096 = vcmp.eq.s32.totalorder %v722, %v645
        %vm1097 = vcmp.eq.s32.totalorder %v718, %v646
        %vm1098 = vcmp.eq.s32.totalorder %v722, %v646
        %vm1099 = vcmp.eq.s32.totalorder %v718, %v647
        %vm1100 = vcmp.eq.s32.totalorder %v722, %v647
        %vm1101 = vcmp.eq.s32.totalorder %v718, %v648
        %vm1102 = vcmp.eq.s32.totalorder %v722, %v648
        %vm1103 = vcmp.eq.s32.totalorder %v718, %v649
        %vm1104 = vcmp.eq.s32.totalorder %v722, %v649
        %vm1105 = vcmp.eq.s32.totalorder %v718, %v650
        %vm1106 = vcmp.eq.s32.totalorder %v722, %v650
        %vm1107 = vcmp.eq.s32.totalorder %v718, %v651
        %vm1108 = vcmp.eq.s32.totalorder %v722, %v651
        %vm1109 = vcmp.eq.s32.totalorder %v718, %v652
        %vm1110 = vcmp.eq.s32.totalorder %v722, %v652
        %vm1111 = vcmp.eq.s32.totalorder %v718, %v653
        %vm1112 = vcmp.eq.s32.totalorder %v722, %v653
        %vm1113 = vcmp.eq.s32.totalorder %v718, %v654
        %vm1114 = vcmp.eq.s32.totalorder %v722, %v654
        %vm1115 = vcmp.eq.s32.totalorder %v718, %v655
        %vm1116 = vcmp.eq.s32.totalorder %v722, %v655
        %vm1117 = vcmp.eq.s32.totalorder %v718, %v656
        %vm1118 = vcmp.eq.s32.totalorder %v722, %v656
        %vm1119 = vcmp.eq.s32.totalorder %v718, %v657
        %vm1120 = vcmp.eq.s32.totalorder %v722, %v657
        %vm1121 = vcmp.eq.s32.totalorder %v718, %v658
        %vm1122 = vcmp.eq.s32.totalorder %v722, %v658
        %vm1123 = vcmp.eq.s32.totalorder %v718, %v659
        %vm1124 = vcmp.eq.s32.totalorder %v722, %v659
        %vm1125 = vcmp.eq.s32.totalorder %v718, %v660
        %vm1126 = vcmp.eq.s32.totalorder %v722, %v660
        %vm1127 = vcmp.eq.s32.totalorder %v718, %v661
        %vm1128 = vcmp.eq.s32.totalorder %v722, %v661
        %vm1129 = vcmp.eq.s32.totalorder %v718, %v662
        %vm1130 = vcmp.eq.s32.totalorder %v722, %v662
        %vm1131 = vcmp.eq.s32.totalorder %v718, %v663
        %vm1132 = vcmp.eq.s32.totalorder %v722, %v663
        %vm1133 = vcmp.eq.s32.totalorder %v718, %v664
        %vm1134 = vcmp.eq.s32.totalorder %v722, %v664
        %vm1135 = vcmp.eq.s32.totalorder %v718, %v665
        %vm1136 = vcmp.eq.s32.totalorder %v722, %v665
        %vm1137 = vcmp.eq.s32.totalorder %v718, %v666
        %vm1138 = vcmp.eq.s32.totalorder %v722, %v666
        %vm1139 = vcmp.eq.s32.totalorder %v718, %v667
        %vm1140 = vcmp.eq.s32.totalorder %v722, %v667
        %vm1141 = vcmp.eq.s32.totalorder %v718, %v668
        %vm1142 = vcmp.eq.s32.totalorder %v722, %v668
        %vm1143 = vcmp.eq.s32.totalorder %v718, %v669
        %vm1144 = vcmp.eq.s32.totalorder %v722, %v669
        %vm1145 = vcmp.eq.s32.totalorder %v718, %v670
        %vm1146 = vcmp.eq.s32.totalorder %v722, %v670
        %vm1147 = vcmp.eq.s32.totalorder %v718, %v671
        %vm1148 = vcmp.eq.s32.totalorder %v722, %v671
        %vm1149 = vcmp.eq.s32.totalorder %v718, %v672
        %vm1150 = vcmp.eq.s32.totalorder %v722, %v672
        %vm1151 = vcmp.eq.s32.totalorder %v718, %v673
        %vm1152 = vcmp.eq.s32.totalorder %v722, %v673
        %vm1153 = vcmp.eq.s32.totalorder %v718, %v674
        %vm1154 = vcmp.eq.s32.totalorder %v722, %v674
        %vm1155 = vcmp.eq.s32.totalorder %v718, %v675
        %vm1156 = vcmp.eq.s32.totalorder %v722, %v675
        %vm1157 = vcmp.eq.s32.totalorder %v718, %v676
        %vm1158 = vcmp.eq.s32.totalorder %v722, %v676
        %vm1159 = vcmp.eq.s32.totalorder %v718, %v677
        %vm1160 = vcmp.eq.s32.totalorder %v722, %v677
        %vm1161 = vcmp.eq.s32.totalorder %v718, %v678
        %vm1162 = vcmp.eq.s32.totalorder %v722, %v678
        %vm1163 = vcmp.eq.s32.totalorder %v718, %v679
        %vm1164 = vcmp.eq.s32.totalorder %v722, %v679
        %vm1165 = vcmp.eq.s32.totalorder %v718, %v680
        %vm1166 = vcmp.eq.s32.totalorder %v722, %v680
        %vm1167 = vcmp.eq.s32.totalorder %v718, %v681
        %vm1168 = vcmp.eq.s32.totalorder %v722, %v681
        %vm1169 = vcmp.eq.s32.totalorder %v718, %v682
        %vm1170 = vcmp.eq.s32.totalorder %v722, %v682
        %vm1171 = vcmp.eq.s32.totalorder %v718, %v683
        %vm1172 = vcmp.eq.s32.totalorder %v722, %v683
        %vm1173 = vcmp.eq.s32.totalorder %v718, %v684
        %vm1174 = vcmp.eq.s32.totalorder %v722, %v684
        %vm1175 = vcmp.eq.s32.totalorder %v718, %v685
        %vm1176 = vcmp.eq.s32.totalorder %v722, %v685
        %vm1177 = vcmp.eq.s32.totalorder %v718, %v686
        %vm1178 = vcmp.eq.s32.totalorder %v722, %v686
        %vm1179 = vcmp.eq.s32.totalorder %v718, %v687
        %vm1180 = vcmp.eq.s32.totalorder %v722, %v687
        %vm1181 = vcmp.eq.s32.totalorder %v718, %v688
        %vm1182 = vcmp.eq.s32.totalorder %v722, %v688
        %vm1183 = vcmp.eq.s32.totalorder %v718, %v689
        %vm1184 = vcmp.eq.s32.totalorder %v722, %v689
        %vm1185 = vcmp.eq.s32.totalorder %v718, %v690
        %vm1186 = vcmp.eq.s32.totalorder %v722, %v690
        %vm1187 = vcmp.eq.s32.totalorder %v718, %v691
        %vm1188 = vcmp.eq.s32.totalorder %v722, %v691
        %vm1189 = vcmp.eq.s32.totalorder %v718, %v692
        %vm1190 = vcmp.eq.s32.totalorder %v722, %v692
        %vm1191 = vcmp.eq.s32.totalorder %v718, %v693
        %vm1192 = vcmp.eq.s32.totalorder %v722, %v693
        %vm1193 = vcmp.eq.s32.totalorder %v718, %v694
        %vm1194 = vcmp.eq.s32.totalorder %v722, %v694
        %vm1195 = vcmp.eq.s32.totalorder %v718, %v695
        %vm1196 = vcmp.eq.s32.totalorder %v722, %v695
        %vm1197 = vcmp.eq.s32.totalorder %v718, %v696
        %vm1198 = vcmp.eq.s32.totalorder %v722, %v696
        %vm1199 = vcmp.eq.s32.totalorder %v718, %v697
        %vm1200 = vcmp.eq.s32.totalorder %v722, %v697
        %vm1201 = vcmp.eq.s32.totalorder %v718, %v698
        %vm1202 = vcmp.eq.s32.totalorder %v722, %v698
        %vm1203 = vcmp.eq.s32.totalorder %v718, %v699
        %vm1204 = vcmp.eq.s32.totalorder %v722, %v699
        %vm1205 = vcmp.eq.s32.totalorder %v718, %v700
        %vm1206 = vcmp.eq.s32.totalorder %v722, %v700
        %vm1207 = vcmp.eq.s32.totalorder %v718, %v701
        %vm1208 = vcmp.eq.s32.totalorder %v722, %v701
        %vm1209 = vcmp.eq.s32.totalorder %v718, %v702
        %vm1210 = vcmp.eq.s32.totalorder %v722, %v702
        %vm1211 = vcmp.eq.s32.totalorder %v718, %v703
        %vm1212 = vcmp.eq.s32.totalorder %v722, %v703
        %vm1213 = vcmp.eq.s32.totalorder %v718, %v704
        %vm1214 = vcmp.eq.s32.totalorder %v722, %v704
        %vm1215 = vcmp.eq.s32.totalorder %v718, %v705
        %vm1216 = vcmp.eq.s32.totalorder %v722, %v705
        %vm1217 = vcmp.eq.s32.totalorder %v718, %v706
        %vm1218 = vcmp.eq.s32.totalorder %v722, %v706
        %vm1219 = vcmp.eq.s32.totalorder %v718, %v707
        %vm1220 = vcmp.eq.s32.totalorder %v722, %v707
        %vm1221 = vcmp.eq.s32.totalorder %v718, %v708
        %vm1222 = vcmp.eq.s32.totalorder %v722, %v708
        %vm1223 = vcmp.eq.s32.totalorder %v718, %v709
        %vm1224 = vcmp.eq.s32.totalorder %v722, %v709
        %vm1225 = vcmp.eq.s32.totalorder %v718, %v710
        %vm1226 = vcmp.eq.s32.totalorder %v722, %v710
        %vm1227 = vcmp.eq.s32.totalorder %v718, %v711
        %vm1228 = vcmp.eq.s32.totalorder %v722, %v711
        %vm1229 = vcmp.eq.s32.totalorder %v718, %v712
        %vm1230 = vcmp.eq.s32.totalorder %v722, %v712
        %vm1231 = vcmp.eq.s32.totalorder %v718, %v713
        %vm1232 = vcmp.eq.s32.totalorder %v722, %v713
        %vm1233 = vcmp.eq.s32.totalorder %v718, %v714
        %vm1234 = vcmp.eq.s32.totalorder %v722, %v714
        %v1235 = vsel %vm723, 1, 0
        %v1236 = vsel %vm724, 1, 0
        %v1237 = vsel %vm725, 1, 0
        %v1238 = vsel %vm726, 1, 0
        %v1239 = vsel %vm727, 1, 0
        %v1240 = vsel %vm728, 1, 0
        %v1241 = vsel %vm729, 1, 0
        %v1242 = vsel %vm730, 1, 0
        %v1243 = vsel %vm731, 1, 0
        %v1244 = vsel %vm732, 1, 0
        %v1245 = vsel %vm733, 1, 0
        %v1246 = vsel %vm734, 1, 0
        %v1247 = vsel %vm735, 1, 0
        %v1248 = vsel %vm736, 1, 0
        %v1249 = vsel %vm737, 1, 0
        %v1250 = vsel %vm738, 1, 0
        %v1251 = vsel %vm739, 1, 0
        %v1252 = vsel %vm740, 1, 0
        %v1253 = vsel %vm741, 1, 0
        %v1254 = vsel %vm742, 1, 0
        %v1255 = vsel %vm743, 1, 0
        %v1256 = vsel %vm744, 1, 0
        %v1257 = vsel %vm745, 1, 0
        %v1258 = vsel %vm746, 1, 0
        %v1259 = vsel %vm747, 1, 0
        %v1260 = vsel %vm748, 1, 0
        %v1261 = vsel %vm749, 1, 0
        %v1262 = vsel %vm750, 1, 0
        %v1263 = vsel %vm751, 1, 0
        %v1264 = vsel %vm752, 1, 0
        %v1265 = vsel %vm753, 1, 0
        %v1266 = vsel %vm754, 1, 0
        %v1267 = vsel %vm755, 1, 0
        %v1268 = vsel %vm756, 1, 0
        %v1269 = vsel %vm757, 1, 0
        %v1270 = vsel %vm758, 1, 0
        %v1271 = vsel %vm759, 1, 0
        %v1272 = vsel %vm760, 1, 0
        %v1273 = vsel %vm761, 1, 0
        %v1274 = vsel %vm762, 1, 0
        %v1275 = vsel %vm763, 1, 0
        %v1276 = vsel %vm764, 1, 0
        %v1277 = vsel %vm765, 1, 0
        %v1278 = vsel %vm766, 1, 0
        %v1279 = vsel %vm767, 1, 0
        %v1280 = vsel %vm768, 1, 0
        %v1281 = vsel %vm769, 1, 0
        %v1282 = vsel %vm770, 1, 0
        %v1283 = vsel %vm771, 1, 0
        %v1284 = vsel %vm772, 1, 0
        %v1285 = vsel %vm773, 1, 0
        %v1286 = vsel %vm774, 1, 0
        %v1287 = vsel %vm775, 1, 0
        %v1288 = vsel %vm776, 1, 0
        %v1289 = vsel %vm777, 1, 0
        %v1290 = vsel %vm778, 1, 0
        %v1291 = vsel %vm779, 1, 0
        %v1292 = vsel %vm780, 1, 0
        %v1293 = vsel %vm781, 1, 0
        %v1294 = vsel %vm782, 1, 0
        %v1295 = vsel %vm783, 1, 0
        %v1296 = vsel %vm784, 1, 0
        %v1297 = vsel %vm785, 1, 0
        %v1298 = vsel %vm786, 1, 0
        %v1299 = vsel %vm787, 1, 0
        %v1300 = vsel %vm788, 1, 0
        %v1301 = vsel %vm789, 1, 0
        %v1302 = vsel %vm790, 1, 0
        %v1303 = vsel %vm791, 1, 0
        %v1304 = vsel %vm792, 1, 0
        %v1305 = vsel %vm793, 1, 0
        %v1306 = vsel %vm794, 1, 0
        %v1307 = vsel %vm795, 1, 0
        %v1308 = vsel %vm796, 1, 0
        %v1309 = vsel %vm797, 1, 0
        %v1310 = vsel %vm798, 1, 0
        %v1311 = vsel %vm799, 1, 0
        %v1312 = vsel %vm800, 1, 0
        %v1313 = vsel %vm801, 1, 0
        %v1314 = vsel %vm802, 1, 0
        %v1315 = vsel %vm803, 1, 0
        %v1316 = vsel %vm804, 1, 0
        %v1317 = vsel %vm805, 1, 0
        %v1318 = vsel %vm806, 1, 0
        %v1319 = vsel %vm807, 1, 0
        %v1320 = vsel %vm808, 1, 0
        %v1321 = vsel %vm809, 1, 0
        %v1322 = vsel %vm810, 1, 0
        %v1323 = vsel %vm811, 1, 0
        %v1324 = vsel %vm812, 1, 0
        %v1325 = vsel %vm813, 1, 0
        %v1326 = vsel %vm814, 1, 0
        %v1327 = vsel %vm815, 1, 0
        %v1328 = vsel %vm816, 1, 0
        %v1329 = vsel %vm817, 1, 0
        %v1330 = vsel %vm818, 1, 0
        %v1331 = vsel %vm819, 1, 0
        %v1332 = vsel %vm820, 1, 0
        %v1333 = vsel %vm821, 1, 0
        %v1334 = vsel %vm822, 1, 0
        %v1335 = vsel %vm823, 1, 0
        %v1336 = vsel %vm824, 1, 0
        %v1337 = vsel %vm825, 1, 0
        %v1338 = vsel %vm826, 1, 0
        %v1339 = vsel %vm827, 1, 0
        %v1340 = vsel %vm828, 1, 0
        %v1341 = vsel %vm829, 1, 0
        %v1342 = vsel %vm830, 1, 0
        %v1343 = vsel %vm831, 1, 0
        %v1344 = vsel %vm832, 1, 0
        %v1345 = vsel %vm833, 1, 0
        %v1346 = vsel %vm834, 1, 0
        %v1347 = vsel %vm835, 1, 0
        %v1348 = vsel %vm836, 1, 0
        %v1349 = vsel %vm837, 1, 0
        %v1350 = vsel %vm838, 1, 0
        %v1351 = vsel %vm839, 1, 0
        %v1352 = vsel %vm840, 1, 0
        %v1353 = vsel %vm841, 1, 0
        %v1354 = vsel %vm842, 1, 0
        %v1355 = vsel %vm843, 1, 0
        %v1356 = vsel %vm844, 1, 0
        %v1357 = vsel %vm845, 1, 0
        %v1358 = vsel %vm846, 1, 0
        %v1359 = vsel %vm847, 1, 0
        %v1360 = vsel %vm848, 1, 0
        %v1361 = vsel %vm849, 1, 0
        %v1362 = vsel %vm850, 1, 0
        %v1363 = vsel %vm851, 1, 0
        %v1364 = vsel %vm852, 1, 0
        %v1365 = vsel %vm853, 1, 0
        %v1366 = vsel %vm854, 1, 0
        %v1367 = vsel %vm855, 1, 0
        %v1368 = vsel %vm856, 1, 0
        %v1369 = vsel %vm857, 1, 0
        %v1370 = vsel %vm858, 1, 0
        %v1371 = vsel %vm859, 1, 0
        %v1372 = vsel %vm860, 1, 0
        %v1373 = vsel %vm861, 1, 0
        %v1374 = vsel %vm862, 1, 0
        %v1375 = vsel %vm863, 1, 0
        %v1376 = vsel %vm864, 1, 0
        %v1377 = vsel %vm865, 1, 0
        %v1378 = vsel %vm866, 1, 0
        %v1379 = vsel %vm867, 1, 0
        %v1380 = vsel %vm868, 1, 0
        %v1381 = vsel %vm869, 1, 0
        %v1382 = vsel %vm870, 1, 0
        %v1383 = vsel %vm871, 1, 0
        %v1384 = vsel %vm872, 1, 0
        %v1385 = vsel %vm873, 1, 0
        %v1386 = vsel %vm874, 1, 0
        %v1387 = vsel %vm875, 1, 0
        %v1388 = vsel %vm876, 1, 0
        %v1389 = vsel %vm877, 1, 0
        %v1390 = vsel %vm878, 1, 0
        %v1391 = vsel %vm879, 1, 0
        %v1392 = vsel %vm880, 1, 0
        %v1393 = vsel %vm881, 1, 0
        %v1394 = vsel %vm882, 1, 0
        %v1395 = vsel %vm883, 1, 0
        %v1396 = vsel %vm884, 1, 0
        %v1397 = vsel %vm885, 1, 0
        %v1398 = vsel %vm886, 1, 0
        %v1399 = vsel %vm887, 1, 0
        %v1400 = vsel %vm888, 1, 0
        %v1401 = vsel %vm889, 1, 0
        %v1402 = vsel %vm890, 1, 0
        %v1403 = vsel %vm891, 1, 0
        %v1404 = vsel %vm892, 1, 0
        %v1405 = vsel %vm893, 1, 0
        %v1406 = vsel %vm894, 1, 0
        %v1407 = vsel %vm895, 1, 0
        %v1408 = vsel %vm896, 1, 0
        %v1409 = vsel %vm897, 1, 0
        %v1410 = vsel %vm898, 1, 0
        %v1411 = vsel %vm899, 1, 0
        %v1412 = vsel %vm900, 1, 0
        %v1413 = vsel %vm901, 1, 0
        %v1414 = vsel %vm902, 1, 0
        %v1415 = vsel %vm903, 1, 0
        %v1416 = vsel %vm904, 1, 0
        %v1417 = vsel %vm905, 1, 0
        %v1418 = vsel %vm906, 1, 0
        %v1419 = vsel %vm907, 1, 0
        %v1420 = vsel %vm908, 1, 0
        %v1421 = vsel %vm909, 1, 0
        %v1422 = vsel %vm910, 1, 0
        %v1423 = vsel %vm911, 1, 0
        %v1424 = vsel %vm912, 1, 0
        %v1425 = vsel %vm913, 1, 0
        %v1426 = vsel %vm914, 1, 0
        %v1427 = vsel %vm915, 1, 0
        %v1428 = vsel %vm916, 1, 0
        %v1429 = vsel %vm917, 1, 0
        %v1430 = vsel %vm918, 1, 0
        %v1431 = vsel %vm919, 1, 0
        %v1432 = vsel %vm920, 1, 0
        %v1433 = vsel %vm921, 1, 0
        %v1434 = vsel %vm922, 1, 0
        %v1435 = vsel %vm923, 1, 0
        %v1436 = vsel %vm924, 1, 0
        %v1437 = vsel %vm925, 1, 0
        %v1438 = vsel %vm926, 1, 0
        %v1439 = vsel %vm927, 1, 0
        %v1440 = vsel %vm928, 1, 0
        %v1441 = vsel %vm929, 1, 0
        %v1442 = vsel %vm930, 1, 0
        %v1443 = vsel %vm931, 1, 0
        %v1444 = vsel %vm932, 1, 0
        %v1445 = vsel %vm933, 1, 0
        %v1446 = vsel %vm934, 1, 0
        %v1447 = vsel %vm935, 1, 0
        %v1448 = vsel %vm936, 1, 0
        %v1449 = vsel %vm937, 1, 0
        %v1450 = vsel %vm938, 1, 0
        %v1451 = vsel %vm939, 1, 0
        %v1452 = vsel %vm940, 1, 0
        %v1453 = vsel %vm941, 1, 0
        %v1454 = vsel %vm942, 1, 0
        %v1455 = vsel %vm943, 1, 0
        %v1456 = vsel %vm944, 1, 0
        %v1457 = vsel %vm945, 1, 0
        %v1458 = vsel %vm946, 1, 0
        %v1459 = vsel %vm947, 1, 0
        %v1460 = vsel %vm948, 1, 0
        %v1461 = vsel %vm949, 1, 0
        %v1462 = vsel %vm950, 1, 0
        %v1463 = vsel %vm951, 1, 0
        %v1464 = vsel %vm952, 1, 0
        %v1465 = vsel %vm953, 1, 0
        %v1466 = vsel %vm954, 1, 0
        %v1467 = vsel %vm955, 1, 0
        %v1468 = vsel %vm956, 1, 0
        %v1469 = vsel %vm957, 1, 0
        %v1470 = vsel %vm958, 1, 0
        %v1471 = vsel %vm959, 1, 0
        %v1472 = vsel %vm960, 1, 0
        %v1473 = vsel %vm961, 1, 0
        %v1474 = vsel %vm962, 1, 0
        %v1475 = vsel %vm963, 1, 0
        %v1476 = vsel %vm964, 1, 0
        %v1477 = vsel %vm965, 1, 0
        %v1478 = vsel %vm966, 1, 0
        %v1479 = vsel %vm967, 1, 0
        %v1480 = vsel %vm968, 1, 0
        %v1481 = vsel %vm969, 1, 0
        %v1482 = vsel %vm970, 1, 0
        %v1483 = vsel %vm971, 1, 0
        %v1484 = vsel %vm972, 1, 0
        %v1485 = vsel %vm973, 1, 0
        %v1486 = vsel %vm974, 1, 0
        %v1487 = vsel %vm975, 1, 0
        %v1488 = vsel %vm976, 1, 0
        %v1489 = vsel %vm977, 1, 0
        %v1490 = vsel %vm978, 1, 0
        %v1491 = vsel %vm979, 1, 0
        %v1492 = vsel %vm980, 1, 0
        %v1493 = vsel %vm981, 1, 0
        %v1494 = vsel %vm982, 1, 0
        %v1495 = vsel %vm983, 1, 0
        %v1496 = vsel %vm984, 1, 0
        %v1497 = vsel %vm985, 1, 0
        %v1498 = vsel %vm986, 1, 0
        %v1499 = vsel %vm987, 1, 0
        %v1500 = vsel %vm988, 1, 0
        %v1501 = vsel %vm989, 1, 0
        %v1502 = vsel %vm990, 1, 0
        %v1503 = vsel %vm991, 1, 0
        %v1504 = vsel %vm992, 1, 0
        %v1505 = vsel %vm993, 1, 0
        %v1506 = vsel %vm994, 1, 0
        %v1507 = vsel %vm995, 1, 0
        %v1508 = vsel %vm996, 1, 0
        %v1509 = vsel %vm997, 1, 0
        %v1510 = vsel %vm998, 1, 0
        %v1511 = vsel %vm999, 1, 0
        %v1512 = vsel %vm1000, 1, 0
        %v1513 = vsel %vm1001, 1, 0
        %v1514 = vsel %vm1002, 1, 0
        %v1515 = vsel %vm1003, 1, 0
        %v1516 = vsel %vm1004, 1, 0
        %v1517 = vsel %vm1005, 1, 0
        %v1518 = vsel %vm1006, 1, 0
        %v1519 = vsel %vm1007, 1, 0
        %v1520 = vsel %vm1008, 1, 0
        %v1521 = vsel %vm1009, 1, 0
        %v1522 = vsel %vm1010, 1, 0
        %v1523 = vsel %vm1011, 1, 0
        %v1524 = vsel %vm1012, 1, 0
        %v1525 = vsel %vm1013, 1, 0
        %v1526 = vsel %vm1014, 1, 0
        %v1527 = vsel %vm1015, 1, 0
        %v1528 = vsel %vm1016, 1, 0
        %v1529 = vsel %vm1017, 1, 0
        %v1530 = vsel %vm1018, 1, 0
        %v1531 = vsel %vm1019, 1, 0
        %v1532 = vsel %vm1020, 1, 0
        %v1533 = vsel %vm1021, 1, 0
        %v1534 = vsel %vm1022, 1, 0
        %v1535 = vsel %vm1023, 1, 0
        %v1536 = vsel %vm1024, 1, 0
        %v1537 = vsel %vm1025, 1, 0
        %v1538 = vsel %vm1026, 1, 0
        %v1539 = vsel %vm1027, 1, 0
        %v1540 = vsel %vm1028, 1, 0
        %v1541 = vsel %vm1029, 1, 0
        %v1542 = vsel %vm1030, 1, 0
        %v1543 = vsel %vm1031, 1, 0
        %v1544 = vsel %vm1032, 1, 0
        %v1545 = vsel %vm1033, 1, 0
        %v1546 = vsel %vm1034, 1, 0
        %v1547 = vsel %vm1035, 1, 0
        %v1548 = vsel %vm1036, 1, 0
        %v1549 = vsel %vm1037, 1, 0
        %v1550 = vsel %vm1038, 1, 0
        %v1551 = vsel %vm1039, 1, 0
        %v1552 = vsel %vm1040, 1, 0
        %v1553 = vsel %vm1041, 1, 0
        %v1554 = vsel %vm1042, 1, 0
        %v1555 = vsel %vm1043, 1, 0
        %v1556 = vsel %vm1044, 1, 0
        %v1557 = vsel %vm1045, 1, 0
        %v1558 = vsel %vm1046, 1, 0
        %v1559 = vsel %vm1047, 1, 0
        %v1560 = vsel %vm1048, 1, 0
        %v1561 = vsel %vm1049, 1, 0
        %v1562 = vsel %vm1050, 1, 0
        %v1563 = vsel %vm1051, 1, 0
        %v1564 = vsel %vm1052, 1, 0
        %v1565 = vsel %vm1053, 1, 0
        %v1566 = vsel %vm1054, 1, 0
        %v1567 = vsel %vm1055, 1, 0
        %v1568 = vsel %vm1056, 1, 0
        %v1569 = vsel %vm1057, 1, 0
        %v1570 = vsel %vm1058, 1, 0
        %v1571 = vsel %vm1059, 1, 0
        %v1572 = vsel %vm1060, 1, 0
        %v1573 = vsel %vm1061, 1, 0
        %v1574 = vsel %vm1062, 1, 0
        %v1575 = vsel %vm1063, 1, 0
        %v1576 = vsel %vm1064, 1, 0
        %v1577 = vsel %vm1065, 1, 0
        %v1578 = vsel %vm1066, 1, 0
        %v1579 = vsel %vm1067, 1, 0
        %v1580 = vsel %vm1068, 1, 0
        %v1581 = vsel %vm1069, 1, 0
        %v1582 = vsel %vm1070, 1, 0
        %v1583 = vsel %vm1071, 1, 0
        %v1584 = vsel %vm1072, 1, 0
        %v1585 = vsel %vm1073, 1, 0
        %v1586 = vsel %vm1074, 1, 0
        %v1587 = vsel %vm1075, 1, 0
        %v1588 = vsel %vm1076, 1, 0
        %v1589 = vsel %vm1077, 1, 0
        %v1590 = vsel %vm1078, 1, 0
        %v1591 = vsel %vm1079, 1, 0
        %v1592 = vsel %vm1080, 1, 0
        %v1593 = vsel %vm1081, 1, 0
        %v1594 = vsel %vm1082, 1, 0
        %v1595 = vsel %vm1083, 1, 0
        %v1596 = vsel %vm1084, 1, 0
        %v1597 = vsel %vm1085, 1, 0
        %v1598 = vsel %vm1086, 1, 0
        %v1599 = vsel %vm1087, 1, 0
        %v1600 = vsel %vm1088, 1, 0
        %v1601 = vsel %vm1089, 1, 0
        %v1602 = vsel %vm1090, 1, 0
        %v1603 = vsel %vm1091, 1, 0
        %v1604 = vsel %vm1092, 1, 0
        %v1605 = vsel %vm1093, 1, 0
        %v1606 = vsel %vm1094, 1, 0
        %v1607 = vsel %vm1095, 1, 0
        %v1608 = vsel %vm1096, 1, 0
        %v1609 = vsel %vm1097, 1, 0
        %v1610 = vsel %vm1098, 1, 0
        %v1611 = vsel %vm1099, 1, 0
        %v1612 = vsel %vm1100, 1, 0
        %v1613 = vsel %vm1101, 1, 0
        %v1614 = vsel %vm1102, 1, 0
        %v1615 = vsel %vm1103, 1, 0
        %v1616 = vsel %vm1104, 1, 0
        %v1617 = vsel %vm1105, 1, 0
        %v1618 = vsel %vm1106, 1, 0
        %v1619 = vsel %vm1107, 1, 0
        %v1620 = vsel %vm1108, 1, 0
        %v1621 = vsel %vm1109, 1, 0
        %v1622 = vsel %vm1110, 1, 0
        %v1623 = vsel %vm1111, 1, 0
        %v1624 = vsel %vm1112, 1, 0
        %v1625 = vsel %vm1113, 1, 0
        %v1626 = vsel %vm1114, 1, 0
        %v1627 = vsel %vm1115, 1, 0
        %v1628 = vsel %vm1116, 1, 0
        %v1629 = vsel %vm1117, 1, 0
        %v1630 = vsel %vm1118, 1, 0
        %v1631 = vsel %vm1119, 1, 0
        %v1632 = vsel %vm1120, 1, 0
        %v1633 = vsel %vm1121, 1, 0
        %v1634 = vsel %vm1122, 1, 0
        %v1635 = vsel %vm1123, 1, 0
        %v1636 = vsel %vm1124, 1, 0
        %v1637 = vsel %vm1125, 1, 0
        %v1638 = vsel %vm1126, 1, 0
        %v1639 = vsel %vm1127, 1, 0
        %v1640 = vsel %vm1128, 1, 0
        %v1641 = vsel %vm1129, 1, 0
        %v1642 = vsel %vm1130, 1, 0
        %v1643 = vsel %vm1131, 1, 0
        %v1644 = vsel %vm1132, 1, 0
        %v1645 = vsel %vm1133, 1, 0
        %v1646 = vsel %vm1134, 1, 0
        %v1647 = vsel %vm1135, 1, 0
        %v1648 = vsel %vm1136, 1, 0
        %v1649 = vsel %vm1137, 1, 0
        %v1650 = vsel %vm1138, 1, 0
        %v1651 = vsel %vm1139, 1, 0
        %v1652 = vsel %vm1140, 1, 0
        %v1653 = vsel %vm1141, 1, 0
        %v1654 = vsel %vm1142, 1, 0
        %v1655 = vsel %vm1143, 1, 0
        %v1656 = vsel %vm1144, 1, 0
        %v1657 = vsel %vm1145, 1, 0
        %v1658 = vsel %vm1146, 1, 0
        %v1659 = vsel %vm1147, 1, 0
        %v1660 = vsel %vm1148, 1, 0
        %v1661 = vsel %vm1149, 1, 0
        %v1662 = vsel %vm1150, 1, 0
        %v1663 = vsel %vm1151, 1, 0
        %v1664 = vsel %vm1152, 1, 0
        %v1665 = vsel %vm1153, 1, 0
        %v1666 = vsel %vm1154, 1, 0
        %v1667 = vsel %vm1155, 1, 0
        %v1668 = vsel %vm1156, 1, 0
        %v1669 = vsel %vm1157, 1, 0
        %v1670 = vsel %vm1158, 1, 0
        %v1671 = vsel %vm1159, 1, 0
        %v1672 = vsel %vm1160, 1, 0
        %v1673 = vsel %vm1161, 1, 0
        %v1674 = vsel %vm1162, 1, 0
        %v1675 = vsel %vm1163, 1, 0
        %v1676 = vsel %vm1164, 1, 0
        %v1677 = vsel %vm1165, 1, 0
        %v1678 = vsel %vm1166, 1, 0
        %v1679 = vsel %vm1167, 1, 0
        %v1680 = vsel %vm1168, 1, 0
        %v1681 = vsel %vm1169, 1, 0
        %v1682 = vsel %vm1170, 1, 0
        %v1683 = vsel %vm1171, 1, 0
        %v1684 = vsel %vm1172, 1, 0
        %v1685 = vsel %vm1173, 1, 0
        %v1686 = vsel %vm1174, 1, 0
        %v1687 = vsel %vm1175, 1, 0
        %v1688 = vsel %vm1176, 1, 0
        %v1689 = vsel %vm1177, 1, 0
        %v1690 = vsel %vm1178, 1, 0
        %v1691 = vsel %vm1179, 1, 0
        %v1692 = vsel %vm1180, 1, 0
        %v1693 = vsel %vm1181, 1, 0
        %v1694 = vsel %vm1182, 1, 0
        %v1695 = vsel %vm1183, 1, 0
        %v1696 = vsel %vm1184, 1, 0
        %v1697 = vsel %vm1185, 1, 0
        %v1698 = vsel %vm1186, 1, 0
        %v1699 = vsel %vm1187, 1, 0
        %v1700 = vsel %vm1188, 1, 0
        %v1701 = vsel %vm1189, 1, 0
        %v1702 = vsel %vm1190, 1, 0
        %v1703 = vsel %vm1191, 1, 0
        %v1704 = vsel %vm1192, 1, 0
        %v1705 = vsel %vm1193, 1, 0
        %v1706 = vsel %vm1194, 1, 0
        %v1707 = vsel %vm1195, 1, 0
        %v1708 = vsel %vm1196, 1, 0
        %v1709 = vsel %vm1197, 1, 0
        %v1710 = vsel %vm1198, 1, 0
        %v1711 = vsel %vm1199, 1, 0
        %v1712 = vsel %vm1200, 1, 0
        %v1713 = vsel %vm1201, 1, 0
        %v1714 = vsel %vm1202, 1, 0
        %v1715 = vsel %vm1203, 1, 0
        %v1716 = vsel %vm1204, 1, 0
        %v1717 = vsel %vm1205, 1, 0
        %v1718 = vsel %vm1206, 1, 0
        %v1719 = vsel %vm1207, 1, 0
        %v1720 = vsel %vm1208, 1, 0
        %v1721 = vsel %vm1209, 1, 0
        %v1722 = vsel %vm1210, 1, 0
        %v1723 = vsel %vm1211, 1, 0
        %v1724 = vsel %vm1212, 1, 0
        %v1725 = vsel %vm1213, 1, 0
        %v1726 = vsel %vm1214, 1, 0
        %v1727 = vsel %vm1215, 1, 0
        %v1728 = vsel %vm1216, 1, 0
        %v1729 = vsel %vm1217, 1, 0
        %v1730 = vsel %vm1218, 1, 0
        %v1731 = vsel %vm1219, 1, 0
        %v1732 = vsel %vm1220, 1, 0
        %v1733 = vsel %vm1221, 1, 0
        %v1734 = vsel %vm1222, 1, 0
        %v1735 = vsel %vm1223, 1, 0
        %v1736 = vsel %vm1224, 1, 0
        %v1737 = vsel %vm1225, 1, 0
        %v1738 = vsel %vm1226, 1, 0
        %v1739 = vsel %vm1227, 1, 0
        %v1740 = vsel %vm1228, 1, 0
        %v1741 = vsel %vm1229, 1, 0
        %v1742 = vsel %vm1230, 1, 0
        %v1743 = vsel %vm1231, 1, 0
        %v1744 = vsel %vm1232, 1, 0
        %v1745 = vsel %vm1233, 1, 0
        %v1746 = vsel %vm1234, 1, 0
        %v1747 = vcvt.s32.f32 %v1235
        %v1748 = vcvt.s32.f32 %v1236
        %v1749 = vcvt.s32.f32 %v1237
        %v1750 = vcvt.s32.f32 %v1238
        %v1751 = vcvt.s32.f32 %v1239
        %v1752 = vcvt.s32.f32 %v1240
        %v1753 = vcvt.s32.f32 %v1241
        %v1754 = vcvt.s32.f32 %v1242
        %v1755 = vcvt.s32.f32 %v1243
        %v1756 = vcvt.s32.f32 %v1244
        %v1757 = vcvt.s32.f32 %v1245
        %v1758 = vcvt.s32.f32 %v1246
        %v1759 = vcvt.s32.f32 %v1247
        %v1760 = vcvt.s32.f32 %v1248
        %v1761 = vcvt.s32.f32 %v1249
        %v1762 = vcvt.s32.f32 %v1250
        %v1763 = vcvt.s32.f32 %v1251
        %v1764 = vcvt.s32.f32 %v1252
        %v1765 = vcvt.s32.f32 %v1253
        %v1766 = vcvt.s32.f32 %v1254
        %v1767 = vcvt.s32.f32 %v1255
        %v1768 = vcvt.s32.f32 %v1256
        %v1769 = vcvt.s32.f32 %v1257
        %v1770 = vcvt.s32.f32 %v1258
        %v1771 = vcvt.s32.f32 %v1259
        %v1772 = vcvt.s32.f32 %v1260
        %v1773 = vcvt.s32.f32 %v1261
        %v1774 = vcvt.s32.f32 %v1262
        %v1775 = vcvt.s32.f32 %v1263
        %v1776 = vcvt.s32.f32 %v1264
        %v1777 = vcvt.s32.f32 %v1265
        %v1778 = vcvt.s32.f32 %v1266
        %v1779 = vcvt.s32.f32 %v1267
        %v1780 = vcvt.s32.f32 %v1268
        %v1781 = vcvt.s32.f32 %v1269
        %v1782 = vcvt.s32.f32 %v1270
        %v1783 = vcvt.s32.f32 %v1271
        %v1784 = vcvt.s32.f32 %v1272
        %v1785 = vcvt.s32.f32 %v1273
        %v1786 = vcvt.s32.f32 %v1274
        %v1787 = vcvt.s32.f32 %v1275
        %v1788 = vcvt.s32.f32 %v1276
        %v1789 = vcvt.s32.f32 %v1277
        %v1790 = vcvt.s32.f32 %v1278
        %v1791 = vcvt.s32.f32 %v1279
        %v1792 = vcvt.s32.f32 %v1280
        %v1793 = vcvt.s32.f32 %v1281
        %v1794 = vcvt.s32.f32 %v1282
        %v1795 = vcvt.s32.f32 %v1283
        %v1796 = vcvt.s32.f32 %v1284
        %v1797 = vcvt.s32.f32 %v1285
        %v1798 = vcvt.s32.f32 %v1286
        %v1799 = vcvt.s32.f32 %v1287
        %v1800 = vcvt.s32.f32 %v1288
        %v1801 = vcvt.s32.f32 %v1289
        %v1802 = vcvt.s32.f32 %v1290
        %v1803 = vcvt.s32.f32 %v1291
        %v1804 = vcvt.s32.f32 %v1292
        %v1805 = vcvt.s32.f32 %v1293
        %v1806 = vcvt.s32.f32 %v1294
        %v1807 = vcvt.s32.f32 %v1295
        %v1808 = vcvt.s32.f32 %v1296
        %v1809 = vcvt.s32.f32 %v1297
        %v1810 = vcvt.s32.f32 %v1298
        %v1811 = vcvt.s32.f32 %v1299
        %v1812 = vcvt.s32.f32 %v1300
        %v1813 = vcvt.s32.f32 %v1301
        %v1814 = vcvt.s32.f32 %v1302
        %v1815 = vcvt.s32.f32 %v1303
        %v1816 = vcvt.s32.f32 %v1304
        %v1817 = vcvt.s32.f32 %v1305
        %v1818 = vcvt.s32.f32 %v1306
        %v1819 = vcvt.s32.f32 %v1307
        %v1820 = vcvt.s32.f32 %v1308
        %v1821 = vcvt.s32.f32 %v1309
        %v1822 = vcvt.s32.f32 %v1310
        %v1823 = vcvt.s32.f32 %v1311
        %v1824 = vcvt.s32.f32 %v1312
        %v1825 = vcvt.s32.f32 %v1313
        %v1826 = vcvt.s32.f32 %v1314
        %v1827 = vcvt.s32.f32 %v1315
        %v1828 = vcvt.s32.f32 %v1316
        %v1829 = vcvt.s32.f32 %v1317
        %v1830 = vcvt.s32.f32 %v1318
        %v1831 = vcvt.s32.f32 %v1319
        %v1832 = vcvt.s32.f32 %v1320
        %v1833 = vcvt.s32.f32 %v1321
        %v1834 = vcvt.s32.f32 %v1322
        %v1835 = vcvt.s32.f32 %v1323
        %v1836 = vcvt.s32.f32 %v1324
        %v1837 = vcvt.s32.f32 %v1325
        %v1838 = vcvt.s32.f32 %v1326
        %v1839 = vcvt.s32.f32 %v1327
        %v1840 = vcvt.s32.f32 %v1328
        %v1841 = vcvt.s32.f32 %v1329
        %v1842 = vcvt.s32.f32 %v1330
        %v1843 = vcvt.s32.f32 %v1331
        %v1844 = vcvt.s32.f32 %v1332
        %v1845 = vcvt.s32.f32 %v1333
        %v1846 = vcvt.s32.f32 %v1334
        %v1847 = vcvt.s32.f32 %v1335
        %v1848 = vcvt.s32.f32 %v1336
        %v1849 = vcvt.s32.f32 %v1337
        %v1850 = vcvt.s32.f32 %v1338
        %v1851 = vcvt.s32.f32 %v1339
        %v1852 = vcvt.s32.f32 %v1340
        %v1853 = vcvt.s32.f32 %v1341
        %v1854 = vcvt.s32.f32 %v1342
        %v1855 = vcvt.s32.f32 %v1343
        %v1856 = vcvt.s32.f32 %v1344
        %v1857 = vcvt.s32.f32 %v1345
        %v1858 = vcvt.s32.f32 %v1346
        %v1859 = vcvt.s32.f32 %v1347
        %v1860 = vcvt.s32.f32 %v1348
        %v1861 = vcvt.s32.f32 %v1349
        %v1862 = vcvt.s32.f32 %v1350
        %v1863 = vcvt.s32.f32 %v1351
        %v1864 = vcvt.s32.f32 %v1352
        %v1865 = vcvt.s32.f32 %v1353
        %v1866 = vcvt.s32.f32 %v1354
        %v1867 = vcvt.s32.f32 %v1355
        %v1868 = vcvt.s32.f32 %v1356
        %v1869 = vcvt.s32.f32 %v1357
        %v1870 = vcvt.s32.f32 %v1358
        %v1871 = vcvt.s32.f32 %v1359
        %v1872 = vcvt.s32.f32 %v1360
        %v1873 = vcvt.s32.f32 %v1361
        %v1874 = vcvt.s32.f32 %v1362
        %v1875 = vcvt.s32.f32 %v1363
        %v1876 = vcvt.s32.f32 %v1364
        %v1877 = vcvt.s32.f32 %v1365
        %v1878 = vcvt.s32.f32 %v1366
        %v1879 = vcvt.s32.f32 %v1367
        %v1880 = vcvt.s32.f32 %v1368
        %v1881 = vcvt.s32.f32 %v1369
        %v1882 = vcvt.s32.f32 %v1370
        %v1883 = vcvt.s32.f32 %v1371
        %v1884 = vcvt.s32.f32 %v1372
        %v1885 = vcvt.s32.f32 %v1373
        %v1886 = vcvt.s32.f32 %v1374
        %v1887 = vcvt.s32.f32 %v1375
        %v1888 = vcvt.s32.f32 %v1376
        %v1889 = vcvt.s32.f32 %v1377
        %v1890 = vcvt.s32.f32 %v1378
        %v1891 = vcvt.s32.f32 %v1379
        %v1892 = vcvt.s32.f32 %v1380
        %v1893 = vcvt.s32.f32 %v1381
        %v1894 = vcvt.s32.f32 %v1382
        %v1895 = vcvt.s32.f32 %v1383
        %v1896 = vcvt.s32.f32 %v1384
        %v1897 = vcvt.s32.f32 %v1385
        %v1898 = vcvt.s32.f32 %v1386
        %v1899 = vcvt.s32.f32 %v1387
        %v1900 = vcvt.s32.f32 %v1388
        %v1901 = vcvt.s32.f32 %v1389
        %v1902 = vcvt.s32.f32 %v1390
        %v1903 = vcvt.s32.f32 %v1391
        %v1904 = vcvt.s32.f32 %v1392
        %v1905 = vcvt.s32.f32 %v1393
        %v1906 = vcvt.s32.f32 %v1394
        %v1907 = vcvt.s32.f32 %v1395
        %v1908 = vcvt.s32.f32 %v1396
        %v1909 = vcvt.s32.f32 %v1397
        %v1910 = vcvt.s32.f32 %v1398
        %v1911 = vcvt.s32.f32 %v1399
        %v1912 = vcvt.s32.f32 %v1400
        %v1913 = vcvt.s32.f32 %v1401
        %v1914 = vcvt.s32.f32 %v1402
        %v1915 = vcvt.s32.f32 %v1403
        %v1916 = vcvt.s32.f32 %v1404
        %v1917 = vcvt.s32.f32 %v1405
        %v1918 = vcvt.s32.f32 %v1406
        %v1919 = vcvt.s32.f32 %v1407
        %v1920 = vcvt.s32.f32 %v1408
        %v1921 = vcvt.s32.f32 %v1409
        %v1922 = vcvt.s32.f32 %v1410
        %v1923 = vcvt.s32.f32 %v1411
        %v1924 = vcvt.s32.f32 %v1412
        %v1925 = vcvt.s32.f32 %v1413
        %v1926 = vcvt.s32.f32 %v1414
        %v1927 = vcvt.s32.f32 %v1415
        %v1928 = vcvt.s32.f32 %v1416
        %v1929 = vcvt.s32.f32 %v1417
        %v1930 = vcvt.s32.f32 %v1418
        %v1931 = vcvt.s32.f32 %v1419
        %v1932 = vcvt.s32.f32 %v1420
        %v1933 = vcvt.s32.f32 %v1421
        %v1934 = vcvt.s32.f32 %v1422
        %v1935 = vcvt.s32.f32 %v1423
        %v1936 = vcvt.s32.f32 %v1424
        %v1937 = vcvt.s32.f32 %v1425
        %v1938 = vcvt.s32.f32 %v1426
        %v1939 = vcvt.s32.f32 %v1427
        %v1940 = vcvt.s32.f32 %v1428
        %v1941 = vcvt.s32.f32 %v1429
        %v1942 = vcvt.s32.f32 %v1430
        %v1943 = vcvt.s32.f32 %v1431
        %v1944 = vcvt.s32.f32 %v1432
        %v1945 = vcvt.s32.f32 %v1433
        %v1946 = vcvt.s32.f32 %v1434
        %v1947 = vcvt.s32.f32 %v1435
        %v1948 = vcvt.s32.f32 %v1436
        %v1949 = vcvt.s32.f32 %v1437
        %v1950 = vcvt.s32.f32 %v1438
        %v1951 = vcvt.s32.f32 %v1439
        %v1952 = vcvt.s32.f32 %v1440
        %v1953 = vcvt.s32.f32 %v1441
        %v1954 = vcvt.s32.f32 %v1442
        %v1955 = vcvt.s32.f32 %v1443
        %v1956 = vcvt.s32.f32 %v1444
        %v1957 = vcvt.s32.f32 %v1445
        %v1958 = vcvt.s32.f32 %v1446
        %v1959 = vcvt.s32.f32 %v1447
        %v1960 = vcvt.s32.f32 %v1448
        %v1961 = vcvt.s32.f32 %v1449
        %v1962 = vcvt.s32.f32 %v1450
        %v1963 = vcvt.s32.f32 %v1451
        %v1964 = vcvt.s32.f32 %v1452
        %v1965 = vcvt.s32.f32 %v1453
        %v1966 = vcvt.s32.f32 %v1454
        %v1967 = vcvt.s32.f32 %v1455
        %v1968 = vcvt.s32.f32 %v1456
        %v1969 = vcvt.s32.f32 %v1457
        %v1970 = vcvt.s32.f32 %v1458
        %v1971 = vcvt.s32.f32 %v1459
        %v1972 = vcvt.s32.f32 %v1460
        %v1973 = vcvt.s32.f32 %v1461
        %v1974 = vcvt.s32.f32 %v1462
        %v1975 = vcvt.s32.f32 %v1463
        %v1976 = vcvt.s32.f32 %v1464
        %v1977 = vcvt.s32.f32 %v1465
        %v1978 = vcvt.s32.f32 %v1466
        %v1979 = vcvt.s32.f32 %v1467
        %v1980 = vcvt.s32.f32 %v1468
        %v1981 = vcvt.s32.f32 %v1469
        %v1982 = vcvt.s32.f32 %v1470
        %v1983 = vcvt.s32.f32 %v1471
        %v1984 = vcvt.s32.f32 %v1472
        %v1985 = vcvt.s32.f32 %v1473
        %v1986 = vcvt.s32.f32 %v1474
        %v1987 = vcvt.s32.f32 %v1475
        %v1988 = vcvt.s32.f32 %v1476
        %v1989 = vcvt.s32.f32 %v1477
        %v1990 = vcvt.s32.f32 %v1478
        %v1991 = vcvt.s32.f32 %v1479
        %v1992 = vcvt.s32.f32 %v1480
        %v1993 = vcvt.s32.f32 %v1481
        %v1994 = vcvt.s32.f32 %v1482
        %v1995 = vcvt.s32.f32 %v1483
        %v1996 = vcvt.s32.f32 %v1484
        %v1997 = vcvt.s32.f32 %v1485
        %v1998 = vcvt.s32.f32 %v1486
        %v1999 = vcvt.s32.f32 %v1487
        %v2000 = vcvt.s32.f32 %v1488
        %v2001 = vcvt.s32.f32 %v1489
        %v2002 = vcvt.s32.f32 %v1490
        %v2003 = vcvt.s32.f32 %v1491
        %v2004 = vcvt.s32.f32 %v1492
        %v2005 = vcvt.s32.f32 %v1493
        %v2006 = vcvt.s32.f32 %v1494
        %v2007 = vcvt.s32.f32 %v1495
        %v2008 = vcvt.s32.f32 %v1496
        %v2009 = vcvt.s32.f32 %v1497
        %v2010 = vcvt.s32.f32 %v1498
        %v2011 = vcvt.s32.f32 %v1499
        %v2012 = vcvt.s32.f32 %v1500
        %v2013 = vcvt.s32.f32 %v1501
        %v2014 = vcvt.s32.f32 %v1502
        %v2015 = vcvt.s32.f32 %v1503
        %v2016 = vcvt.s32.f32 %v1504
        %v2017 = vcvt.s32.f32 %v1505
        %v2018 = vcvt.s32.f32 %v1506
        %v2019 = vcvt.s32.f32 %v1507
        %v2020 = vcvt.s32.f32 %v1508
        %v2021 = vcvt.s32.f32 %v1509
        %v2022 = vcvt.s32.f32 %v1510
        %v2023 = vcvt.s32.f32 %v1511
        %v2024 = vcvt.s32.f32 %v1512
        %v2025 = vcvt.s32.f32 %v1513
        %v2026 = vcvt.s32.f32 %v1514
        %v2027 = vcvt.s32.f32 %v1515
        %v2028 = vcvt.s32.f32 %v1516
        %v2029 = vcvt.s32.f32 %v1517
        %v2030 = vcvt.s32.f32 %v1518
        %v2031 = vcvt.s32.f32 %v1519
        %v2032 = vcvt.s32.f32 %v1520
        %v2033 = vcvt.s32.f32 %v1521
        %v2034 = vcvt.s32.f32 %v1522
        %v2035 = vcvt.s32.f32 %v1523
        %v2036 = vcvt.s32.f32 %v1524
        %v2037 = vcvt.s32.f32 %v1525
        %v2038 = vcvt.s32.f32 %v1526
        %v2039 = vcvt.s32.f32 %v1527
        %v2040 = vcvt.s32.f32 %v1528
        %v2041 = vcvt.s32.f32 %v1529
        %v2042 = vcvt.s32.f32 %v1530
        %v2043 = vcvt.s32.f32 %v1531
        %v2044 = vcvt.s32.f32 %v1532
        %v2045 = vcvt.s32.f32 %v1533
        %v2046 = vcvt.s32.f32 %v1534
        %v2047 = vcvt.s32.f32 %v1535
        %v2048 = vcvt.s32.f32 %v1536
        %v2049 = vcvt.s32.f32 %v1537
        %v2050 = vcvt.s32.f32 %v1538
        %v2051 = vcvt.s32.f32 %v1539
        %v2052 = vcvt.s32.f32 %v1540
        %v2053 = vcvt.s32.f32 %v1541
        %v2054 = vcvt.s32.f32 %v1542
        %v2055 = vcvt.s32.f32 %v1543
        %v2056 = vcvt.s32.f32 %v1544
        %v2057 = vcvt.s32.f32 %v1545
        %v2058 = vcvt.s32.f32 %v1546
        %v2059 = vcvt.s32.f32 %v1547
        %v2060 = vcvt.s32.f32 %v1548
        %v2061 = vcvt.s32.f32 %v1549
        %v2062 = vcvt.s32.f32 %v1550
        %v2063 = vcvt.s32.f32 %v1551
        %v2064 = vcvt.s32.f32 %v1552
        %v2065 = vcvt.s32.f32 %v1553
        %v2066 = vcvt.s32.f32 %v1554
        %v2067 = vcvt.s32.f32 %v1555
        %v2068 = vcvt.s32.f32 %v1556
        %v2069 = vcvt.s32.f32 %v1557
        %v2070 = vcvt.s32.f32 %v1558
        %v2071 = vcvt.s32.f32 %v1559
        %v2072 = vcvt.s32.f32 %v1560
        %v2073 = vcvt.s32.f32 %v1561
        %v2074 = vcvt.s32.f32 %v1562
        %v2075 = vcvt.s32.f32 %v1563
        %v2076 = vcvt.s32.f32 %v1564
        %v2077 = vcvt.s32.f32 %v1565
        %v2078 = vcvt.s32.f32 %v1566
        %v2079 = vcvt.s32.f32 %v1567
        %v2080 = vcvt.s32.f32 %v1568
        %v2081 = vcvt.s32.f32 %v1569
        %v2082 = vcvt.s32.f32 %v1570
        %v2083 = vcvt.s32.f32 %v1571
        %v2084 = vcvt.s32.f32 %v1572
        %v2085 = vcvt.s32.f32 %v1573
        %v2086 = vcvt.s32.f32 %v1574
        %v2087 = vcvt.s32.f32 %v1575
        %v2088 = vcvt.s32.f32 %v1576
        %v2089 = vcvt.s32.f32 %v1577
        %v2090 = vcvt.s32.f32 %v1578
        %v2091 = vcvt.s32.f32 %v1579
        %v2092 = vcvt.s32.f32 %v1580
        %v2093 = vcvt.s32.f32 %v1581
        %v2094 = vcvt.s32.f32 %v1582
        %v2095 = vcvt.s32.f32 %v1583
        %v2096 = vcvt.s32.f32 %v1584
        %v2097 = vcvt.s32.f32 %v1585
        %v2098 = vcvt.s32.f32 %v1586
        %v2099 = vcvt.s32.f32 %v1587
        %v2100 = vcvt.s32.f32 %v1588
        %v2101 = vcvt.s32.f32 %v1589
        %v2102 = vcvt.s32.f32 %v1590
        %v2103 = vcvt.s32.f32 %v1591
        %v2104 = vcvt.s32.f32 %v1592
        %v2105 = vcvt.s32.f32 %v1593
        %v2106 = vcvt.s32.f32 %v1594
        %v2107 = vcvt.s32.f32 %v1595
        %v2108 = vcvt.s32.f32 %v1596
        %v2109 = vcvt.s32.f32 %v1597
        %v2110 = vcvt.s32.f32 %v1598
        %v2111 = vcvt.s32.f32 %v1599
        %v2112 = vcvt.s32.f32 %v1600
        %v2113 = vcvt.s32.f32 %v1601
        %v2114 = vcvt.s32.f32 %v1602
        %v2115 = vcvt.s32.f32 %v1603
        %v2116 = vcvt.s32.f32 %v1604
        %v2117 = vcvt.s32.f32 %v1605
        %v2118 = vcvt.s32.f32 %v1606
        %v2119 = vcvt.s32.f32 %v1607
        %v2120 = vcvt.s32.f32 %v1608
        %v2121 = vcvt.s32.f32 %v1609
        %v2122 = vcvt.s32.f32 %v1610
        %v2123 = vcvt.s32.f32 %v1611
        %v2124 = vcvt.s32.f32 %v1612
        %v2125 = vcvt.s32.f32 %v1613
        %v2126 = vcvt.s32.f32 %v1614
        %v2127 = vcvt.s32.f32 %v1615
        %v2128 = vcvt.s32.f32 %v1616
        %v2129 = vcvt.s32.f32 %v1617
        %v2130 = vcvt.s32.f32 %v1618
        %v2131 = vcvt.s32.f32 %v1619
        %v2132 = vcvt.s32.f32 %v1620
        %v2133 = vcvt.s32.f32 %v1621
        %v2134 = vcvt.s32.f32 %v1622
        %v2135 = vcvt.s32.f32 %v1623
        %v2136 = vcvt.s32.f32 %v1624
        %v2137 = vcvt.s32.f32 %v1625
        %v2138 = vcvt.s32.f32 %v1626
        %v2139 = vcvt.s32.f32 %v1627
        %v2140 = vcvt.s32.f32 %v1628
        %v2141 = vcvt.s32.f32 %v1629
        %v2142 = vcvt.s32.f32 %v1630
        %v2143 = vcvt.s32.f32 %v1631
        %v2144 = vcvt.s32.f32 %v1632
        %v2145 = vcvt.s32.f32 %v1633
        %v2146 = vcvt.s32.f32 %v1634
        %v2147 = vcvt.s32.f32 %v1635
        %v2148 = vcvt.s32.f32 %v1636
        %v2149 = vcvt.s32.f32 %v1637
        %v2150 = vcvt.s32.f32 %v1638
        %v2151 = vcvt.s32.f32 %v1639
        %v2152 = vcvt.s32.f32 %v1640
        %v2153 = vcvt.s32.f32 %v1641
        %v2154 = vcvt.s32.f32 %v1642
        %v2155 = vcvt.s32.f32 %v1643
        %v2156 = vcvt.s32.f32 %v1644
        %v2157 = vcvt.s32.f32 %v1645
        %v2158 = vcvt.s32.f32 %v1646
        %v2159 = vcvt.s32.f32 %v1647
        %v2160 = vcvt.s32.f32 %v1648
        %v2161 = vcvt.s32.f32 %v1649
        %v2162 = vcvt.s32.f32 %v1650
        %v2163 = vcvt.s32.f32 %v1651
        %v2164 = vcvt.s32.f32 %v1652
        %v2165 = vcvt.s32.f32 %v1653
        %v2166 = vcvt.s32.f32 %v1654
        %v2167 = vcvt.s32.f32 %v1655
        %v2168 = vcvt.s32.f32 %v1656
        %v2169 = vcvt.s32.f32 %v1657
        %v2170 = vcvt.s32.f32 %v1658
        %v2171 = vcvt.s32.f32 %v1659
        %v2172 = vcvt.s32.f32 %v1660
        %v2173 = vcvt.s32.f32 %v1661
        %v2174 = vcvt.s32.f32 %v1662
        %v2175 = vcvt.s32.f32 %v1663
        %v2176 = vcvt.s32.f32 %v1664
        %v2177 = vcvt.s32.f32 %v1665
        %v2178 = vcvt.s32.f32 %v1666
        %v2179 = vcvt.s32.f32 %v1667
        %v2180 = vcvt.s32.f32 %v1668
        %v2181 = vcvt.s32.f32 %v1669
        %v2182 = vcvt.s32.f32 %v1670
        %v2183 = vcvt.s32.f32 %v1671
        %v2184 = vcvt.s32.f32 %v1672
        %v2185 = vcvt.s32.f32 %v1673
        %v2186 = vcvt.s32.f32 %v1674
        %v2187 = vcvt.s32.f32 %v1675
        %v2188 = vcvt.s32.f32 %v1676
        %v2189 = vcvt.s32.f32 %v1677
        %v2190 = vcvt.s32.f32 %v1678
        %v2191 = vcvt.s32.f32 %v1679
        %v2192 = vcvt.s32.f32 %v1680
        %v2193 = vcvt.s32.f32 %v1681
        %v2194 = vcvt.s32.f32 %v1682
        %v2195 = vcvt.s32.f32 %v1683
        %v2196 = vcvt.s32.f32 %v1684
        %v2197 = vcvt.s32.f32 %v1685
        %v2198 = vcvt.s32.f32 %v1686
        %v2199 = vcvt.s32.f32 %v1687
        %v2200 = vcvt.s32.f32 %v1688
        %v2201 = vcvt.s32.f32 %v1689
        %v2202 = vcvt.s32.f32 %v1690
        %v2203 = vcvt.s32.f32 %v1691
        %v2204 = vcvt.s32.f32 %v1692
        %v2205 = vcvt.s32.f32 %v1693
        %v2206 = vcvt.s32.f32 %v1694
        %v2207 = vcvt.s32.f32 %v1695
        %v2208 = vcvt.s32.f32 %v1696
        %v2209 = vcvt.s32.f32 %v1697
        %v2210 = vcvt.s32.f32 %v1698
        %v2211 = vcvt.s32.f32 %v1699
        %v2212 = vcvt.s32.f32 %v1700
        %v2213 = vcvt.s32.f32 %v1701
        %v2214 = vcvt.s32.f32 %v1702
        %v2215 = vcvt.s32.f32 %v1703
        %v2216 = vcvt.s32.f32 %v1704
        %v2217 = vcvt.s32.f32 %v1705
        %v2218 = vcvt.s32.f32 %v1706
        %v2219 = vcvt.s32.f32 %v1707
        %v2220 = vcvt.s32.f32 %v1708
        %v2221 = vcvt.s32.f32 %v1709
        %v2222 = vcvt.s32.f32 %v1710
        %v2223 = vcvt.s32.f32 %v1711
        %v2224 = vcvt.s32.f32 %v1712
        %v2225 = vcvt.s32.f32 %v1713
        %v2226 = vcvt.s32.f32 %v1714
        %v2227 = vcvt.s32.f32 %v1715
        %v2228 = vcvt.s32.f32 %v1716
        %v2229 = vcvt.s32.f32 %v1717
        %v2230 = vcvt.s32.f32 %v1718
        %v2231 = vcvt.s32.f32 %v1719
        %v2232 = vcvt.s32.f32 %v1720
        %v2233 = vcvt.s32.f32 %v1721
        %v2234 = vcvt.s32.f32 %v1722
        %v2235 = vcvt.s32.f32 %v1723
        %v2236 = vcvt.s32.f32 %v1724
        %v2237 = vcvt.s32.f32 %v1725
        %v2238 = vcvt.s32.f32 %v1726
        %v2239 = vcvt.s32.f32 %v1727
        %v2240 = vcvt.s32.f32 %v1728
        %v2241 = vcvt.s32.f32 %v1729
        %v2242 = vcvt.s32.f32 %v1730
        %v2243 = vcvt.s32.f32 %v1731
        %v2244 = vcvt.s32.f32 %v1732
        %v2245 = vcvt.s32.f32 %v1733
        %v2246 = vcvt.s32.f32 %v1734
        %v2247 = vcvt.s32.f32 %v1735
        %v2248 = vcvt.s32.f32 %v1736
        %v2249 = vcvt.s32.f32 %v1737
        %v2250 = vcvt.s32.f32 %v1738
        %v2251 = vcvt.s32.f32 %v1739
        %v2252 = vcvt.s32.f32 %v1740
        %v2253 = vcvt.s32.f32 %v1741
        %v2254 = vcvt.s32.f32 %v1742
        %v2255 = vcvt.s32.f32 %v1743
        %v2256 = vcvt.s32.f32 %v1744
        %v2257 = vcvt.s32.f32 %v1745
        %v2258 = vcvt.s32.f32 %v1746
        %v2259 = vld [vmem:[#allocation2] sm:$0xff]
        %v2260 = vld [vmem:[#allocation2 + $0x8] sm:$0xff]
        %v2261 = vld [vmem:[#allocation2 + $0x10] sm:$0xff]
        %v2262 = vld [vmem:[#allocation2 + $0x18] sm:$0xff]
        %v2263 = vld [vmem:[#allocation2 + $0x20] sm:$0xff]
        %v2264 = vld [vmem:[#allocation2 + $0x28] sm:$0xff]
        %v2265 = vld [vmem:[#allocation2 + $0x30] sm:$0xff]
        %v2266 = vld [vmem:[#allocation2 + $0x38] sm:$0xff]
        %v2267 = vld [vmem:[#allocation2 + $0x40] sm:$0xff]
        %v2268 = vld [vmem:[#allocation2 + $0x48] sm:$0xff]
        %v2269 = vld [vmem:[#allocation2 + $0x50] sm:$0xff]
        %v2270 = vld [vmem:[#allocation2 + $0x58] sm:$0xff]
        %v2271 = vld [vmem:[#allocation2 + $0x60] sm:$0xff]
        %v2272 = vld [vmem:[#allocation2 + $0x68] sm:$0xff]
        %v2273 = vld [vmem:[#allocation2 + $0x70] sm:$0xff]
        %v2274 = vld [vmem:[#allocation2 + $0x78] sm:$0xff]
        %v2275 = vld [vmem:[#allocation6] sm:$0xff]
        %v2276 = vld [vmem:[#allocation6 + $0x8] sm:$0xff]
        %2277 = vmatprep.subr.mxu0 %v1748
        %2278 = vmatpush1.xpose.msra.mxu0 %v1747
        %2279 = vmatprep.subr.mxu0 %v1750
        %2280 = vmatpush1.xpose.msra.mxu0 %v1749
        %2281 = vmatprep.subr.mxu0 %v1752
        %2282 = vmatpush1.xpose.msra.mxu0 %v1751
        %2283 = vmatprep.subr.mxu0 %v1754
        %2284 = vmatpush1.xpose.msra.mxu0 %v1753
        %2285 = vmatprep.subr.mxu0 %v1756
        %2286 = vmatpush1.xpose.msra.mxu0 %v1755
        %2287 = vmatprep.subr.mxu0 %v1758
        %2288 = vmatpush1.xpose.msra.mxu0 %v1757
        %2289 = vmatprep.subr.mxu0 %v1760
        %2290 = vmatpush1.xpose.msra.mxu0 %v1759
        %2291 = vmatprep.subr.mxu0 %v1762
        %2292 = vmatpush1.xpose.msra.mxu0 %v1761
        %2293 = vmatprep.subr.mxu0 %v1764
        %2294 = vmatpush1.xpose.msra.mxu0 %v1763
        %2295 = vmatprep.subr.mxu0 %v1766
        %2296 = vmatpush1.xpose.msra.mxu0 %v1765
        %2297 = vmatprep.subr.mxu0 %v1768
        %2298 = vmatpush1.xpose.msra.mxu0 %v1767
        %2299 = vmatprep.subr.mxu0 %v1770
        %2300 = vmatpush1.xpose.msra.mxu0 %v1769
        %2301 = vmatprep.subr.mxu0 %v1772
        %2302 = vmatpush1.xpose.msra.mxu0 %v1771
        %2303 = vmatprep.subr.mxu0 %v1774
        %2304 = vmatpush1.xpose.msra.mxu0 %v1773
        %2305 = vmatprep.subr.mxu0 %v1776
        %2306 = vmatpush1.xpose.msra.mxu0 %v1775
        %2307 = vmatprep.subr.mxu0 %v1778
        %2308 = vmatpush1.xpose.msra.mxu0 %v1777
        %2309 = vmatprep.subr.mxu0 %v1780
        %2310 = vmatpush1.xpose.msra.mxu0 %v1779
        %2311 = vmatprep.subr.mxu0 %v1782
        %2312 = vmatpush1.xpose.msra.mxu0 %v1781
        %2313 = vmatprep.subr.mxu0 %v1784
        %2314 = vmatpush1.xpose.msra.mxu0 %v1783
        %2315 = vmatprep.subr.mxu0 %v1786
        %2316 = vmatpush1.xpose.msra.mxu0 %v1785
        %2317 = vmatprep.subr.mxu0 %v1788
        %2318 = vmatpush1.xpose.msra.mxu0 %v1787
        %2319 = vmatprep.subr.mxu0 %v1790
        %2320 = vmatpush1.xpose.msra.mxu0 %v1789
        %2321 = vmatprep.subr.mxu0 %v1792
        %2322 = vmatpush1.xpose.msra.mxu0 %v1791
        %2323 = vmatprep.subr.mxu0 %v1794
        %2324 = vmatpush1.xpose.msra.mxu0 %v1793
        %2325 = vmatprep.subr.mxu0 %v1796
        %2326 = vmatpush1.xpose.msra.mxu0 %v1795
        %2327 = vmatprep.subr.mxu0 %v1798
        %2328 = vmatpush1.xpose.msra.mxu0 %v1797
        %2329 = vmatprep.subr.mxu0 %v1800
        %2330 = vmatpush1.xpose.msra.mxu0 %v1799
        %2331 = vmatprep.subr.mxu0 %v1802
        %2332 = vmatpush1.xpose.msra.mxu0 %v1801
        %2333 = vmatprep.subr.mxu0 %v1804
        %2334 = vmatpush1.xpose.msra.mxu0 %v1803
        %2335 = vmatprep.subr.mxu0 %v1806
        %2336 = vmatpush1.xpose.msra.mxu0 %v1805
        %2337 = vmatprep.subr.mxu0 %v1808
        %2338 = vmatpush1.xpose.msra.mxu0 %v1807
        %2339 = vmatprep.subr.mxu0 %v1810
        %2340 = vmatpush1.xpose.msra.mxu0 %v1809
        %2341 = vmatprep.mubr.f32.mxu0 %v2276
        %2342 = vmatmul.mubr.f32.gmra.mrb[0].mxu0 %v2275
        %v2343 = vpop.f32.mrb[0].mxu0
        %v2344 = vadd.f32 0.0, %v2343
        %v2345 = vpop.f32.mrb[0].mxu0
        %v2346 = vadd.f32 0.0, %v2345
        %2347 = vdwg.mxu0
        %2348 = vmatprep.subr.mxu0 %v1812
        %2349 = vmatpush1.xpose.msra.mxu0 %v1811
        %2350 = vmatprep.subr.mxu0 %v1814
        %2351 = vmatpush1.xpose.msra.mxu0 %v1813
        %2352 = vmatprep.subr.mxu0 %v1816
        %2353 = vmatpush1.xpose.msra.mxu0 %v1815
        %2354 = vmatprep.subr.mxu0 %v1818
        %2355 = vmatpush1.xpose.msra.mxu0 %v1817
        %2356 = vmatprep.subr.mxu0 %v1820
        %2357 = vmatpush1.xpose.msra.mxu0 %v1819
        %2358 = vmatprep.subr.mxu0 %v1822
        %2359 = vmatpush1.xpose.msra.mxu0 %v1821
        %2360 = vmatprep.subr.mxu0 %v1824
        %2361 = vmatpush1.xpose.msra.mxu0 %v1823
        %2362 = vmatprep.subr.mxu0 %v1826
        %2363 = vmatpush1.xpose.msra.mxu0 %v1825
        %2364 = vmatprep.subr.mxu0 %v1828
        %2365 = vmatpush1.xpose.msra.mxu0 %v1827
        %2366 = vmatprep.subr.mxu0 %v1830
        %2367 = vmatpush1.xpose.msra.mxu0 %v1829
        %2368 = vmatprep.subr.mxu0 %v1832
        %2369 = vmatpush1.xpose.msra.mxu0 %v1831
        %2370 = vmatprep.subr.mxu0 %v1834
        %2371 = vmatpush1.xpose.msra.mxu0 %v1833
        %2372 = vmatprep.subr.mxu0 %v1836
        %2373 = vmatpush1.xpose.msra.mxu0 %v1835
        %2374 = vmatprep.subr.mxu0 %v1838
        %2375 = vmatpush1.xpose.msra.mxu0 %v1837
        %2376 = vmatprep.subr.mxu0 %v1840
        %2377 = vmatpush1.xpose.msra.mxu0 %v1839
        %2378 = vmatprep.subr.mxu0 %v1842
        %2379 = vmatpush1.xpose.msra.mxu0 %v1841
        %2380 = vmatprep.subr.mxu0 %v1844
        %2381 = vmatpush1.xpose.msra.mxu0 %v1843
        %2382 = vmatprep.subr.mxu0 %v1846
        %2383 = vmatpush1.xpose.msra.mxu0 %v1845
        %2384 = vmatprep.subr.mxu0 %v1848
        %2385 = vmatpush1.xpose.msra.mxu0 %v1847
        %2386 = vmatprep.subr.mxu0 %v1850
        %2387 = vmatpush1.xpose.msra.mxu0 %v1849
        %2388 = vmatprep.subr.mxu0 %v1852
        %2389 = vmatpush1.xpose.msra.mxu0 %v1851
        %2390 = vmatprep.subr.mxu0 %v1854
        %2391 = vmatpush1.xpose.msra.mxu0 %v1853
        %2392 = vmatprep.subr.mxu0 %v1856
        %2393 = vmatpush1.xpose.msra.mxu0 %v1855
        %2394 = vmatprep.subr.mxu0 %v1858
        %2395 = vmatpush1.xpose.msra.mxu0 %v1857
        %2396 = vmatprep.subr.mxu0 %v1860
        %2397 = vmatpush1.xpose.msra.mxu0 %v1859
        %2398 = vmatprep.subr.mxu0 %v1862
        %2399 = vmatpush1.xpose.msra.mxu0 %v1861
        %2400 = vmatprep.subr.mxu0 %v1864
        %2401 = vmatpush1.xpose.msra.mxu0 %v1863
        %2402 = vmatprep.subr.mxu0 %v1866
        %2403 = vmatpush1.xpose.msra.mxu0 %v1865
        %2404 = vmatprep.subr.mxu0 %v1868
        %2405 = vmatpush1.xpose.msra.mxu0 %v1867
        %2406 = vmatprep.subr.mxu0 %v1870
        %2407 = vmatpush1.xpose.msra.mxu0 %v1869
        %2408 = vmatprep.subr.mxu0 %v1872
        %2409 = vmatpush1.xpose.msra.mxu0 %v1871
        %2410 = vmatprep.subr.mxu0 %v1874
        %2411 = vmatpush1.xpose.msra.mxu0 %v1873
        %2412 = vmatprep.mubr.f32.mxu0 %v2276
        %2413 = vmatmul.mubr.f32.gmra.mrb[0].mxu0 %v2275
        %v2414 = vpop.f32.mrb[0].mxu0
        %v2415 = vadd.f32 0.0, %v2414
        %v2416 = vpop.f32.mrb[0].mxu0
        %v2417 = vadd.f32 0.0, %v2416
        %2418 = vdwg.mxu0
        %2419 = vmatprep.subr.mxu0 %v1876
        %2420 = vmatpush1.xpose.msra.mxu0 %v1875
        %2421 = vmatprep.subr.mxu0 %v1878
        %2422 = vmatpush1.xpose.msra.mxu0 %v1877
        %2423 = vmatprep.subr.mxu0 %v1880
        %2424 = vmatpush1.xpose.msra.mxu0 %v1879
        %2425 = vmatprep.subr.mxu0 %v1882
        %2426 = vmatpush1.xpose.msra.mxu0 %v1881
        %2427 = vmatprep.subr.mxu0 %v1884
        %2428 = vmatpush1.xpose.msra.mxu0 %v1883
        %2429 = vmatprep.subr.mxu0 %v1886
        %2430 = vmatpush1.xpose.msra.mxu0 %v1885
        %2431 = vmatprep.subr.mxu0 %v1888
        %2432 = vmatpush1.xpose.msra.mxu0 %v1887
        %2433 = vmatprep.subr.mxu0 %v1890
        %2434 = vmatpush1.xpose.msra.mxu0 %v1889
        %2435 = vmatprep.subr.mxu0 %v1892
        %2436 = vmatpush1.xpose.msra.mxu0 %v1891
        %2437 = vmatprep.subr.mxu0 %v1894
        %2438 = vmatpush1.xpose.msra.mxu0 %v1893
        %2439 = vmatprep.subr.mxu0 %v1896
        %2440 = vmatpush1.xpose.msra.mxu0 %v1895
        %2441 = vmatprep.subr.mxu0 %v1898
        %2442 = vmatpush1.xpose.msra.mxu0 %v1897
        %2443 = vmatprep.subr.mxu0 %v1900
        %2444 = vmatpush1.xpose.msra.mxu0 %v1899
        %2445 = vmatprep.subr.mxu0 %v1902
        %2446 = vmatpush1.xpose.msra.mxu0 %v1901
        %2447 = vmatprep.subr.mxu0 %v1904
        %2448 = vmatpush1.xpose.msra.mxu0 %v1903
        %2449 = vmatprep.subr.mxu0 %v1906
        %2450 = vmatpush1.xpose.msra.mxu0 %v1905
        %2451 = vmatprep.subr.mxu0 %v1908
        %2452 = vmatpush1.xpose.msra.mxu0 %v1907
        %2453 = vmatprep.subr.mxu0 %v1910
        %2454 = vmatpush1.xpose.msra.mxu0 %v1909
        %2455 = vmatprep.subr.mxu0 %v1912
        %2456 = vmatpush1.xpose.msra.mxu0 %v1911
        %2457 = vmatprep.subr.mxu0 %v1914
        %2458 = vmatpush1.xpose.msra.mxu0 %v1913
        %2459 = vmatprep.subr.mxu0 %v1916
        %2460 = vmatpush1.xpose.msra.mxu0 %v1915
        %2461 = vmatprep.subr.mxu0 %v1918
        %2462 = vmatpush1.xpose.msra.mxu0 %v1917
        %2463 = vmatprep.subr.mxu0 %v1920
        %2464 = vmatpush1.xpose.msra.mxu0 %v1919
        %2465 = vmatprep.subr.mxu0 %v1922
        %2466 = vmatpush1.xpose.msra.mxu0 %v1921
        %2467 = vmatprep.subr.mxu0 %v1924
        %2468 = vmatpush1.xpose.msra.mxu0 %v1923
        %2469 = vmatprep.subr.mxu0 %v1926
        %2470 = vmatpush1.xpose.msra.mxu0 %v1925
        %2471 = vmatprep.subr.mxu0 %v1928
        %2472 = vmatpush1.xpose.msra.mxu0 %v1927
        %2473 = vmatprep.subr.mxu0 %v1930
        %2474 = vmatpush1.xpose.msra.mxu0 %v1929
        %2475 = vmatprep.subr.mxu0 %v1932
        %2476 = vmatpush1.xpose.msra.mxu0 %v1931
        %2477 = vmatprep.subr.mxu0 %v1934
        %2478 = vmatpush1.xpose.msra.mxu0 %v1933
        %2479 = vmatprep.subr.mxu0 %v1936
        %2480 = vmatpush1.xpose.msra.mxu0 %v1935
        %2481 = vmatprep.subr.mxu0 %v1938
        %2482 = vmatpush1.xpose.msra.mxu0 %v1937
        %2483 = vmatprep.mubr.f32.mxu0 %v2276
        %2484 = vmatmul.mubr.f32.gmra.mrb[0].mxu0 %v2275
        %v2485 = vpop.f32.mrb[0].mxu0
        %v2486 = vadd.f32 0.0, %v2485
        %v2487 = vpop.f32.mrb[0].mxu0
        %v2488 = vadd.f32 0.0, %v2487
        %2489 = vdwg.mxu0
        %2490 = vmatprep.subr.mxu0 %v1940
        %2491 = vmatpush1.xpose.msra.mxu0 %v1939
        %2492 = vmatprep.subr.mxu0 %v1942
        %2493 = vmatpush1.xpose.msra.mxu0 %v1941
        %2494 = vmatprep.subr.mxu0 %v1944
        %2495 = vmatpush1.xpose.msra.mxu0 %v1943
        %2496 = vmatprep.subr.mxu0 %v1946
        %2497 = vmatpush1.xpose.msra.mxu0 %v1945
        %2498 = vmatprep.subr.mxu0 %v1948
        %2499 = vmatpush1.xpose.msra.mxu0 %v1947
        %2500 = vmatprep.subr.mxu0 %v1950
        %2501 = vmatpush1.xpose.msra.mxu0 %v1949
        %2502 = vmatprep.subr.mxu0 %v1952
        %2503 = vmatpush1.xpose.msra.mxu0 %v1951
        %2504 = vmatprep.subr.mxu0 %v1954
        %2505 = vmatpush1.xpose.msra.mxu0 %v1953
        %2506 = vmatprep.subr.mxu0 %v1956
        %2507 = vmatpush1.xpose.msra.mxu0 %v1955
        %2508 = vmatprep.subr.mxu0 %v1958
        %2509 = vmatpush1.xpose.msra.mxu0 %v1957
        %2510 = vmatprep.subr.mxu0 %v1960
        %2511 = vmatpush1.xpose.msra.mxu0 %v1959
        %2512 = vmatprep.subr.mxu0 %v1962
        %2513 = vmatpush1.xpose.msra.mxu0 %v1961
        %2514 = vmatprep.subr.mxu0 %v1964
        %2515 = vmatpush1.xpose.msra.mxu0 %v1963
        %2516 = vmatprep.subr.mxu0 %v1966
        %2517 = vmatpush1.xpose.msra.mxu0 %v1965
        %2518 = vmatprep.subr.mxu0 %v1968
        %2519 = vmatpush1.xpose.msra.mxu0 %v1967
        %2520 = vmatprep.subr.mxu0 %v1970
        %2521 = vmatpush1.xpose.msra.mxu0 %v1969
        %2522 = vmatprep.subr.mxu0 %v1972
        %2523 = vmatpush1.xpose.msra.mxu0 %v1971
        %2524 = vmatprep.subr.mxu0 %v1974
        %2525 = vmatpush1.xpose.msra.mxu0 %v1973
        %2526 = vmatprep.subr.mxu0 %v1976
        %2527 = vmatpush1.xpose.msra.mxu0 %v1975
        %2528 = vmatprep.subr.mxu0 %v1978
        %2529 = vmatpush1.xpose.msra.mxu0 %v1977
        %2530 = vmatprep.subr.mxu0 %v1980
        %2531 = vmatpush1.xpose.msra.mxu0 %v1979
        %2532 = vmatprep.subr.mxu0 %v1982
        %2533 = vmatpush1.xpose.msra.mxu0 %v1981
        %2534 = vmatprep.subr.mxu0 %v1984
        %2535 = vmatpush1.xpose.msra.mxu0 %v1983
        %2536 = vmatprep.subr.mxu0 %v1986
        %2537 = vmatpush1.xpose.msra.mxu0 %v1985
        %2538 = vmatprep.subr.mxu0 %v1988
        %2539 = vmatpush1.xpose.msra.mxu0 %v1987
        %2540 = vmatprep.subr.mxu0 %v1990
        %2541 = vmatpush1.xpose.msra.mxu0 %v1989
        %2542 = vmatprep.subr.mxu0 %v1992
        %2543 = vmatpush1.xpose.msra.mxu0 %v1991
        %2544 = vmatprep.subr.mxu0 %v1994
        %2545 = vmatpush1.xpose.msra.mxu0 %v1993
        %2546 = vmatprep.subr.mxu0 %v1996
        %2547 = vmatpush1.xpose.msra.mxu0 %v1995
        %2548 = vmatprep.subr.mxu0 %v1998
        %2549 = vmatpush1.xpose.msra.mxu0 %v1997
        %2550 = vmatprep.subr.mxu0 %v2000
        %2551 = vmatpush1.xpose.msra.mxu0 %v1999
        %2552 = vmatprep.subr.mxu0 %v2002
        %2553 = vmatpush1.xpose.msra.mxu0 %v2001
        %2554 = vmatprep.mubr.f32.mxu0 %v2276
        %2555 = vmatmul.mubr.f32.gmra.mrb[0].mxu0 %v2275
        %v2556 = vpop.f32.mrb[0].mxu0
        %v2557 = vadd.f32 0.0, %v2556
        %v2558 = vpop.f32.mrb[0].mxu0
        %v2559 = vadd.f32 0.0, %v2558
        %2560 = vdwg.mxu0
        %2561 = vmatprep.subr.mxu0 %v2004
        %2562 = vmatpush1.xpose.msra.mxu0 %v2003
        %2563 = vmatprep.subr.mxu0 %v2006
        %2564 = vmatpush1.xpose.msra.mxu0 %v2005
        %2565 = vmatprep.subr.mxu0 %v2008
        %2566 = vmatpush1.xpose.msra.mxu0 %v2007
        %2567 = vmatprep.subr.mxu0 %v2010
        %2568 = vmatpush1.xpose.msra.mxu0 %v2009
        %2569 = vmatprep.subr.mxu0 %v2012
        %2570 = vmatpush1.xpose.msra.mxu0 %v2011
        %2571 = vmatprep.subr.mxu0 %v2014
        %2572 = vmatpush1.xpose.msra.mxu0 %v2013
        %2573 = vmatprep.subr.mxu0 %v2016
        %2574 = vmatpush1.xpose.msra.mxu0 %v2015
        %2575 = vmatprep.subr.mxu0 %v2018
        %2576 = vmatpush1.xpose.msra.mxu0 %v2017
        %2577 = vmatprep.subr.mxu0 %v2020
        %2578 = vmatpush1.xpose.msra.mxu0 %v2019
        %2579 = vmatprep.subr.mxu0 %v2022
        %2580 = vmatpush1.xpose.msra.mxu0 %v2021
        %2581 = vmatprep.subr.mxu0 %v2024
        %2582 = vmatpush1.xpose.msra.mxu0 %v2023
        %2583 = vmatprep.subr.mxu0 %v2026
        %2584 = vmatpush1.xpose.msra.mxu0 %v2025
        %2585 = vmatprep.subr.mxu0 %v2028
        %2586 = vmatpush1.xpose.msra.mxu0 %v2027
        %2587 = vmatprep.subr.mxu0 %v2030
        %2588 = vmatpush1.xpose.msra.mxu0 %v2029
        %2589 = vmatprep.subr.mxu0 %v2032
        %2590 = vmatpush1.xpose.msra.mxu0 %v2031
        %2591 = vmatprep.subr.mxu0 %v2034
        %2592 = vmatpush1.xpose.msra.mxu0 %v2033
        %2593 = vmatprep.subr.mxu0 %v2036
        %2594 = vmatpush1.xpose.msra.mxu0 %v2035
        %2595 = vmatprep.subr.mxu0 %v2038
        %2596 = vmatpush1.xpose.msra.mxu0 %v2037
        %2597 = vmatprep.subr.mxu0 %v2040
        %2598 = vmatpush1.xpose.msra.mxu0 %v2039
        %2599 = vmatprep.subr.mxu0 %v2042
        %2600 = vmatpush1.xpose.msra.mxu0 %v2041
        %2601 = vmatprep.subr.mxu0 %v2044
        %2602 = vmatpush1.xpose.msra.mxu0 %v2043
        %2603 = vmatprep.subr.mxu0 %v2046
        %2604 = vmatpush1.xpose.msra.mxu0 %v2045
        %2605 = vmatprep.subr.mxu0 %v2048
        %2606 = vmatpush1.xpose.msra.mxu0 %v2047
        %2607 = vmatprep.subr.mxu0 %v2050
        %2608 = vmatpush1.xpose.msra.mxu0 %v2049
        %2609 = vmatprep.subr.mxu0 %v2052
        %2610 = vmatpush1.xpose.msra.mxu0 %v2051
        %2611 = vmatprep.subr.mxu0 %v2054
        %2612 = vmatpush1.xpose.msra.mxu0 %v2053
        %2613 = vmatprep.subr.mxu0 %v2056
        %2614 = vmatpush1.xpose.msra.mxu0 %v2055
        %2615 = vmatprep.subr.mxu0 %v2058
        %2616 = vmatpush1.xpose.msra.mxu0 %v2057
        %2617 = vmatprep.subr.mxu0 %v2060
        %2618 = vmatpush1.xpose.msra.mxu0 %v2059
        %2619 = vmatprep.subr.mxu0 %v2062
        %2620 = vmatpush1.xpose.msra.mxu0 %v2061
        %2621 = vmatprep.subr.mxu0 %v2064
        %2622 = vmatpush1.xpose.msra.mxu0 %v2063
        %2623 = vmatprep.subr.mxu0 %v2066
        %2624 = vmatpush1.xpose.msra.mxu0 %v2065
        %2625 = vmatprep.mubr.f32.mxu0 %v2276
        %2626 = vmatmul.mubr.f32.gmra.mrb[0].mxu0 %v2275
        %v2627 = vpop.f32.mrb[0].mxu0
        %v2628 = vadd.f32 0.0, %v2627
        %v2629 = vpop.f32.mrb[0].mxu0
        %v2630 = vadd.f32 0.0, %v2629
        %2631 = vdwg.mxu0
        %2632 = vmatprep.subr.mxu0 %v2068
        %2633 = vmatpush1.xpose.msra.mxu0 %v2067
        %2634 = vmatprep.subr.mxu0 %v2070
        %2635 = vmatpush1.xpose.msra.mxu0 %v2069
        %2636 = vmatprep.subr.mxu0 %v2072
        %2637 = vmatpush1.xpose.msra.mxu0 %v2071
        %2638 = vmatprep.subr.mxu0 %v2074
        %2639 = vmatpush1.xpose.msra.mxu0 %v2073
        %2640 = vmatprep.subr.mxu0 %v2076
        %2641 = vmatpush1.xpose.msra.mxu0 %v2075
        %2642 = vmatprep.subr.mxu0 %v2078
        %2643 = vmatpush1.xpose.msra.mxu0 %v2077
        %2644 = vmatprep.subr.mxu0 %v2080
        %2645 = vmatpush1.xpose.msra.mxu0 %v2079
        %2646 = vmatprep.subr.mxu0 %v2082
        %2647 = vmatpush1.xpose.msra.mxu0 %v2081
        %2648 = vmatprep.subr.mxu0 %v2084
        %2649 = vmatpush1.xpose.msra.mxu0 %v2083
        %2650 = vmatprep.subr.mxu0 %v2086
        %2651 = vmatpush1.xpose.msra.mxu0 %v2085
        %2652 = vmatprep.subr.mxu0 %v2088
        %2653 = vmatpush1.xpose.msra.mxu0 %v2087
        %2654 = vmatprep.subr.mxu0 %v2090
        %2655 = vmatpush1.xpose.msra.mxu0 %v2089
        %2656 = vmatprep.subr.mxu0 %v2092
        %2657 = vmatpush1.xpose.msra.mxu0 %v2091
        %2658 = vmatprep.subr.mxu0 %v2094
        %2659 = vmatpush1.xpose.msra.mxu0 %v2093
        %2660 = vmatprep.subr.mxu0 %v2096
        %2661 = vmatpush1.xpose.msra.mxu0 %v2095
        %2662 = vmatprep.subr.mxu0 %v2098
        %2663 = vmatpush1.xpose.msra.mxu0 %v2097
        %2664 = vmatprep.subr.mxu0 %v2100
        %2665 = vmatpush1.xpose.msra.mxu0 %v2099
        %2666 = vmatprep.subr.mxu0 %v2102
        %2667 = vmatpush1.xpose.msra.mxu0 %v2101
        %2668 = vmatprep.subr.mxu0 %v2104
        %2669 = vmatpush1.xpose.msra.mxu0 %v2103
        %2670 = vmatprep.subr.mxu0 %v2106
        %2671 = vmatpush1.xpose.msra.mxu0 %v2105
        %2672 = vmatprep.subr.mxu0 %v2108
        %2673 = vmatpush1.xpose.msra.mxu0 %v2107
        %2674 = vmatprep.subr.mxu0 %v2110
        %2675 = vmatpush1.xpose.msra.mxu0 %v2109
        %2676 = vmatprep.subr.mxu0 %v2112
        %2677 = vmatpush1.xpose.msra.mxu0 %v2111
        %2678 = vmatprep.subr.mxu0 %v2114
        %2679 = vmatpush1.xpose.msra.mxu0 %v2113
        %2680 = vmatprep.subr.mxu0 %v2116
        %2681 = vmatpush1.xpose.msra.mxu0 %v2115
        %2682 = vmatprep.subr.mxu0 %v2118
        %2683 = vmatpush1.xpose.msra.mxu0 %v2117
        %2684 = vmatprep.subr.mxu0 %v2120
        %2685 = vmatpush1.xpose.msra.mxu0 %v2119
        %2686 = vmatprep.subr.mxu0 %v2122
        %2687 = vmatpush1.xpose.msra.mxu0 %v2121
        %2688 = vmatprep.subr.mxu0 %v2124
        %2689 = vmatpush1.xpose.msra.mxu0 %v2123
        %2690 = vmatprep.subr.mxu0 %v2126
        %2691 = vmatpush1.xpose.msra.mxu0 %v2125
        %2692 = vmatprep.subr.mxu0 %v2128
        %2693 = vmatpush1.xpose.msra.mxu0 %v2127
        %2694 = vmatprep.subr.mxu0 %v2130
        %2695 = vmatpush1.xpose.msra.mxu0 %v2129
        %2696 = vmatprep.mubr.f32.mxu0 %v2276
        %2697 = vmatmul.mubr.f32.gmra.mrb[0].mxu0 %v2275
        %v2698 = vpop.f32.mrb[0].mxu0
        %v2699 = vadd.f32 0.0, %v2698
        %v2700 = vpop.f32.mrb[0].mxu0
        %v2701 = vadd.f32 0.0, %v2700
        %2702 = vdwg.mxu0
        %2703 = vmatprep.subr.mxu0 %v2132
        %2704 = vmatpush1.xpose.msra.mxu0 %v2131
        %2705 = vmatprep.subr.mxu0 %v2134
        %2706 = vmatpush1.xpose.msra.mxu0 %v2133
        %2707 = vmatprep.subr.mxu0 %v2136
        %2708 = vmatpush1.xpose.msra.mxu0 %v2135
        %2709 = vmatprep.subr.mxu0 %v2138
        %2710 = vmatpush1.xpose.msra.mxu0 %v2137
        %2711 = vmatprep.subr.mxu0 %v2140
        %2712 = vmatpush1.xpose.msra.mxu0 %v2139
        %2713 = vmatprep.subr.mxu0 %v2142
        %2714 = vmatpush1.xpose.msra.mxu0 %v2141
        %2715 = vmatprep.subr.mxu0 %v2144
        %2716 = vmatpush1.xpose.msra.mxu0 %v2143
        %2717 = vmatprep.subr.mxu0 %v2146
        %2718 = vmatpush1.xpose.msra.mxu0 %v2145
        %2719 = vmatprep.subr.mxu0 %v2148
        %2720 = vmatpush1.xpose.msra.mxu0 %v2147
        %2721 = vmatprep.subr.mxu0 %v2150
        %2722 = vmatpush1.xpose.msra.mxu0 %v2149
        %2723 = vmatprep.subr.mxu0 %v2152
        %2724 = vmatpush1.xpose.msra.mxu0 %v2151
        %2725 = vmatprep.subr.mxu0 %v2154
        %2726 = vmatpush1.xpose.msra.mxu0 %v2153
        %2727 = vmatprep.subr.mxu0 %v2156
        %2728 = vmatpush1.xpose.msra.mxu0 %v2155
        %2729 = vmatprep.subr.mxu0 %v2158
        %2730 = vmatpush1.xpose.msra.mxu0 %v2157
        %2731 = vmatprep.subr.mxu0 %v2160
        %2732 = vmatpush1.xpose.msra.mxu0 %v2159
        %2733 = vmatprep.subr.mxu0 %v2162
        %2734 = vmatpush1.xpose.msra.mxu0 %v2161
        %2735 = vmatprep.subr.mxu0 %v2164
        %2736 = vmatpush1.xpose.msra.mxu0 %v2163
        %2737 = vmatprep.subr.mxu0 %v2166
        %2738 = vmatpush1.xpose.msra.mxu0 %v2165
        %2739 = vmatprep.subr.mxu0 %v2168
        %2740 = vmatpush1.xpose.msra.mxu0 %v2167
        %2741 = vmatprep.subr.mxu0 %v2170
        %2742 = vmatpush1.xpose.msra.mxu0 %v2169
        %2743 = vmatprep.subr.mxu0 %v2172
        %2744 = vmatpush1.xpose.msra.mxu0 %v2171
        %2745 = vmatprep.subr.mxu0 %v2174
        %2746 = vmatpush1.xpose.msra.mxu0 %v2173
        %2747 = vmatprep.subr.mxu0 %v2176
        %2748 = vmatpush1.xpose.msra.mxu0 %v2175
        %2749 = vmatprep.subr.mxu0 %v2178
        %2750 = vmatpush1.xpose.msra.mxu0 %v2177
        %2751 = vmatprep.subr.mxu0 %v2180
        %2752 = vmatpush1.xpose.msra.mxu0 %v2179
        %2753 = vmatprep.subr.mxu0 %v2182
        %2754 = vmatpush1.xpose.msra.mxu0 %v2181
        %2755 = vmatprep.subr.mxu0 %v2184
        %2756 = vmatpush1.xpose.msra.mxu0 %v2183
        %2757 = vmatprep.subr.mxu0 %v2186
        %2758 = vmatpush1.xpose.msra.mxu0 %v2185
        %2759 = vmatprep.subr.mxu0 %v2188
        %2760 = vmatpush1.xpose.msra.mxu0 %v2187
        %2761 = vmatprep.subr.mxu0 %v2190
        %2762 = vmatpush1.xpose.msra.mxu0 %v2189
        %2763 = vmatprep.subr.mxu0 %v2192
        %2764 = vmatpush1.xpose.msra.mxu0 %v2191
        %2765 = vmatprep.subr.mxu0 %v2194
        %2766 = vmatpush1.xpose.msra.mxu0 %v2193
        %2767 = vmatprep.mubr.f32.mxu0 %v2276
        %2768 = vmatmul.mubr.f32.gmra.mrb[0].mxu0 %v2275
        %v2769 = vpop.f32.mrb[0].mxu0
        %v2770 = vadd.f32 0.0, %v2769
        %v2771 = vpop.f32.mrb[0].mxu0
        %v2772 = vadd.f32 0.0, %v2771
        %2773 = vdwg.mxu0
        %2774 = vmatprep.subr.mxu0 %v2196
        %2775 = vmatpush1.xpose.msra.mxu0 %v2195
        %2776 = vmatprep.subr.mxu0 %v2198
        %2777 = vmatpush1.xpose.msra.mxu0 %v2197
        %2778 = vmatprep.subr.mxu0 %v2200
        %2779 = vmatpush1.xpose.msra.mxu0 %v2199
        %2780 = vmatprep.subr.mxu0 %v2202
        %2781 = vmatpush1.xpose.msra.mxu0 %v2201
        %2782 = vmatprep.subr.mxu0 %v2204
        %2783 = vmatpush1.xpose.msra.mxu0 %v2203
        %2784 = vmatprep.subr.mxu0 %v2206
        %2785 = vmatpush1.xpose.msra.mxu0 %v2205
        %2786 = vmatprep.subr.mxu0 %v2208
        %2787 = vmatpush1.xpose.msra.mxu0 %v2207
        %2788 = vmatprep.subr.mxu0 %v2210
        %2789 = vmatpush1.xpose.msra.mxu0 %v2209
        %2790 = vmatprep.subr.mxu0 %v2212
        %2791 = vmatpush1.xpose.msra.mxu0 %v2211
        %2792 = vmatprep.subr.mxu0 %v2214
        %2793 = vmatpush1.xpose.msra.mxu0 %v2213
        %2794 = vmatprep.subr.mxu0 %v2216
        %2795 = vmatpush1.xpose.msra.mxu0 %v2215
        %2796 = vmatprep.subr.mxu0 %v2218
        %2797 = vmatpush1.xpose.msra.mxu0 %v2217
        %2798 = vmatprep.subr.mxu0 %v2220
        %2799 = vmatpush1.xpose.msra.mxu0 %v2219
        %2800 = vmatprep.subr.mxu0 %v2222
        %2801 = vmatpush1.xpose.msra.mxu0 %v2221
        %2802 = vmatprep.subr.mxu0 %v2224
        %2803 = vmatpush1.xpose.msra.mxu0 %v2223
        %2804 = vmatprep.subr.mxu0 %v2226
        %2805 = vmatpush1.xpose.msra.mxu0 %v2225
        %2806 = vmatprep.subr.mxu0 %v2228
        %2807 = vmatpush1.xpose.msra.mxu0 %v2227
        %2808 = vmatprep.subr.mxu0 %v2230
        %2809 = vmatpush1.xpose.msra.mxu0 %v2229
        %2810 = vmatprep.subr.mxu0 %v2232
        %2811 = vmatpush1.xpose.msra.mxu0 %v2231
        %2812 = vmatprep.subr.mxu0 %v2234
        %2813 = vmatpush1.xpose.msra.mxu0 %v2233
        %2814 = vmatprep.subr.mxu0 %v2236
        %2815 = vmatpush1.xpose.msra.mxu0 %v2235
        %2816 = vmatprep.subr.mxu0 %v2238
        %2817 = vmatpush1.xpose.msra.mxu0 %v2237
        %2818 = vmatprep.subr.mxu0 %v2240
        %2819 = vmatpush1.xpose.msra.mxu0 %v2239
        %2820 = vmatprep.subr.mxu0 %v2242
        %2821 = vmatpush1.xpose.msra.mxu0 %v2241
        %2822 = vmatprep.subr.mxu0 %v2244
        %2823 = vmatpush1.xpose.msra.mxu0 %v2243
        %2824 = vmatprep.subr.mxu0 %v2246
        %2825 = vmatpush1.xpose.msra.mxu0 %v2245
        %2826 = vmatprep.subr.mxu0 %v2248
        %2827 = vmatpush1.xpose.msra.mxu0 %v2247
        %2828 = vmatprep.subr.mxu0 %v2250
        %2829 = vmatpush1.xpose.msra.mxu0 %v2249
        %2830 = vmatprep.subr.mxu0 %v2252
        %2831 = vmatpush1.xpose.msra.mxu0 %v2251
        %2832 = vmatprep.subr.mxu0 %v2254
        %2833 = vmatpush1.xpose.msra.mxu0 %v2253
        %2834 = vmatprep.subr.mxu0 %v2256
        %2835 = vmatpush1.xpose.msra.mxu0 %v2255
        %2836 = vmatprep.subr.mxu0 %v2258
        %2837 = vmatpush1.xpose.msra.mxu0 %v2257
        %2838 = vmatprep.mubr.f32.mxu0 %v2276
        %2839 = vmatmul.mubr.f32.gmra.mrb[0].mxu0 %v2275
        %v2840 = vpop.f32.mrb[0].mxu0
        %v2841 = vadd.f32 0.0, %v2840
        %v2842 = vpop.f32.mrb[0].mxu0
        %v2843 = vadd.f32 0.0, %v2842
        %2844 = vdwg.mxu0
        %v2845 = vadd.f32 %v2259, %v2344
        %v2846 = vadd.f32 %v2260, %v2346
        %v2847 = vadd.f32 %v2261, %v2415
        %v2848 = vadd.f32 %v2262, %v2417
        %v2849 = vadd.f32 %v2263, %v2486
        %v2850 = vadd.f32 %v2264, %v2488
        %v2851 = vadd.f32 %v2265, %v2557
        %v2852 = vadd.f32 %v2266, %v2559
        %v2853 = vadd.f32 %v2267, %v2628
        %v2854 = vadd.f32 %v2268, %v2630
        %v2855 = vadd.f32 %v2269, %v2699
        %v2856 = vadd.f32 %v2270, %v2701
        %v2857 = vadd.f32 %v2271, %v2770
        %v2858 = vadd.f32 %v2272, %v2772
        %v2859 = vadd.f32 %v2273, %v2841
        %v2860 = vadd.f32 %v2274, %v2843
        %2861 = vst [vmem:[#allocation2] sm:$0xff] %v2845
        %2862 = vst [vmem:[#allocation2 + $0x8] sm:$0xff] %v2846
        %2863 = vst [vmem:[#allocation2 + $0x10] sm:$0xff] %v2847
        %2864 = vst [vmem:[#allocation2 + $0x18] sm:$0xff] %v2848
        %2865 = vst [vmem:[#allocation2 + $0x20] sm:$0xff] %v2849
        %2866 = vst [vmem:[#allocation2 + $0x28] sm:$0xff] %v2850
        %2867 = vst [vmem:[#allocation2 + $0x30] sm:$0xff] %v2851
        %2868 = vst [vmem:[#allocation2 + $0x38] sm:$0xff] %v2852
        %2869 = vst [vmem:[#allocation2 + $0x40] sm:$0xff] %v2853
        %2870 = vst [vmem:[#allocation2 + $0x48] sm:$0xff] %v2854
        %2871 = vst [vmem:[#allocation2 + $0x50] sm:$0xff] %v2855
        %2872 = vst [vmem:[#allocation2 + $0x58] sm:$0xff] %v2856
        %2873 = vst [vmem:[#allocation2 + $0x60] sm:$0xff] %v2857
        %2874 = vst [vmem:[#allocation2 + $0x68] sm:$0xff] %v2858
        %2875 = vst [vmem:[#allocation2 + $0x70] sm:$0xff] %v2859
        %2876 = vst [vmem:[#allocation2 + $0x78] sm:$0xff] %v2860
        // Predicated region
        $region41: #{tpu_custom_call.1} parent=27 // pred_check
          %p2877 = pneg %p179
        $region42: #{tpu_custom_call.1} parent=27 // pred_check_branch
          %2879 = sbr.rel (%p2877) target = $region44
        $region43: #{tpu_custom_call.1} parent=27 // pred_region
          %v2880 = vld [vmem:[#allocation2] sm:$0xff]
          %v2881 = vld [vmem:[#allocation2 + $0x8] sm:$0xff]
          %v2882 = vld [vmem:[#allocation2 + $0x10] sm:$0xff]
          %v2883 = vld [vmem:[#allocation2 + $0x18] sm:$0xff]
          %v2884 = vld [vmem:[#allocation2 + $0x20] sm:$0xff]
          %v2885 = vld [vmem:[#allocation2 + $0x28] sm:$0xff]
          %v2886 = vld [vmem:[#allocation2 + $0x30] sm:$0xff]
          %v2887 = vld [vmem:[#allocation2 + $0x38] sm:$0xff]
          %v2888 = vld [vmem:[#allocation2 + $0x40] sm:$0xff]
          %v2889 = vld [vmem:[#allocation2 + $0x48] sm:$0xff]
          %v2890 = vld [vmem:[#allocation2 + $0x50] sm:$0xff]
          %v2891 = vld [vmem:[#allocation2 + $0x58] sm:$0xff]
          %v2892 = vld [vmem:[#allocation2 + $0x60] sm:$0xff]
          %v2893 = vld [vmem:[#allocation2 + $0x68] sm:$0xff]
          %v2894 = vld [vmem:[#allocation2 + $0x70] sm:$0xff]
          %v2895 = vld [vmem:[#allocation2 + $0x78] sm:$0xff]
          %2896 = vst [vmem:[%s175] sm:$0xff] %v2880
          %2897 = vst [vmem:[%s175 + $0x8] sm:$0xff] %v2881
          %2898 = vst [vmem:[%s175 + $0x10] sm:$0xff] %v2882
          %2899 = vst [vmem:[%s175 + $0x18] sm:$0xff] %v2883
          %2900 = vst [vmem:[%s175 + $0x20] sm:$0xff] %v2884
          %2901 = vst [vmem:[%s175 + $0x28] sm:$0xff] %v2885
          %2902 = vst [vmem:[%s175 + $0x30] sm:$0xff] %v2886
          %2903 = vst [vmem:[%s175 + $0x38] sm:$0xff] %v2887
          %2904 = vst [vmem:[%s175 + $0x40] sm:$0xff] %v2888
          %2905 = vst [vmem:[%s175 + $0x48] sm:$0xff] %v2889
          %2906 = vst [vmem:[%s175 + $0x50] sm:$0xff] %v2890
          %2907 = vst [vmem:[%s175 + $0x58] sm:$0xff] %v2891
          %2908 = vst [vmem:[%s175 + $0x60] sm:$0xff] %v2892
          %2909 = vst [vmem:[%s175 + $0x68] sm:$0xff] %v2893
          %2910 = vst [vmem:[%s175 + $0x70] sm:$0xff] %v2894
          %2911 = vst [vmem:[%s175 + $0x78] sm:$0xff] %v2895
        $region44: #{tpu_custom_call.1} parent=27 // pred_fallthru
          _
        %s2912 = sand.u32 %s90, 1
        %s2913 = scalar_lea.sflag [#allocation5], %s2912
        %s2914 = sand.u32 %s90, 1
        %s2915 = smul.addr %s2914, 128
        %s2916 = scalar_lea.vmem [#allocation8], %s2915
        // Predicated region
        $region45: #{tpu_custom_call.1} parent=27 // pred_check
          %p2917 = pneg %p100
        $region46: #{tpu_custom_call.1} parent=27 // pred_check_branch
          %2919 = sbr.rel (%p2917) target = $region48
        $region47: #{tpu_custom_call.1} parent=27 // pred_region
          %s2920 = smul.u32 16, %s22
          %s2922 = ssub.s32 2048, 2048
          %2923 = vsyncadd %s2913, %s2922
          %s2924 = smul.addr %s2920, 128
          %s2925 = scalar_lea.hbm %s2, %s2924
          %s2927 = sshll.u32 %s2916, 4
          %s2928 = int_to_ptr.vmem [resolvable:$true] %s2927
          %2930 = dma.vmem_to_hbm [thread:$0]  %s2928, 2048, %s2925, %s2913
        $region48: #{tpu_custom_call.1} parent=27 // pred_fallthru
          _
      $region28: #{tpu_custom_call.1} parent=5 // pred_fallthru
        _
      %p2931 = scmp.le.s32.totalorder 2, %s13
      // Predicated region
      $region49: #{tpu_custom_call.1} parent=5 // pred_check
        %p2932 = pneg %p2931
      $region50: #{tpu_custom_call.1} parent=5 // pred_check_branch
        %2934 = sbr.rel (%p2932) target = $region52
      $region51: #{tpu_custom_call.1} parent=5 // pred_region
        %s2935 = ssub.s32 %s13, 2
        // Predicated region
        $region53: #{tpu_custom_call.1} parent=51 // pred_check
          %p2936 = pneg %p106
        $region54: #{tpu_custom_call.1} parent=51 // pred_check_branch
          %2938 = sbr.rel (%p2936) target = $region56
        $region55: #{tpu_custom_call.1} parent=51 // pred_region
          %s2939 = sand.u32 %s91, 1
          %s2940 = scalar_lea.sflag [#allocation5], %s2939
          %s2941 = sand.u32 %s91, 1
          %s2942 = smul.addr %s2941, 128
          %s2943 = scalar_lea.vmem [#allocation8], %s2942
          %2944 = dma.done %s2940, 2048
        $region56: #{tpu_custom_call.1} parent=51 // pred_fallthru
          _
      $region52: #{tpu_custom_call.1} parent=5 // pred_fallthru
        _
    $region6: #{tpu_custom_call.1} parent=1 // loop_footer
      %s17 = sadd.s32 1, %s13
    $region7: #{tpu_custom_call.1} parent=1 // loop_footer_branch
      %12 = sbr.rel target = $region3
    $region8: #{tpu_custom_call.1} parent=1 // loop_exit
      _
    %2945 = vsyncpa [#allocation4], 1
    %s2946 = scalar_lea.sflag [#allocation4], 1
    %2947 = vsyncpa %s2946, 1
    %2948 = vsyncpa [#allocation7], 1
    %2949 = vsyncpa [#allocation5], 1
    %s2950 = scalar_lea.sflag [#allocation5], 1
    %2951 = vsyncpa %s2950, 1

</llo_original>
